<compile_context>
chip_gen: v7x
topology: tpu7x:2x2x1
jax: 0.10.0
libtpu: 0.0.40
codegen_flags: <defaults>
</compile_context>

<pallas_src>
import functools

import jax
import jax.numpy as jnp
from jax import lax
from jax.experimental import pallas as pl
from jax.experimental.pallas import tpu as pltpu

N_EMBD = 384
N_HEADS = 6
HEAD_DIM = N_EMBD // N_HEADS  # 64
BLOCK_SIZE = 256  # causal-mask capacity of the module (only first T rows/cols used)


def _mha_kernel(x_ref, wqkv_ref, wp_ref, bp_ref, o_ref, att_ref, *, n_heads, head_dim):
    # x_ref:    (B_blk, T, C)        f32 input block
    # wqkv_ref: (C, 3*H*D)           bf16 fused [Q|K|V] weights (Q pre-scaled by D^-0.5)
    # wp_ref:   (H*D, C)             bf16 output-projection weight (pre-transposed)
    # bp_ref:   (1, C)               f32 output-projection bias
    # o_ref:    (B_blk, T, C)        f32 output block
    # att_ref:  (B_blk*T, H*D)       f32 VMEM scratch slab (replaces concatenate)
    b_blk, T, C = x_ref.shape
    H, D = n_heads, head_dim
    HD = H * D
    M = b_blk * T

    # ---- fused, lane-dense QKV projection: one (M, C) @ (C, 3*H*D) matmul ----
    x2d = x_ref[...].reshape(M, C).astype(jnp.bfloat16)
    qkv = jnp.dot(x2d, wqkv_ref[...], preferred_element_type=jnp.float32)  # (M, 3*H*D) f32

    # causal (lower-triangular) mask, shared by all (b, h)
    rows = lax.broadcasted_iota(jnp.int32, (T, T), 0)
    cols = lax.broadcasted_iota(jnp.int32, (T, T), 1)
    causal = cols <= rows

    # ---- per (batch-element, head) T x T attention ----
    for b in range(b_blk):
        r0 = b * T
        for h in range(H):
            c0 = h * D
            q = qkv[r0:r0 + T, c0:c0 + D].astype(jnp.bfloat16)            # scaled already
            k = qkv[r0:r0 + T, HD + c0:HD + c0 + D].astype(jnp.bfloat16)
            v = qkv[r0:r0 + T, 2 * HD + c0:2 * HD + c0 + D].astype(jnp.bfloat16)

            # q @ k.T via dot_general contracting on D (no explicit transpose)
            s = lax.dot_general(q, k, (((1,), (1,)), ((), ())),
                                preferred_element_type=jnp.float32)        # (T, T) f32
            s = jnp.where(causal, s, -1e30)

            # numerically-stable softmax (f32); reciprocal on the EUP
            m = jnp.max(s, axis=-1, keepdims=True)
            e = jnp.exp(s - m)
            p = e * pl.reciprocal(jnp.sum(e, axis=-1, keepdims=True), approx=True)

            o_bh = jnp.dot(p.astype(jnp.bfloat16), v,
                           preferred_element_type=jnp.float32)             # (T, D) f32
            att_ref[pl.ds(r0, T), pl.ds(c0, D)] = o_bh

    # ---- lane-dense output projection: (M, H*D) @ (H*D, C) ----
    att = att_ref[...].astype(jnp.bfloat16)
    out = jnp.dot(att, wp_ref[...], preferred_element_type=jnp.float32) + bp_ref[...]
    o_ref[...] = out.reshape(b_blk, T, C).astype(o_ref.dtype)


def multi_head_attention(x, wq, wk, wv, w_proj, b_proj, *, b_block=None):
    """x: (B, T, C); wq/wk/wv: (H, C, D); w_proj: (H*D, C); b_proj: (1, C).

    b_block: batch elements per grid step (default: whole batch, maximizing the
    matmul M dimension).  On v7x, set b_block = B // 2 for large B so the
    parallel batch axis shards across both TensorCores.
    """
    B, T, C = x.shape
    H, _, D = wq.shape
    HD = H * D
    if b_block is None:
        b_block = B
    assert B % b_block == 0, "b_block must divide the batch size"

    # Fuse [Q | K | V] into a single (C, 3*H*D) weight; fold the 1/sqrt(D) score
    # scale into the Q columns.  Cast weights to bf16 once, outside the kernel.
    scale = D ** (-0.5)
    wq_f = (jnp.transpose(wq, (1, 0, 2)).reshape(C, HD) * scale)
    wk_f = jnp.transpose(wk, (1, 0, 2)).reshape(C, HD)
    wv_f = jnp.transpose(wv, (1, 0, 2)).reshape(C, HD)
    w_qkv = jnp.concatenate([wq_f, wk_f, wv_f], axis=1).astype(jnp.bfloat16)  # (C, 3*H*D)
    w_p = w_proj.astype(jnp.bfloat16)                                          # (H*D, C)
    b_p = b_proj.astype(jnp.float32).reshape(1, C)

    kernel = functools.partial(_mha_kernel, n_heads=H, head_dim=D)

    return pl.pallas_call(
        kernel,
        out_shape=jax.ShapeDtypeStruct((B, T, C), x.dtype),
        grid=(B // b_block,),
        in_specs=[
            pl.BlockSpec((b_block, T, C), lambda i: (i, 0, 0)),
            # Constant index_map -> blocks stay resident across grid steps.
            pl.BlockSpec((C, 3 * HD), lambda i: (0, 0)),
            pl.BlockSpec((HD, C), lambda i: (0, 0)),
            pl.BlockSpec((1, C), lambda i: (0, 0)),
        ],
        out_specs=pl.BlockSpec((b_block, T, C), lambda i: (i, 0, 0)),
        scratch_shapes=[pltpu.VMEM((b_block * T, HD), jnp.float32)],
        compiler_params=pltpu.CompilerParams(
            dimension_semantics=("parallel",)),
    )(x, w_qkv, w_p, b_p)


def reference(x, wq, wk, wv, w_proj, b_proj):
    """Pure-JAX f32 reference mirroring the PyTorch forward (eval mode)."""
    B, T, C = x.shape
    H, _, D = wq.shape
    outs = []
    for h in range(H):
        q = x @ wq[h]
        k = x @ wk[h]
        v = x @ wv[h]
        wei = (q @ jnp.swapaxes(k, -2, -1)) * (D ** -0.5)
        mask = jnp.tril(jnp.ones((T, T), dtype=bool))
        wei = jnp.where(mask, wei, -jnp.inf)
        wei = jax.nn.softmax(wei, axis=-1)
        outs.append(wei @ v)
    concat = jnp.concatenate(outs, axis=-1)
    return concat @ w_proj + b_proj[0]


if __name__ == "__main__":
    key = jax.random.PRNGKey(0)
    B, T = 2, 8
    k_x, k_q, k_k, k_v, k_p, k_b = jax.random.split(key, 6)

    x = jax.random.normal(k_x, (B, T, N_EMBD), dtype=jnp.float32)

    # Deterministic synthetic parameters (per-head nn.Linear weights, already
    # transposed to (in, out) layout for the kernel wrapper).
    w_scale = 0.02
    wq = w_scale * jax.random.normal(k_q, (N_HEADS, N_EMBD, HEAD_DIM), dtype=jnp.float32)
    wk = w_scale * jax.random.normal(k_k, (N_HEADS, N_EMBD, HEAD_DIM), dtype=jnp.float32)
    wv = w_scale * jax.random.normal(k_v, (N_HEADS, N_EMBD, HEAD_DIM), dtype=jnp.float32)
    w_proj = w_scale * jax.random.normal(k_p, (N_HEADS * HEAD_DIM, N_EMBD), dtype=jnp.float32)
    b_proj = w_scale * jax.random.normal(k_b, (1, N_EMBD), dtype=jnp.float32)

    out = multi_head_attention(x, wq, wk, wv, w_proj, b_proj)
    out = jax.block_until_ready(out)

    ref = reference(x, wq, wk, wv, w_proj, b_proj)
    assert out.shape == (B, T, N_EMBD)
    max_err = float(jnp.max(jnp.abs(out - ref)))
    # bf16 MXU inputs (f32 accumulation) -> loosened tolerance vs the f32 reference.
    assert jnp.allclose(out, ref, atol=2e-2, rtol=2e-2), (
        f"mismatch vs JAX reference (max abs err {max_err})")

    print("KERNEL_OK")
</pallas_src>

<mosaic_0001>
module attributes {stable_mosaic.version = 11 : i64} {
  func.func @_mha_kernel(%arg0: i32, %arg1: memref<2x8x384xf32, #tpu.memory_space<vmem>>, %arg2: memref<384x1152xbf16, #tpu.memory_space<vmem>>, %arg3: memref<384x384xbf16, #tpu.memory_space<vmem>>, %arg4: memref<1x384xf32, #tpu.memory_space<vmem>>, %arg5: memref<2x8x384xf32, #tpu.memory_space<vmem>>, %arg6: memref<16x384xf32, #tpu.memory_space<vmem>>) attributes {dimension_semantics = [#tpu.dimension_semantics<parallel>], iteration_bounds = array<i64: 1>, scalar_prefetch = 0 : i64, scratch_operands = 1 : i64, tpu.core_type = #tpu.core_type<tc>, window_params = [{transform_indices = @transform_0, window_bounds = array<i64: 2, 8, 384>}, {pipeline_mode = #tpu.pipeline_mode<synchronous>, transform_indices = @transform_1, window_bounds = array<i64: 384, 1152>}, {pipeline_mode = #tpu.pipeline_mode<synchronous>, transform_indices = @transform_2, window_bounds = array<i64: 384, 384>}, {pipeline_mode = #tpu.pipeline_mode<synchronous>, transform_indices = @transform_3, window_bounds = array<i64: 1, 384>}, {transform_indices = @transform_4, window_bounds = array<i64: 2, 8, 384>}]} {
    %c0 = arith.constant 0 : index
    %c0_0 = arith.constant 0 : index
    %c0_1 = arith.constant 0 : index
    %0 = vector.load %arg1[%c0, %c0_0, %c0_1] : memref<2x8x384xf32, #tpu.memory_space<vmem>>, vector<2x8x384xf32>
    %1 = vector.shape_cast %0 : vector<2x8x384xf32> to vector<16x384xf32>
    %2 = arith.truncf %1 : vector<16x384xf32> to vector<16x384xbf16>
    %c0_2 = arith.constant 0 : index
    %c0_3 = arith.constant 0 : index
    %3 = vector.load %arg2[%c0_2, %c0_3] : memref<384x1152xbf16, #tpu.memory_space<vmem>>, vector<384x1152xbf16>
    %cst = arith.constant dense<0.000000e+00> : vector<16x1152xf32>
    %4 = tpu.matmul %2, %3, %cst {dimension_numbers = #tpu.dot_dimension_numbers<[1], [0], [0], [1], [0, 0, 1, 1], [], []>} : vector<16x384xbf16>, vector<384x1152xbf16>, vector<16x1152xf32> -> vector<16x1152xf32>
    %5 = tpu.iota {dimensions = array<i32: 0>} : vector<8x8xi32>
    %6 = tpu.iota {dimensions = array<i32: 1>} : vector<8x8xi32>
    %7 = arith.cmpi sle, %6, %5 : vector<8x8xi32>
    %8 = vector.extract_strided_slice %4 {offsets = [0, 0], sizes = [8, 64], strides = [1, 1]} : vector<16x1152xf32> to vector<8x64xf32>
    %9 = arith.truncf %8 : vector<8x64xf32> to vector<8x64xbf16>
    %10 = vector.extract_strided_slice %4 {offsets = [0, 384], sizes = [8, 64], strides = [1, 1]} : vector<16x1152xf32> to vector<8x64xf32>
    %11 = arith.truncf %10 : vector<8x64xf32> to vector<8x64xbf16>
    %12 = vector.extract_strided_slice %4 {offsets = [0, 768], sizes = [8, 64], strides = [1, 1]} : vector<16x1152xf32> to vector<8x64xf32>
    %13 = arith.truncf %12 : vector<8x64xf32> to vector<8x64xbf16>
    %cst_4 = arith.constant dense<0.000000e+00> : vector<8x8xf32>
    %14 = tpu.matmul %9, %11, %cst_4 {dimension_numbers = #tpu.dot_dimension_numbers<[1], [1], [0], [0], [0, 0, 1, 0], [], []>} : vector<8x64xbf16>, vector<8x64xbf16>, vector<8x8xf32> -> vector<8x8xf32>
    %cst_5 = arith.constant -1.000000e+30 : f32
    %15 = vector.broadcast %cst_5 : f32 to vector<8x8xf32>
    %16 = arith.select %7, %14, %15 : vector<8x8xi1>, vector<8x8xf32>
    %cst_6 = arith.constant dense<0xFF800000> : vector<8xf32>
    %17 = vector.multi_reduction <maximumf>, %16, %cst_6 [1] : vector<8x8xf32> to vector<8xf32>
    %18 = vector.shape_cast %17 : vector<8xf32> to vector<8x1xf32>
    %19 = vector.broadcast %18 : vector<8x1xf32> to vector<8x8xf32>
    %20 = arith.subf %16, %19 : vector<8x8xf32>
    %21 = math.exp %20 : vector<8x8xf32>
    %cst_7 = arith.constant dense<0.000000e+00> : vector<8xf32>
    %22 = vector.multi_reduction <add>, %21, %cst_7 [1] : vector<8x8xf32> to vector<8xf32>
    %23 = vector.shape_cast %22 : vector<8xf32> to vector<8x1xf32>
    %24 = tpu.reciprocal %23 {approx = true} : vector<8x1xf32> -> vector<8x1xf32>
    %25 = vector.broadcast %24 : vector<8x1xf32> to vector<8x8xf32>
    %26 = arith.mulf %21, %25 : vector<8x8xf32>
    %27 = arith.truncf %26 : vector<8x8xf32> to vector<8x8xbf16>
    %cst_8 = arith.constant dense<0.000000e+00> : vector<8x64xf32>
    %28 = tpu.matmul %27, %13, %cst_8 {dimension_numbers = #tpu.dot_dimension_numbers<[1], [0], [0], [1], [0, 0, 1, 1], [], []>} : vector<8x8xbf16>, vector<8x64xbf16>, vector<8x64xf32> -> vector<8x64xf32>
    %c0_9 = arith.constant 0 : index
    %c0_10 = arith.constant 0 : index
    %29 = vector.load %arg6[%c0_9, %c0_10] : memref<16x384xf32, #tpu.memory_space<vmem>>, vector<8x64xf32>
    tpu.vector_store %arg6[%c0_9, %c0_10], %28 {strides = array<i32>} : memref<16x384xf32, #tpu.memory_space<vmem>>, vector<8x64xf32>,
    %30 = vector.extract_strided_slice %4 {offsets = [0, 64], sizes = [8, 64], strides = [1, 1]} : vector<16x1152xf32> to vector<8x64xf32>
    %31 = arith.truncf %30 : vector<8x64xf32> to vector<8x64xbf16>
    %32 = vector.extract_strided_slice %4 {offsets = [0, 448], sizes = [8, 64], strides = [1, 1]} : vector<16x1152xf32> to vector<8x64xf32>
    %33 = arith.truncf %32 : vector<8x64xf32> to vector<8x64xbf16>
    %34 = vector.extract_strided_slice %4 {offsets = [0, 832], sizes = [8, 64], strides = [1, 1]} : vector<16x1152xf32> to vector<8x64xf32>
    %35 = arith.truncf %34 : vector<8x64xf32> to vector<8x64xbf16>
    %cst_11 = arith.constant dense<0.000000e+00> : vector<8x8xf32>
    %36 = tpu.matmul %31, %33, %cst_11 {dimension_numbers = #tpu.dot_dimension_numbers<[1], [1], [0], [0], [0, 0, 1, 0], [], []>} : vector<8x64xbf16>, vector<8x64xbf16>, vector<8x8xf32> -> vector<8x8xf32>
    %cst_12 = arith.constant -1.000000e+30 : f32
    %37 = vector.broadcast %cst_12 : f32 to vector<8x8xf32>
    %38 = arith.select %7, %36, %37 : vector<8x8xi1>, vector<8x8xf32>
    %cst_13 = arith.constant dense<0xFF800000> : vector<8xf32>
    %39 = vector.multi_reduction <maximumf>, %38, %cst_13 [1] : vector<8x8xf32> to vector<8xf32>
    %40 = vector.shape_cast %39 : vector<8xf32> to vector<8x1xf32>
    %41 = vector.broadcast %40 : vector<8x1xf32> to vector<8x8xf32>
    %42 = arith.subf %38, %41 : vector<8x8xf32>
    %43 = math.exp %42 : vector<8x8xf32>
    %cst_14 = arith.constant dense<0.000000e+00> : vector<8xf32>
    %44 = vector.multi_reduction <add>, %43, %cst_14 [1] : vector<8x8xf32> to vector<8xf32>
    %45 = vector.shape_cast %44 : vector<8xf32> to vector<8x1xf32>
    %46 = tpu.reciprocal %45 {approx = true} : vector<8x1xf32> -> vector<8x1xf32>
    %47 = vector.broadcast %46 : vector<8x1xf32> to vector<8x8xf32>
    %48 = arith.mulf %43, %47 : vector<8x8xf32>
    %49 = arith.truncf %48 : vector<8x8xf32> to vector<8x8xbf16>
    %cst_15 = arith.constant dense<0.000000e+00> : vector<8x64xf32>
    %50 = tpu.matmul %49, %35, %cst_15 {dimension_numbers = #tpu.dot_dimension_numbers<[1], [0], [0], [1], [0, 0, 1, 1], [], []>} : vector<8x8xbf16>, vector<8x64xbf16>, vector<8x64xf32> -> vector<8x64xf32>
    %c0_16 = arith.constant 0 : index
    %c64 = arith.constant 64 : index
    %51 = vector.load %arg6[%c0_16, %c64] : memref<16x384xf32, #tpu.memory_space<vmem>>, vector<8x64xf32>
    tpu.vector_store %arg6[%c0_16, %c64], %50 {strides = array<i32>} : memref<16x384xf32, #tpu.memory_space<vmem>>, vector<8x64xf32>,
    %52 = vector.extract_strided_slice %4 {offsets = [0, 128], sizes = [8, 64], strides = [1, 1]} : vector<16x1152xf32> to vector<8x64xf32>
    %53 = arith.truncf %52 : vector<8x64xf32> to vector<8x64xbf16>
    %54 = vector.extract_strided_slice %4 {offsets = [0, 512], sizes = [8, 64], strides = [1, 1]} : vector<16x1152xf32> to vector<8x64xf32>
    %55 = arith.truncf %54 : vector<8x64xf32> to vector<8x64xbf16>
    %56 = vector.extract_strided_slice %4 {offsets = [0, 896], sizes = [8, 64], strides = [1, 1]} : vector<16x1152xf32> to vector<8x64xf32>
    %57 = arith.truncf %56 : vector<8x64xf32> to vector<8x64xbf16>
    %cst_17 = arith.constant dense<0.000000e+00> : vector<8x8xf32>
    %58 = tpu.matmul %53, %55, %cst_17 {dimension_numbers = #tpu.dot_dimension_numbers<[1], [1], [0], [0], [0, 0, 1, 0], [], []>} : vector<8x64xbf16>, vector<8x64xbf16>, vector<8x8xf32> -> vector<8x8xf32>
    %cst_18 = arith.constant -1.000000e+30 : f32
    %59 = vector.broadcast %cst_18 : f32 to vector<8x8xf32>
    %60 = arith.select %7, %58, %59 : vector<8x8xi1>, vector<8x8xf32>
    %cst_19 = arith.constant dense<0xFF800000> : vector<8xf32>
    %61 = vector.multi_reduction <maximumf>, %60, %cst_19 [1] : vector<8x8xf32> to vector<8xf32>
    %62 = vector.shape_cast %61 : vector<8xf32> to vector<8x1xf32>
    %63 = vector.broadcast %62 : vector<8x1xf32> to vector<8x8xf32>
    %64 = arith.subf %60, %63 : vector<8x8xf32>
    %65 = math.exp %64 : vector<8x8xf32>
    %cst_20 = arith.constant dense<0.000000e+00> : vector<8xf32>
    %66 = vector.multi_reduction <add>, %65, %cst_20 [1] : vector<8x8xf32> to vector<8xf32>
    %67 = vector.shape_cast %66 : vector<8xf32> to vector<8x1xf32>
    %68 = tpu.reciprocal %67 {approx = true} : vector<8x1xf32> -> vector<8x1xf32>
    %69 = vector.broadcast %68 : vector<8x1xf32> to vector<8x8xf32>
    %70 = arith.mulf %65, %69 : vector<8x8xf32>
    %71 = arith.truncf %70 : vector<8x8xf32> to vector<8x8xbf16>
    %cst_21 = arith.constant dense<0.000000e+00> : vector<8x64xf32>
    %72 = tpu.matmul %71, %57, %cst_21 {dimension_numbers = #tpu.dot_dimension_numbers<[1], [0], [0], [1], [0, 0, 1, 1], [], []>} : vector<8x8xbf16>, vector<8x64xbf16>, vector<8x64xf32> -> vector<8x64xf32>
    %c0_22 = arith.constant 0 : index
    %c128 = arith.constant 128 : index
    %73 = vector.load %arg6[%c0_22, %c128] : memref<16x384xf32, #tpu.memory_space<vmem>>, vector<8x64xf32>
    tpu.vector_store %arg6[%c0_22, %c128], %72 {strides = array<i32>} : memref<16x384xf32, #tpu.memory_space<vmem>>, vector<8x64xf32>,
    %74 = vector.extract_strided_slice %4 {offsets = [0, 192], sizes = [8, 64], strides = [1, 1]} : vector<16x1152xf32> to vector<8x64xf32>
    %75 = arith.truncf %74 : vector<8x64xf32> to vector<8x64xbf16>
    %76 = vector.extract_strided_slice %4 {offsets = [0, 576], sizes = [8, 64], strides = [1, 1]} : vector<16x1152xf32> to vector<8x64xf32>
    %77 = arith.truncf %76 : vector<8x64xf32> to vector<8x64xbf16>
    %78 = vector.extract_strided_slice %4 {offsets = [0, 960], sizes = [8, 64], strides = [1, 1]} : vector<16x1152xf32> to vector<8x64xf32>
    %79 = arith.truncf %78 : vector<8x64xf32> to vector<8x64xbf16>
    %cst_23 = arith.constant dense<0.000000e+00> : vector<8x8xf32>
    %80 = tpu.matmul %75, %77, %cst_23 {dimension_numbers = #tpu.dot_dimension_numbers<[1], [1], [0], [0], [0, 0, 1, 0], [], []>} : vector<8x64xbf16>, vector<8x64xbf16>, vector<8x8xf32> -> vector<8x8xf32>
    %cst_24 = arith.constant -1.000000e+30 : f32
    %81 = vector.broadcast %cst_24 : f32 to vector<8x8xf32>
    %82 = arith.select %7, %80, %81 : vector<8x8xi1>, vector<8x8xf32>
    %cst_25 = arith.constant dense<0xFF800000> : vector<8xf32>
    %83 = vector.multi_reduction <maximumf>, %82, %cst_25 [1] : vector<8x8xf32> to vector<8xf32>
    %84 = vector.shape_cast %83 : vector<8xf32> to vector<8x1xf32>
    %85 = vector.broadcast %84 : vector<8x1xf32> to vector<8x8xf32>
    %86 = arith.subf %82, %85 : vector<8x8xf32>
    %87 = math.exp %86 : vector<8x8xf32>
    %cst_26 = arith.constant dense<0.000000e+00> : vector<8xf32>
    %88 = vector.multi_reduction <add>, %87, %cst_26 [1] : vector<8x8xf32> to vector<8xf32>
    %89 = vector.shape_cast %88 : vector<8xf32> to vector<8x1xf32>
    %90 = tpu.reciprocal %89 {approx = true} : vector<8x1xf32> -> vector<8x1xf32>
    %91 = vector.broadcast %90 : vector<8x1xf32> to vector<8x8xf32>
    %92 = arith.mulf %87, %91 : vector<8x8xf32>
    %93 = arith.truncf %92 : vector<8x8xf32> to vector<8x8xbf16>
    %cst_27 = arith.constant dense<0.000000e+00> : vector<8x64xf32>
    %94 = tpu.matmul %93, %79, %cst_27 {dimension_numbers = #tpu.dot_dimension_numbers<[1], [0], [0], [1], [0, 0, 1, 1], [], []>} : vector<8x8xbf16>, vector<8x64xbf16>, vector<8x64xf32> -> vector<8x64xf32>
    %c0_28 = arith.constant 0 : index
    %c192 = arith.constant 192 : index
    %95 = vector.load %arg6[%c0_28, %c192] : memref<16x384xf32, #tpu.memory_space<vmem>>, vector<8x64xf32>
    tpu.vector_store %arg6[%c0_28, %c192], %94 {strides = array<i32>} : memref<16x384xf32, #tpu.memory_space<vmem>>, vector<8x64xf32>,
    %96 = vector.extract_strided_slice %4 {offsets = [0, 256], sizes = [8, 64], strides = [1, 1]} : vector<16x1152xf32> to vector<8x64xf32>
    %97 = arith.truncf %96 : vector<8x64xf32> to vector<8x64xbf16>
    %98 = vector.extract_strided_slice %4 {offsets = [0, 640], sizes = [8, 64], strides = [1, 1]} : vector<16x1152xf32> to vector<8x64xf32>
    %99 = arith.truncf %98 : vector<8x64xf32> to vector<8x64xbf16>
    %100 = vector.extract_strided_slice %4 {offsets = [0, 1024], sizes = [8, 64], strides = [1, 1]} : vector<16x1152xf32> to vector<8x64xf32>
    %101 = arith.truncf %100 : vector<8x64xf32> to vector<8x64xbf16>
    %cst_29 = arith.constant dense<0.000000e+00> : vector<8x8xf32>
    %102 = tpu.matmul %97, %99, %cst_29 {dimension_numbers = #tpu.dot_dimension_numbers<[1], [1], [0], [0], [0, 0, 1, 0], [], []>} : vector<8x64xbf16>, vector<8x64xbf16>, vector<8x8xf32> -> vector<8x8xf32>
    %cst_30 = arith.constant -1.000000e+30 : f32
    %103 = vector.broadcast %cst_30 : f32 to vector<8x8xf32>
    %104 = arith.select %7, %102, %103 : vector<8x8xi1>, vector<8x8xf32>
    %cst_31 = arith.constant dense<0xFF800000> : vector<8xf32>
    %105 = vector.multi_reduction <maximumf>, %104, %cst_31 [1] : vector<8x8xf32> to vector<8xf32>
    %106 = vector.shape_cast %105 : vector<8xf32> to vector<8x1xf32>
    %107 = vector.broadcast %106 : vector<8x1xf32> to vector<8x8xf32>
    %108 = arith.subf %104, %107 : vector<8x8xf32>
    %109 = math.exp %108 : vector<8x8xf32>
    %cst_32 = arith.constant dense<0.000000e+00> : vector<8xf32>
    %110 = vector.multi_reduction <add>, %109, %cst_32 [1] : vector<8x8xf32> to vector<8xf32>
    %111 = vector.shape_cast %110 : vector<8xf32> to vector<8x1xf32>
    %112 = tpu.reciprocal %111 {approx = true} : vector<8x1xf32> -> vector<8x1xf32>
    %113 = vector.broadcast %112 : vector<8x1xf32> to vector<8x8xf32>
    %114 = arith.mulf %109, %113 : vector<8x8xf32>
    %115 = arith.truncf %114 : vector<8x8xf32> to vector<8x8xbf16>
    %cst_33 = arith.constant dense<0.000000e+00> : vector<8x64xf32>
    %116 = tpu.matmul %115, %101, %cst_33 {dimension_numbers = #tpu.dot_dimension_numbers<[1], [0], [0], [1], [0, 0, 1, 1], [], []>} : vector<8x8xbf16>, vector<8x64xbf16>, vector<8x64xf32> -> vector<8x64xf32>
    %c0_34 = arith.constant 0 : index
    %c256 = arith.constant 256 : index
    %117 = vector.load %arg6[%c0_34, %c256] : memref<16x384xf32, #tpu.memory_space<vmem>>, vector<8x64xf32>
    tpu.vector_store %arg6[%c0_34, %c256], %116 {strides = array<i32>} : memref<16x384xf32, #tpu.memory_space<vmem>>, vector<8x64xf32>,
    %118 = vector.extract_strided_slice %4 {offsets = [0, 320], sizes = [8, 64], strides = [1, 1]} : vector<16x1152xf32> to vector<8x64xf32>
    %119 = arith.truncf %118 : vector<8x64xf32> to vector<8x64xbf16>
    %120 = vector.extract_strided_slice %4 {offsets = [0, 704], sizes = [8, 64], strides = [1, 1]} : vector<16x1152xf32> to vector<8x64xf32>
    %121 = arith.truncf %120 : vector<8x64xf32> to vector<8x64xbf16>
    %122 = vector.extract_strided_slice %4 {offsets = [0, 1088], sizes = [8, 64], strides = [1, 1]} : vector<16x1152xf32> to vector<8x64xf32>
    %123 = arith.truncf %122 : vector<8x64xf32> to vector<8x64xbf16>
    %cst_35 = arith.constant dense<0.000000e+00> : vector<8x8xf32>
    %124 = tpu.matmul %119, %121, %cst_35 {dimension_numbers = #tpu.dot_dimension_numbers<[1], [1], [0], [0], [0, 0, 1, 0], [], []>} : vector<8x64xbf16>, vector<8x64xbf16>, vector<8x8xf32> -> vector<8x8xf32>
    %cst_36 = arith.constant -1.000000e+30 : f32
    %125 = vector.broadcast %cst_36 : f32 to vector<8x8xf32>
    %126 = arith.select %7, %124, %125 : vector<8x8xi1>, vector<8x8xf32>
    %cst_37 = arith.constant dense<0xFF800000> : vector<8xf32>
    %127 = vector.multi_reduction <maximumf>, %126, %cst_37 [1] : vector<8x8xf32> to vector<8xf32>
    %128 = vector.shape_cast %127 : vector<8xf32> to vector<8x1xf32>
    %129 = vector.broadcast %128 : vector<8x1xf32> to vector<8x8xf32>
    %130 = arith.subf %126, %129 : vector<8x8xf32>
    %131 = math.exp %130 : vector<8x8xf32>
    %cst_38 = arith.constant dense<0.000000e+00> : vector<8xf32>
    %132 = vector.multi_reduction <add>, %131, %cst_38 [1] : vector<8x8xf32> to vector<8xf32>
    %133 = vector.shape_cast %132 : vector<8xf32> to vector<8x1xf32>
    %134 = tpu.reciprocal %133 {approx = true} : vector<8x1xf32> -> vector<8x1xf32>
    %135 = vector.broadcast %134 : vector<8x1xf32> to vector<8x8xf32>
    %136 = arith.mulf %131, %135 : vector<8x8xf32>
    %137 = arith.truncf %136 : vector<8x8xf32> to vector<8x8xbf16>
    %cst_39 = arith.constant dense<0.000000e+00> : vector<8x64xf32>
    %138 = tpu.matmul %137, %123, %cst_39 {dimension_numbers = #tpu.dot_dimension_numbers<[1], [0], [0], [1], [0, 0, 1, 1], [], []>} : vector<8x8xbf16>, vector<8x64xbf16>, vector<8x64xf32> -> vector<8x64xf32>
    %c0_40 = arith.constant 0 : index
    %c320 = arith.constant 320 : index
    %139 = vector.load %arg6[%c0_40, %c320] : memref<16x384xf32, #tpu.memory_space<vmem>>, vector<8x64xf32>
    tpu.vector_store %arg6[%c0_40, %c320], %138 {strides = array<i32>} : memref<16x384xf32, #tpu.memory_space<vmem>>, vector<8x64xf32>,
    %140 = vector.extract_strided_slice %4 {offsets = [8, 0], sizes = [8, 64], strides = [1, 1]} : vector<16x1152xf32> to vector<8x64xf32>
    %141 = arith.truncf %140 : vector<8x64xf32> to vector<8x64xbf16>
    %142 = vector.extract_strided_slice %4 {offsets = [8, 384], sizes = [8, 64], strides = [1, 1]} : vector<16x1152xf32> to vector<8x64xf32>
    %143 = arith.truncf %142 : vector<8x64xf32> to vector<8x64xbf16>
    %144 = vector.extract_strided_slice %4 {offsets = [8, 768], sizes = [8, 64], strides = [1, 1]} : vector<16x1152xf32> to vector<8x64xf32>
    %145 = arith.truncf %144 : vector<8x64xf32> to vector<8x64xbf16>
    %cst_41 = arith.constant dense<0.000000e+00> : vector<8x8xf32>
    %146 = tpu.matmul %141, %143, %cst_41 {dimension_numbers = #tpu.dot_dimension_numbers<[1], [1], [0], [0], [0, 0, 1, 0], [], []>} : vector<8x64xbf16>, vector<8x64xbf16>, vector<8x8xf32> -> vector<8x8xf32>
    %cst_42 = arith.constant -1.000000e+30 : f32
    %147 = vector.broadcast %cst_42 : f32 to vector<8x8xf32>
    %148 = arith.select %7, %146, %147 : vector<8x8xi1>, vector<8x8xf32>
    %cst_43 = arith.constant dense<0xFF800000> : vector<8xf32>
    %149 = vector.multi_reduction <maximumf>, %148, %cst_43 [1] : vector<8x8xf32> to vector<8xf32>
    %150 = vector.shape_cast %149 : vector<8xf32> to vector<8x1xf32>
    %151 = vector.broadcast %150 : vector<8x1xf32> to vector<8x8xf32>
    %152 = arith.subf %148, %151 : vector<8x8xf32>
    %153 = math.exp %152 : vector<8x8xf32>
    %cst_44 = arith.constant dense<0.000000e+00> : vector<8xf32>
    %154 = vector.multi_reduction <add>, %153, %cst_44 [1] : vector<8x8xf32> to vector<8xf32>
    %155 = vector.shape_cast %154 : vector<8xf32> to vector<8x1xf32>
    %156 = tpu.reciprocal %155 {approx = true} : vector<8x1xf32> -> vector<8x1xf32>
    %157 = vector.broadcast %156 : vector<8x1xf32> to vector<8x8xf32>
    %158 = arith.mulf %153, %157 : vector<8x8xf32>
    %159 = arith.truncf %158 : vector<8x8xf32> to vector<8x8xbf16>
    %cst_45 = arith.constant dense<0.000000e+00> : vector<8x64xf32>
    %160 = tpu.matmul %159, %145, %cst_45 {dimension_numbers = #tpu.dot_dimension_numbers<[1], [0], [0], [1], [0, 0, 1, 1], [], []>} : vector<8x8xbf16>, vector<8x64xbf16>, vector<8x64xf32> -> vector<8x64xf32>
    %c8 = arith.constant 8 : index
    %c0_46 = arith.constant 0 : index
    %161 = vector.load %arg6[%c8, %c0_46] : memref<16x384xf32, #tpu.memory_space<vmem>>, vector<8x64xf32>
    tpu.vector_store %arg6[%c8, %c0_46], %160 {strides = array<i32>} : memref<16x384xf32, #tpu.memory_space<vmem>>, vector<8x64xf32>,
    %162 = vector.extract_strided_slice %4 {offsets = [8, 64], sizes = [8, 64], strides = [1, 1]} : vector<16x1152xf32> to vector<8x64xf32>
    %163 = arith.truncf %162 : vector<8x64xf32> to vector<8x64xbf16>
    %164 = vector.extract_strided_slice %4 {offsets = [8, 448], sizes = [8, 64], strides = [1, 1]} : vector<16x1152xf32> to vector<8x64xf32>
    %165 = arith.truncf %164 : vector<8x64xf32> to vector<8x64xbf16>
    %166 = vector.extract_strided_slice %4 {offsets = [8, 832], sizes = [8, 64], strides = [1, 1]} : vector<16x1152xf32> to vector<8x64xf32>
    %167 = arith.truncf %166 : vector<8x64xf32> to vector<8x64xbf16>
    %cst_47 = arith.constant dense<0.000000e+00> : vector<8x8xf32>
    %168 = tpu.matmul %163, %165, %cst_47 {dimension_numbers = #tpu.dot_dimension_numbers<[1], [1], [0], [0], [0, 0, 1, 0], [], []>} : vector<8x64xbf16>, vector<8x64xbf16>, vector<8x8xf32> -> vector<8x8xf32>
    %cst_48 = arith.constant -1.000000e+30 : f32
    %169 = vector.broadcast %cst_48 : f32 to vector<8x8xf32>
    %170 = arith.select %7, %168, %169 : vector<8x8xi1>, vector<8x8xf32>
    %cst_49 = arith.constant dense<0xFF800000> : vector<8xf32>
    %171 = vector.multi_reduction <maximumf>, %170, %cst_49 [1] : vector<8x8xf32> to vector<8xf32>
    %172 = vector.shape_cast %171 : vector<8xf32> to vector<8x1xf32>
    %173 = vector.broadcast %172 : vector<8x1xf32> to vector<8x8xf32>
    %174 = arith.subf %170, %173 : vector<8x8xf32>
    %175 = math.exp %174 : vector<8x8xf32>
    %cst_50 = arith.constant dense<0.000000e+00> : vector<8xf32>
    %176 = vector.multi_reduction <add>, %175, %cst_50 [1] : vector<8x8xf32> to vector<8xf32>
    %177 = vector.shape_cast %176 : vector<8xf32> to vector<8x1xf32>
    %178 = tpu.reciprocal %177 {approx = true} : vector<8x1xf32> -> vector<8x1xf32>
    %179 = vector.broadcast %178 : vector<8x1xf32> to vector<8x8xf32>
    %180 = arith.mulf %175, %179 : vector<8x8xf32>
    %181 = arith.truncf %180 : vector<8x8xf32> to vector<8x8xbf16>
    %cst_51 = arith.constant dense<0.000000e+00> : vector<8x64xf32>
    %182 = tpu.matmul %181, %167, %cst_51 {dimension_numbers = #tpu.dot_dimension_numbers<[1], [0], [0], [1], [0, 0, 1, 1], [], []>} : vector<8x8xbf16>, vector<8x64xbf16>, vector<8x64xf32> -> vector<8x64xf32>
    %c8_52 = arith.constant 8 : index
    %c64_53 = arith.constant 64 : index
    %183 = vector.load %arg6[%c8_52, %c64_53] : memref<16x384xf32, #tpu.memory_space<vmem>>, vector<8x64xf32>
    tpu.vector_store %arg6[%c8_52, %c64_53], %182 {strides = array<i32>} : memref<16x384xf32, #tpu.memory_space<vmem>>, vector<8x64xf32>,
    %184 = vector.extract_strided_slice %4 {offsets = [8, 128], sizes = [8, 64], strides = [1, 1]} : vector<16x1152xf32> to vector<8x64xf32>
    %185 = arith.truncf %184 : vector<8x64xf32> to vector<8x64xbf16>
    %186 = vector.extract_strided_slice %4 {offsets = [8, 512], sizes = [8, 64], strides = [1, 1]} : vector<16x1152xf32> to vector<8x64xf32>
    %187 = arith.truncf %186 : vector<8x64xf32> to vector<8x64xbf16>
    %188 = vector.extract_strided_slice %4 {offsets = [8, 896], sizes = [8, 64], strides = [1, 1]} : vector<16x1152xf32> to vector<8x64xf32>
    %189 = arith.truncf %188 : vector<8x64xf32> to vector<8x64xbf16>
    %cst_54 = arith.constant dense<0.000000e+00> : vector<8x8xf32>
    %190 = tpu.matmul %185, %187, %cst_54 {dimension_numbers = #tpu.dot_dimension_numbers<[1], [1], [0], [0], [0, 0, 1, 0], [], []>} : vector<8x64xbf16>, vector<8x64xbf16>, vector<8x8xf32> -> vector<8x8xf32>
    %cst_55 = arith.constant -1.000000e+30 : f32
    %191 = vector.broadcast %cst_55 : f32 to vector<8x8xf32>
    %192 = arith.select %7, %190, %191 : vector<8x8xi1>, vector<8x8xf32>
    %cst_56 = arith.constant dense<0xFF800000> : vector<8xf32>
    %193 = vector.multi_reduction <maximumf>, %192, %cst_56 [1] : vector<8x8xf32> to vector<8xf32>
    %194 = vector.shape_cast %193 : vector<8xf32> to vector<8x1xf32>
    %195 = vector.broadcast %194 : vector<8x1xf32> to vector<8x8xf32>
    %196 = arith.subf %192, %195 : vector<8x8xf32>
    %197 = math.exp %196 : vector<8x8xf32>
    %cst_57 = arith.constant dense<0.000000e+00> : vector<8xf32>
    %198 = vector.multi_reduction <add>, %197, %cst_57 [1] : vector<8x8xf32> to vector<8xf32>
    %199 = vector.shape_cast %198 : vector<8xf32> to vector<8x1xf32>
    %200 = tpu.reciprocal %199 {approx = true} : vector<8x1xf32> -> vector<8x1xf32>
    %201 = vector.broadcast %200 : vector<8x1xf32> to vector<8x8xf32>
    %202 = arith.mulf %197, %201 : vector<8x8xf32>
    %203 = arith.truncf %202 : vector<8x8xf32> to vector<8x8xbf16>
    %cst_58 = arith.constant dense<0.000000e+00> : vector<8x64xf32>
    %204 = tpu.matmul %203, %189, %cst_58 {dimension_numbers = #tpu.dot_dimension_numbers<[1], [0], [0], [1], [0, 0, 1, 1], [], []>} : vector<8x8xbf16>, vector<8x64xbf16>, vector<8x64xf32> -> vector<8x64xf32>
    %c8_59 = arith.constant 8 : index
    %c128_60 = arith.constant 128 : index
    %205 = vector.load %arg6[%c8_59, %c128_60] : memref<16x384xf32, #tpu.memory_space<vmem>>, vector<8x64xf32>
    tpu.vector_store %arg6[%c8_59, %c128_60], %204 {strides = array<i32>} : memref<16x384xf32, #tpu.memory_space<vmem>>, vector<8x64xf32>,
    %206 = vector.extract_strided_slice %4 {offsets = [8, 192], sizes = [8, 64], strides = [1, 1]} : vector<16x1152xf32> to vector<8x64xf32>
    %207 = arith.truncf %206 : vector<8x64xf32> to vector<8x64xbf16>
    %208 = vector.extract_strided_slice %4 {offsets = [8, 576], sizes = [8, 64], strides = [1, 1]} : vector<16x1152xf32> to vector<8x64xf32>
    %209 = arith.truncf %208 : vector<8x64xf32> to vector<8x64xbf16>
    %210 = vector.extract_strided_slice %4 {offsets = [8, 960], sizes = [8, 64], strides = [1, 1]} : vector<16x1152xf32> to vector<8x64xf32>
    %211 = arith.truncf %210 : vector<8x64xf32> to vector<8x64xbf16>
    %cst_61 = arith.constant dense<0.000000e+00> : vector<8x8xf32>
    %212 = tpu.matmul %207, %209, %cst_61 {dimension_numbers = #tpu.dot_dimension_numbers<[1], [1], [0], [0], [0, 0, 1, 0], [], []>} : vector<8x64xbf16>, vector<8x64xbf16>, vector<8x8xf32> -> vector<8x8xf32>
    %cst_62 = arith.constant -1.000000e+30 : f32
    %213 = vector.broadcast %cst_62 : f32 to vector<8x8xf32>
    %214 = arith.select %7, %212, %213 : vector<8x8xi1>, vector<8x8xf32>
    %cst_63 = arith.constant dense<0xFF800000> : vector<8xf32>
    %215 = vector.multi_reduction <maximumf>, %214, %cst_63 [1] : vector<8x8xf32> to vector<8xf32>
    %216 = vector.shape_cast %215 : vector<8xf32> to vector<8x1xf32>
    %217 = vector.broadcast %216 : vector<8x1xf32> to vector<8x8xf32>
    %218 = arith.subf %214, %217 : vector<8x8xf32>
    %219 = math.exp %218 : vector<8x8xf32>
    %cst_64 = arith.constant dense<0.000000e+00> : vector<8xf32>
    %220 = vector.multi_reduction <add>, %219, %cst_64 [1] : vector<8x8xf32> to vector<8xf32>
    %221 = vector.shape_cast %220 : vector<8xf32> to vector<8x1xf32>
    %222 = tpu.reciprocal %221 {approx = true} : vector<8x1xf32> -> vector<8x1xf32>
    %223 = vector.broadcast %222 : vector<8x1xf32> to vector<8x8xf32>
    %224 = arith.mulf %219, %223 : vector<8x8xf32>
    %225 = arith.truncf %224 : vector<8x8xf32> to vector<8x8xbf16>
    %cst_65 = arith.constant dense<0.000000e+00> : vector<8x64xf32>
    %226 = tpu.matmul %225, %211, %cst_65 {dimension_numbers = #tpu.dot_dimension_numbers<[1], [0], [0], [1], [0, 0, 1, 1], [], []>} : vector<8x8xbf16>, vector<8x64xbf16>, vector<8x64xf32> -> vector<8x64xf32>
    %c8_66 = arith.constant 8 : index
    %c192_67 = arith.constant 192 : index
    %227 = vector.load %arg6[%c8_66, %c192_67] : memref<16x384xf32, #tpu.memory_space<vmem>>, vector<8x64xf32>
    tpu.vector_store %arg6[%c8_66, %c192_67], %226 {strides = array<i32>} : memref<16x384xf32, #tpu.memory_space<vmem>>, vector<8x64xf32>,
    %228 = vector.extract_strided_slice %4 {offsets = [8, 256], sizes = [8, 64], strides = [1, 1]} : vector<16x1152xf32> to vector<8x64xf32>
    %229 = arith.truncf %228 : vector<8x64xf32> to vector<8x64xbf16>
    %230 = vector.extract_strided_slice %4 {offsets = [8, 640], sizes = [8, 64], strides = [1, 1]} : vector<16x1152xf32> to vector<8x64xf32>
    %231 = arith.truncf %230 : vector<8x64xf32> to vector<8x64xbf16>
    %232 = vector.extract_strided_slice %4 {offsets = [8, 1024], sizes = [8, 64], strides = [1, 1]} : vector<16x1152xf32> to vector<8x64xf32>
    %233 = arith.truncf %232 : vector<8x64xf32> to vector<8x64xbf16>
    %cst_68 = arith.constant dense<0.000000e+00> : vector<8x8xf32>
    %234 = tpu.matmul %229, %231, %cst_68 {dimension_numbers = #tpu.dot_dimension_numbers<[1], [1], [0], [0], [0, 0, 1, 0], [], []>} : vector<8x64xbf16>, vector<8x64xbf16>, vector<8x8xf32> -> vector<8x8xf32>
    %cst_69 = arith.constant -1.000000e+30 : f32
    %235 = vector.broadcast %cst_69 : f32 to vector<8x8xf32>
    %236 = arith.select %7, %234, %235 : vector<8x8xi1>, vector<8x8xf32>
    %cst_70 = arith.constant dense<0xFF800000> : vector<8xf32>
    %237 = vector.multi_reduction <maximumf>, %236, %cst_70 [1] : vector<8x8xf32> to vector<8xf32>
    %238 = vector.shape_cast %237 : vector<8xf32> to vector<8x1xf32>
    %239 = vector.broadcast %238 : vector<8x1xf32> to vector<8x8xf32>
    %240 = arith.subf %236, %239 : vector<8x8xf32>
    %241 = math.exp %240 : vector<8x8xf32>
    %cst_71 = arith.constant dense<0.000000e+00> : vector<8xf32>
    %242 = vector.multi_reduction <add>, %241, %cst_71 [1] : vector<8x8xf32> to vector<8xf32>
    %243 = vector.shape_cast %242 : vector<8xf32> to vector<8x1xf32>
    %244 = tpu.reciprocal %243 {approx = true} : vector<8x1xf32> -> vector<8x1xf32>
    %245 = vector.broadcast %244 : vector<8x1xf32> to vector<8x8xf32>
    %246 = arith.mulf %241, %245 : vector<8x8xf32>
    %247 = arith.truncf %246 : vector<8x8xf32> to vector<8x8xbf16>
    %cst_72 = arith.constant dense<0.000000e+00> : vector<8x64xf32>
    %248 = tpu.matmul %247, %233, %cst_72 {dimension_numbers = #tpu.dot_dimension_numbers<[1], [0], [0], [1], [0, 0, 1, 1], [], []>} : vector<8x8xbf16>, vector<8x64xbf16>, vector<8x64xf32> -> vector<8x64xf32>
    %c8_73 = arith.constant 8 : index
    %c256_74 = arith.constant 256 : index
    %249 = vector.load %arg6[%c8_73, %c256_74] : memref<16x384xf32, #tpu.memory_space<vmem>>, vector<8x64xf32>
    tpu.vector_store %arg6[%c8_73, %c256_74], %248 {strides = array<i32>} : memref<16x384xf32, #tpu.memory_space<vmem>>, vector<8x64xf32>,
    %250 = vector.extract_strided_slice %4 {offsets = [8, 320], sizes = [8, 64], strides = [1, 1]} : vector<16x1152xf32> to vector<8x64xf32>
    %251 = arith.truncf %250 : vector<8x64xf32> to vector<8x64xbf16>
    %252 = vector.extract_strided_slice %4 {offsets = [8, 704], sizes = [8, 64], strides = [1, 1]} : vector<16x1152xf32> to vector<8x64xf32>
    %253 = arith.truncf %252 : vector<8x64xf32> to vector<8x64xbf16>
    %254 = vector.extract_strided_slice %4 {offsets = [8, 1088], sizes = [8, 64], strides = [1, 1]} : vector<16x1152xf32> to vector<8x64xf32>
    %255 = arith.truncf %254 : vector<8x64xf32> to vector<8x64xbf16>
    %cst_75 = arith.constant dense<0.000000e+00> : vector<8x8xf32>
    %256 = tpu.matmul %251, %253, %cst_75 {dimension_numbers = #tpu.dot_dimension_numbers<[1], [1], [0], [0], [0, 0, 1, 0], [], []>} : vector<8x64xbf16>, vector<8x64xbf16>, vector<8x8xf32> -> vector<8x8xf32>
    %cst_76 = arith.constant -1.000000e+30 : f32
    %257 = vector.broadcast %cst_76 : f32 to vector<8x8xf32>
    %258 = arith.select %7, %256, %257 : vector<8x8xi1>, vector<8x8xf32>
    %cst_77 = arith.constant dense<0xFF800000> : vector<8xf32>
    %259 = vector.multi_reduction <maximumf>, %258, %cst_77 [1] : vector<8x8xf32> to vector<8xf32>
    %260 = vector.shape_cast %259 : vector<8xf32> to vector<8x1xf32>
    %261 = vector.broadcast %260 : vector<8x1xf32> to vector<8x8xf32>
    %262 = arith.subf %258, %261 : vector<8x8xf32>
    %263 = math.exp %262 : vector<8x8xf32>
    %cst_78 = arith.constant dense<0.000000e+00> : vector<8xf32>
    %264 = vector.multi_reduction <add>, %263, %cst_78 [1] : vector<8x8xf32> to vector<8xf32>
    %265 = vector.shape_cast %264 : vector<8xf32> to vector<8x1xf32>
    %266 = tpu.reciprocal %265 {approx = true} : vector<8x1xf32> -> vector<8x1xf32>
    %267 = vector.broadcast %266 : vector<8x1xf32> to vector<8x8xf32>
    %268 = arith.mulf %263, %267 : vector<8x8xf32>
    %269 = arith.truncf %268 : vector<8x8xf32> to vector<8x8xbf16>
    %cst_79 = arith.constant dense<0.000000e+00> : vector<8x64xf32>
    %270 = tpu.matmul %269, %255, %cst_79 {dimension_numbers = #tpu.dot_dimension_numbers<[1], [0], [0], [1], [0, 0, 1, 1], [], []>} : vector<8x8xbf16>, vector<8x64xbf16>, vector<8x64xf32> -> vector<8x64xf32>
    %c8_80 = arith.constant 8 : index
    %c320_81 = arith.constant 320 : index
    %271 = vector.load %arg6[%c8_80, %c320_81] : memref<16x384xf32, #tpu.memory_space<vmem>>, vector<8x64xf32>
    tpu.vector_store %arg6[%c8_80, %c320_81], %270 {strides = array<i32>} : memref<16x384xf32, #tpu.memory_space<vmem>>, vector<8x64xf32>,
    %c0_82 = arith.constant 0 : index
    %c0_83 = arith.constant 0 : index
    %272 = vector.load %arg6[%c0_82, %c0_83] : memref<16x384xf32, #tpu.memory_space<vmem>>, vector<16x384xf32>
    %273 = arith.truncf %272 : vector<16x384xf32> to vector<16x384xbf16>
    %c0_84 = arith.constant 0 : index
    %c0_85 = arith.constant 0 : index
    %274 = vector.load %arg3[%c0_84, %c0_85] : memref<384x384xbf16, #tpu.memory_space<vmem>>, vector<384x384xbf16>
    %cst_86 = arith.constant dense<0.000000e+00> : vector<16x384xf32>
    %275 = tpu.matmul %273, %274, %cst_86 {dimension_numbers = #tpu.dot_dimension_numbers<[1], [0], [0], [1], [0, 0, 1, 1], [], []>} : vector<16x384xbf16>, vector<384x384xbf16>, vector<16x384xf32> -> vector<16x384xf32>
    %c0_87 = arith.constant 0 : index
    %c0_88 = arith.constant 0 : index
    %276 = vector.load %arg4[%c0_87, %c0_88] : memref<1x384xf32, #tpu.memory_space<vmem>>, vector<1x384xf32>
    %277 = vector.broadcast %276 : vector<1x384xf32> to vector<16x384xf32>
    %278 = arith.addf %275, %277 : vector<16x384xf32>
    %279 = vector.shape_cast %278 : vector<16x384xf32> to vector<2x8x384xf32>
    %c0_89 = arith.constant 0 : index
    %c0_90 = arith.constant 0 : index
    %c0_91 = arith.constant 0 : index
    %280 = vector.load %arg5[%c0_89, %c0_90, %c0_91] : memref<2x8x384xf32, #tpu.memory_space<vmem>>, vector<2x8x384xf32>
    tpu.vector_store %arg5[%c0_89, %c0_90, %c0_91], %279 {strides = array<i32>} : memref<2x8x384xf32, #tpu.memory_space<vmem>>, vector<2x8x384xf32>,
    return
  }
  func.func @transform_0(%arg0: i32) -> (i32, i32, i32) {
    %c0_i32 = arith.constant 0 : i32
    %c0_i32_0 = arith.constant 0 : i32
    %c0_i32_1 = arith.constant 0 : i32
    return %arg0, %c0_i32, %c0_i32_0 : i32, i32, i32
  }
  func.func @transform_1(%arg0: i32) -> (i32, i32) {
    %c0_i32 = arith.constant 0 : i32
    %c0_i32_0 = arith.constant 0 : i32
    %c0_i32_1 = arith.constant 0 : i32
    return %c0_i32, %c0_i32_0 : i32, i32
  }
  func.func @transform_2(%arg0: i32) -> (i32, i32) {
    %c0_i32 = arith.constant 0 : i32
    %c0_i32_0 = arith.constant 0 : i32
    %c0_i32_1 = arith.constant 0 : i32
    return %c0_i32, %c0_i32_0 : i32, i32
  }
  func.func @transform_3(%arg0: i32) -> (i32, i32) {
    %c0_i32 = arith.constant 0 : i32
    %c0_i32_0 = arith.constant 0 : i32
    %c0_i32_1 = arith.constant 0 : i32
    return %c0_i32, %c0_i32_0 : i32, i32
  }
  func.func @transform_4(%arg0: i32) -> (i32, i32, i32) {
    %c0_i32 = arith.constant 0 : i32
    %c0_i32_0 = arith.constant 0 : i32
    %c0_i32_1 = arith.constant 0 : i32
    return %arg0, %c0_i32, %c0_i32_0 : i32, i32, i32
  }
}

</mosaic_0001>

<llo_original>
// kernel: tpu_custom_call.1
$region0: #{tpu_custom_call.1}
  #allocation0 [shape = 'u32[]', space=smem, size = 0x4, offset = 0x4, fixed_abs, tag = 'smem constant byte address 0x4 - core index']
  #allocation1 [shape = 'u32[144,128]{1,0:T(1,128)}', space=vmem, size = 0x12000, scoped, tag = 'internal scratch']
  #allocation2 [shape = 'f32[16,384]{1,0:T(8,128)}', space=vmem, size = 0x6000, scoped, tag = 'scratch operand']
  %s0 = inlined_call_operand.hbm [shape: f32[2,8,384], index: 0, kind: input, shape index: {}]
  %s1 = inlined_call_operand.hbm [shape: bf16[384,1152], index: 1, kind: input, shape index: {}]
  %s2 = inlined_call_operand.hbm [shape: bf16[384,384], index: 2, kind: input, shape index: {}]
  %s3 = inlined_call_operand.vmem [shape: f32[1,384], index: 3, kind: input, shape index: {}]
  %s4 = inlined_call_operand.hbm [shape: f32[2,8,384], index: 4, kind: output, shape index: {}]
  %s5 = sld [smem:[#allocation0]]
  $region38: #{tpu_custom_call.1} parent=0
    _
  %s7 = ssub.s32 1, %s5
  %s8 = scalar_select 0, %s7, %s5
  $region1: #{tpu_custom_call.1} parent=0
    #allocation3 [shape = 'u8[24576]{0}', space=vmem, size = 0x6000, scoped, tag = 'input window, operand 0, single buffered']
    #allocation4 [shape = 's32[1]{0}', space=sflag, size = 0x4, scoped, tag = 'scoped memory for tpu_custom_call.1']
    #allocation5 [shape = 's32[1]{0}', space=sflag, size = 0x4, scoped, tag = 'scoped memory for tpu_custom_call.1']
    #allocation6 [shape = 'u8[884736]{0}', space=vmem, size = 0xd8000, scoped, tag = 'input window, operand 1, single buffered']
    #allocation7 [shape = 's32[1]{0}', space=sflag, size = 0x4, scoped, tag = 'scoped memory for tpu_custom_call.1']
    #allocation8 [shape = 'u8[294912]{0}', space=vmem, size = 0x48000, scoped, tag = 'input window, operand 2, single buffered']
    #allocation9 [shape = 'u8[24576]{0}', space=vmem, size = 0x6000, scoped, tag = 'output window, operand 0, single buffered']
    %9 = vsyncpa [#allocation4], 0
    %10 = vsyncpa [#allocation7], 0
    %11 = vsyncpa [#allocation5], 0
    // Predicated region
    $region2: #{tpu_custom_call.1} parent=1 // pred_check
      _
    $region3: #{tpu_custom_call.1} parent=1 // pred_check_branch
      %13 = sbr.rel (0) target = $region5
    $region4: #{tpu_custom_call.1} parent=1 // pred_region
      %s15 = ssub.s32 768, 768
      %16 = vsyncadd [#allocation4], %s15
      %s17 = sshll.u32 [#allocation3], 4
      %s18 = int_to_ptr.vmem [resolvable:$true] %s17
      %23 = dma.hbm_to_vmem [thread:$0]  %s0, 768, %s18, [#allocation4], 384, 384, 24
    $region5: #{tpu_custom_call.1} parent=1 // pred_fallthru
      _
    // Predicated region
    $region6: #{tpu_custom_call.1} parent=1 // pred_check
      _
    $region7: #{tpu_custom_call.1} parent=1 // pred_check_branch
      %25 = sbr.rel (0) target = $region9
    $region8: #{tpu_custom_call.1} parent=1 // pred_region
      %s27 = ssub.s32 27648, 27648
      %28 = vsyncadd [#allocation7], %s27
      %s29 = sshll.u32 [#allocation6], 4
      %s30 = int_to_ptr.vmem [resolvable:$true] %s29
      %35 = dma.hbm_to_vmem [thread:$0]  %s1, 27648, %s30, [#allocation7], 576, 576, 36
    $region9: #{tpu_custom_call.1} parent=1 // pred_fallthru
      _
    // Predicated region
    $region10: #{tpu_custom_call.1} parent=1 // pred_check
      _
    $region11: #{tpu_custom_call.1} parent=1 // pred_check_branch
      %37 = sbr.rel (0) target = $region13
    $region12: #{tpu_custom_call.1} parent=1 // pred_region
      %s39 = ssub.s32 9216, 9216
      %40 = vsyncadd [#allocation7], %s39
      %s41 = sshll.u32 [#allocation8], 4
      %s42 = int_to_ptr.vmem [resolvable:$true] %s41
      %47 = dma.hbm_to_vmem [thread:$0]  %s2, 9216, %s42, [#allocation7], 192, 192, 12
    $region13: #{tpu_custom_call.1} parent=1 // pred_fallthru
      _
    // Predicated region
    $region14: #{tpu_custom_call.1} parent=1 // pred_check
      _
    $region15: #{tpu_custom_call.1} parent=1 // pred_check_branch
      %49 = sbr.rel (0) target = $region17
    $region16: #{tpu_custom_call.1} parent=1 // pred_region
      _
    $region17: #{tpu_custom_call.1} parent=1 // pred_fallthru
      _
    // Predicated region
    $region18: #{tpu_custom_call.1} parent=1 // pred_check
      _
    $region19: #{tpu_custom_call.1} parent=1 // pred_check_branch
      %51 = sbr.rel (0) target = $region21
    $region20: #{tpu_custom_call.1} parent=1 // pred_region
      %52 = dma.done [#allocation4], 768
    $region21: #{tpu_custom_call.1} parent=1 // pred_fallthru
      _
    // Predicated region
    $region22: #{tpu_custom_call.1} parent=1 // pred_check
      _
    $region23: #{tpu_custom_call.1} parent=1 // pred_check_branch
      %54 = sbr.rel (0) target = $region25
    $region24: #{tpu_custom_call.1} parent=1 // pred_region
      %55 = dma.done [#allocation7], 27648
    $region25: #{tpu_custom_call.1} parent=1 // pred_fallthru
      _
    // Predicated region
    $region26: #{tpu_custom_call.1} parent=1 // pred_check
      _
    $region27: #{tpu_custom_call.1} parent=1 // pred_check_branch
      %57 = sbr.rel (0) target = $region29
    $region28: #{tpu_custom_call.1} parent=1 // pred_region
      %58 = dma.done [#allocation7], 9216
    $region29: #{tpu_custom_call.1} parent=1 // pred_fallthru
      _
    %v60 = vld [vmem:[#allocation3] sm:$0xff]
    %v61 = vld [vmem:[#allocation3 + $0x8] sm:$0xff]
    %v62 = vld [vmem:[#allocation3 + $0x10] sm:$0xff]
    %v63 = vld [vmem:[#allocation3 + $0x18] sm:$0xff]
    %v64 = vld [vmem:[#allocation3 + $0x20] sm:$0xff]
    %v65 = vld [vmem:[#allocation3 + $0x28] sm:$0xff]
    %v66 = vpack.c.bf16 %v63, %v60
    %v67 = vpack.c.bf16 %v64, %v61
    %v68 = vpack.c.bf16 %v65, %v62
    %v69 = vld [vmem:[#allocation6] sm:$0xff]
    %v70 = vld [vmem:[#allocation6 + $0x8] sm:$0xff]
    %v71 = vld [vmem:[#allocation6 + $0x10] sm:$0xff]
    %v72 = vld [vmem:[#allocation6 + $0x18] sm:$0xff]
    %v73 = vld [vmem:[#allocation6 + $0x20] sm:$0xf]
    %v74 = vld [vmem:[#allocation6 + $0x24] sm:$0xff]
    %v75 = vld [vmem:[#allocation6 + $0x2c] sm:$0xff]
    %v76 = vld [vmem:[#allocation6 + $0x34] sm:$0xff]
    %v77 = vld [vmem:[#allocation6 + $0x3c] sm:$0xff]
    %v78 = vld [vmem:[#allocation6 + $0x44] sm:$0xf]
    %v79 = vld [vmem:[#allocation6 + $0x48] sm:$0xff]
    %v80 = vld [vmem:[#allocation6 + $0x50] sm:$0xff]
    %v81 = vld [vmem:[#allocation6 + $0x58] sm:$0xff]
    %v82 = vld [vmem:[#allocation6 + $0x60] sm:$0xff]
    %v83 = vld [vmem:[#allocation6 + $0x68] sm:$0xf]
    %v84 = vld [vmem:[#allocation6 + $0x6c] sm:$0xff]
    %v85 = vld [vmem:[#allocation6 + $0x74] sm:$0xff]
    %v86 = vld [vmem:[#allocation6 + $0x7c] sm:$0xff]
    %v87 = vld [vmem:[#allocation6 + $0x84] sm:$0xff]
    %v88 = vld [vmem:[#allocation6 + $0x8c] sm:$0xf]
    %v89 = vld [vmem:[#allocation6 + $0x90] sm:$0xff]
    %v90 = vld [vmem:[#allocation6 + $0x98] sm:$0xff]
    %v91 = vld [vmem:[#allocation6 + $0xa0] sm:$0xff]
    %v92 = vld [vmem:[#allocation6 + $0xa8] sm:$0xff]
    %v93 = vld [vmem:[#allocation6 + $0xb0] sm:$0xf]
    %v94 = vld [vmem:[#allocation6 + $0xb4] sm:$0xff]
    %v95 = vld [vmem:[#allocation6 + $0xbc] sm:$0xff]
    %v96 = vld [vmem:[#allocation6 + $0xc4] sm:$0xff]
    %v97 = vld [vmem:[#allocation6 + $0xcc] sm:$0xff]
    %v98 = vld [vmem:[#allocation6 + $0xd4] sm:$0xf]
    %v99 = vld [vmem:[#allocation6 + $0xd8] sm:$0xff]
    %v100 = vld [vmem:[#allocation6 + $0xe0] sm:$0xff]
    %v101 = vld [vmem:[#allocation6 + $0xe8] sm:$0xff]
    %v102 = vld [vmem:[#allocation6 + $0xf0] sm:$0xff]
    %v103 = vld [vmem:[#allocation6 + $0xf8] sm:$0xf]
    %v104 = vld [vmem:[#allocation6 + $0xfc] sm:$0xff]
    %v105 = vld [vmem:[#allocation6 + $0x104] sm:$0xff]
    %v106 = vld [vmem:[#allocation6 + $0x10c] sm:$0xff]
    %v107 = vld [vmem:[#allocation6 + $0x114] sm:$0xff]
    %v108 = vld [vmem:[#allocation6 + $0x11c] sm:$0xf]
    %v109 = vld [vmem:[#allocation6 + $0x120] sm:$0xff]
    %v110 = vld [vmem:[#allocation6 + $0x128] sm:$0xff]
    %v111 = vld [vmem:[#allocation6 + $0x130] sm:$0xff]
    %v112 = vld [vmem:[#allocation6 + $0x138] sm:$0xff]
    %v113 = vld [vmem:[#allocation6 + $0x140] sm:$0xf]
    %v114 = vld [vmem:[#allocation6 + $0x144] sm:$0xff]
    %v115 = vld [vmem:[#allocation6 + $0x14c] sm:$0xff]
    %v116 = vld [vmem:[#allocation6 + $0x154] sm:$0xff]
    %v117 = vld [vmem:[#allocation6 + $0x15c] sm:$0xff]
    %v118 = vld [vmem:[#allocation6 + $0x164] sm:$0xf]
    %v119 = vld [vmem:[#allocation6 + $0x168] sm:$0xff]
    %v120 = vld [vmem:[#allocation6 + $0x170] sm:$0xff]
    %v121 = vld [vmem:[#allocation6 + $0x178] sm:$0xff]
    %v122 = vld [vmem:[#allocation6 + $0x180] sm:$0xff]
    %v123 = vld [vmem:[#allocation6 + $0x188] sm:$0xf]
    %v124 = vld [vmem:[#allocation6 + $0x18c] sm:$0xff]
    %v125 = vld [vmem:[#allocation6 + $0x194] sm:$0xff]
    %v126 = vld [vmem:[#allocation6 + $0x19c] sm:$0xff]
    %v127 = vld [vmem:[#allocation6 + $0x1a4] sm:$0xff]
    %v128 = vld [vmem:[#allocation6 + $0x1ac] sm:$0xf]
    %v129 = vld [vmem:[#allocation6 + $0x1b0] sm:$0xff]
    %v130 = vld [vmem:[#allocation6 + $0x1b8] sm:$0xff]
    %v131 = vld [vmem:[#allocation6 + $0x1c0] sm:$0xff]
    %v132 = vld [vmem:[#allocation6 + $0x1c8] sm:$0xff]
    %v133 = vld [vmem:[#allocation6 + $0x1d0] sm:$0xf]
    %v134 = vld [vmem:[#allocation6 + $0x1d4] sm:$0xff]
    %v135 = vld [vmem:[#allocation6 + $0x1dc] sm:$0xff]
    %v136 = vld [vmem:[#allocation6 + $0x1e4] sm:$0xff]
    %v137 = vld [vmem:[#allocation6 + $0x1ec] sm:$0xff]
    %v138 = vld [vmem:[#allocation6 + $0x1f4] sm:$0xf]
    %v139 = vld [vmem:[#allocation6 + $0x1f8] sm:$0xff]
    %v140 = vld [vmem:[#allocation6 + $0x200] sm:$0xff]
    %v141 = vld [vmem:[#allocation6 + $0x208] sm:$0xff]
    %v142 = vld [vmem:[#allocation6 + $0x210] sm:$0xff]
    %v143 = vld [vmem:[#allocation6 + $0x218] sm:$0xf]
    %v144 = vld [vmem:[#allocation6 + $0x21c] sm:$0xff]
    %v145 = vld [vmem:[#allocation6 + $0x224] sm:$0xff]
    %v146 = vld [vmem:[#allocation6 + $0x22c] sm:$0xff]
    %v147 = vld [vmem:[#allocation6 + $0x234] sm:$0xff]
    %v148 = vld [vmem:[#allocation6 + $0x23c] sm:$0xf]
    %v149 = vld [vmem:[#allocation6 + $0x240] sm:$0xff]
    %v150 = vld [vmem:[#allocation6 + $0x248] sm:$0xff]
    %v151 = vld [vmem:[#allocation6 + $0x250] sm:$0xff]
    %v152 = vld [vmem:[#allocation6 + $0x258] sm:$0xff]
    %v153 = vld [vmem:[#allocation6 + $0x260] sm:$0xf]
    %v154 = vld [vmem:[#allocation6 + $0x264] sm:$0xff]
    %v155 = vld [vmem:[#allocation6 + $0x26c] sm:$0xff]
    %v156 = vld [vmem:[#allocation6 + $0x274] sm:$0xff]
    %v157 = vld [vmem:[#allocation6 + $0x27c] sm:$0xff]
    %v158 = vld [vmem:[#allocation6 + $0x284] sm:$0xf]
    %v159 = vld [vmem:[#allocation6 + $0x288] sm:$0xff]
    %v160 = vld [vmem:[#allocation6 + $0x290] sm:$0xff]
    %v161 = vld [vmem:[#allocation6 + $0x298] sm:$0xff]
    %v162 = vld [vmem:[#allocation6 + $0x2a0] sm:$0xff]
    %v163 = vld [vmem:[#allocation6 + $0x2a8] sm:$0xf]
    %v164 = vld [vmem:[#allocation6 + $0x2ac] sm:$0xff]
    %v165 = vld [vmem:[#allocation6 + $0x2b4] sm:$0xff]
    %v166 = vld [vmem:[#allocation6 + $0x2bc] sm:$0xff]
    %v167 = vld [vmem:[#allocation6 + $0x2c4] sm:$0xff]
    %v168 = vld [vmem:[#allocation6 + $0x2cc] sm:$0xf]
    %v169 = vld [vmem:[#allocation6 + $0x2d0] sm:$0xff]
    %v170 = vld [vmem:[#allocation6 + $0x2d8] sm:$0xff]
    %v171 = vld [vmem:[#allocation6 + $0x2e0] sm:$0xff]
    %v172 = vld [vmem:[#allocation6 + $0x2e8] sm:$0xff]
    %v173 = vld [vmem:[#allocation6 + $0x2f0] sm:$0xf]
    %v174 = vld [vmem:[#allocation6 + $0x2f4] sm:$0xff]
    %v175 = vld [vmem:[#allocation6 + $0x2fc] sm:$0xff]
    %v176 = vld [vmem:[#allocation6 + $0x304] sm:$0xff]
    %v177 = vld [vmem:[#allocation6 + $0x30c] sm:$0xff]
    %v178 = vld [vmem:[#allocation6 + $0x314] sm:$0xf]
    %v179 = vld [vmem:[#allocation6 + $0x318] sm:$0xff]
    %v180 = vld [vmem:[#allocation6 + $0x320] sm:$0xff]
    %v181 = vld [vmem:[#allocation6 + $0x328] sm:$0xff]
    %v182 = vld [vmem:[#allocation6 + $0x330] sm:$0xff]
    %v183 = vld [vmem:[#allocation6 + $0x338] sm:$0xf]
    %v184 = vld [vmem:[#allocation6 + $0x33c] sm:$0xff]
    %v185 = vld [vmem:[#allocation6 + $0x344] sm:$0xff]
    %v186 = vld [vmem:[#allocation6 + $0x34c] sm:$0xff]
    %v187 = vld [vmem:[#allocation6 + $0x354] sm:$0xff]
    %v188 = vld [vmem:[#allocation6 + $0x35c] sm:$0xf]
    %v189 = vld [vmem:[#allocation6 + $0x360] sm:$0xff]
    %v190 = vld [vmem:[#allocation6 + $0x368] sm:$0xff]
    %v191 = vld [vmem:[#allocation6 + $0x370] sm:$0xff]
    %v192 = vld [vmem:[#allocation6 + $0x378] sm:$0xff]
    %v193 = vld [vmem:[#allocation6 + $0x380] sm:$0xf]
    %v194 = vld [vmem:[#allocation6 + $0x384] sm:$0xff]
    %v195 = vld [vmem:[#allocation6 + $0x38c] sm:$0xff]
    %v196 = vld [vmem:[#allocation6 + $0x394] sm:$0xff]
    %v197 = vld [vmem:[#allocation6 + $0x39c] sm:$0xff]
    %v198 = vld [vmem:[#allocation6 + $0x3a4] sm:$0xf]
    %v199 = vld [vmem:[#allocation6 + $0x3a8] sm:$0xff]
    %v200 = vld [vmem:[#allocation6 + $0x3b0] sm:$0xff]
    %v201 = vld [vmem:[#allocation6 + $0x3b8] sm:$0xff]
    %v202 = vld [vmem:[#allocation6 + $0x3c0] sm:$0xff]
    %v203 = vld [vmem:[#allocation6 + $0x3c8] sm:$0xf]
    %v204 = vld [vmem:[#allocation6 + $0x3cc] sm:$0xff]
    %v205 = vld [vmem:[#allocation6 + $0x3d4] sm:$0xff]
    %v206 = vld [vmem:[#allocation6 + $0x3dc] sm:$0xff]
    %v207 = vld [vmem:[#allocation6 + $0x3e4] sm:$0xff]
    %v208 = vld [vmem:[#allocation6 + $0x3ec] sm:$0xf]
    %v209 = vld [vmem:[#allocation6 + $0x3f0] sm:$0xff]
    %v210 = vld [vmem:[#allocation6 + $0x3f8] sm:$0xff]
    %v211 = vld [vmem:[#allocation6 + $0x400] sm:$0xff]
    %v212 = vld [vmem:[#allocation6 + $0x408] sm:$0xff]
    %v213 = vld [vmem:[#allocation6 + $0x410] sm:$0xf]
    %v214 = vld [vmem:[#allocation6 + $0x414] sm:$0xff]
    %v215 = vld [vmem:[#allocation6 + $0x41c] sm:$0xff]
    %v216 = vld [vmem:[#allocation6 + $0x424] sm:$0xff]
    %v217 = vld [vmem:[#allocation6 + $0x42c] sm:$0xff]
    %v218 = vld [vmem:[#allocation6 + $0x434] sm:$0xf]
    %v219 = vld [vmem:[#allocation6 + $0x438] sm:$0xff]
    %v220 = vld [vmem:[#allocation6 + $0x440] sm:$0xff]
    %v221 = vld [vmem:[#allocation6 + $0x448] sm:$0xff]
    %v222 = vld [vmem:[#allocation6 + $0x450] sm:$0xff]
    %v223 = vld [vmem:[#allocation6 + $0x458] sm:$0xf]
    %v224 = vld [vmem:[#allocation6 + $0x45c] sm:$0xff]
    %v225 = vld [vmem:[#allocation6 + $0x464] sm:$0xff]
    %v226 = vld [vmem:[#allocation6 + $0x46c] sm:$0xff]
    %v227 = vld [vmem:[#allocation6 + $0x474] sm:$0xff]
    %v228 = vld [vmem:[#allocation6 + $0x47c] sm:$0xf]
    %v229 = vld [vmem:[#allocation6 + $0x480] sm:$0xff]
    %v230 = vld [vmem:[#allocation6 + $0x488] sm:$0xff]
    %v231 = vld [vmem:[#allocation6 + $0x490] sm:$0xff]
    %v232 = vld [vmem:[#allocation6 + $0x498] sm:$0xff]
    %v233 = vld [vmem:[#allocation6 + $0x4a0] sm:$0xf]
    %v234 = vld [vmem:[#allocation6 + $0x4a4] sm:$0xff]
    %v235 = vld [vmem:[#allocation6 + $0x4ac] sm:$0xff]
    %v236 = vld [vmem:[#allocation6 + $0x4b4] sm:$0xff]
    %v237 = vld [vmem:[#allocation6 + $0x4bc] sm:$0xff]
    %v238 = vld [vmem:[#allocation6 + $0x4c4] sm:$0xf]
    %v239 = vld [vmem:[#allocation6 + $0x4c8] sm:$0xff]
    %v240 = vld [vmem:[#allocation6 + $0x4d0] sm:$0xff]
    %v241 = vld [vmem:[#allocation6 + $0x4d8] sm:$0xff]
    %v242 = vld [vmem:[#allocation6 + $0x4e0] sm:$0xff]
    %v243 = vld [vmem:[#allocation6 + $0x4e8] sm:$0xf]
    %v244 = vld [vmem:[#allocation6 + $0x4ec] sm:$0xff]
    %v245 = vld [vmem:[#allocation6 + $0x4f4] sm:$0xff]
    %v246 = vld [vmem:[#allocation6 + $0x4fc] sm:$0xff]
    %v247 = vld [vmem:[#allocation6 + $0x504] sm:$0xff]
    %v248 = vld [vmem:[#allocation6 + $0x50c] sm:$0xf]
    %v249 = vld [vmem:[#allocation6 + $0x510] sm:$0xff]
    %v250 = vld [vmem:[#allocation6 + $0x518] sm:$0xff]
    %v251 = vld [vmem:[#allocation6 + $0x520] sm:$0xff]
    %v252 = vld [vmem:[#allocation6 + $0x528] sm:$0xff]
    %v253 = vld [vmem:[#allocation6 + $0x530] sm:$0xf]
    %v254 = vld [vmem:[#allocation6 + $0x534] sm:$0xff]
    %v255 = vld [vmem:[#allocation6 + $0x53c] sm:$0xff]
    %v256 = vld [vmem:[#allocation6 + $0x544] sm:$0xff]
    %v257 = vld [vmem:[#allocation6 + $0x54c] sm:$0xff]
    %v258 = vld [vmem:[#allocation6 + $0x554] sm:$0xf]
    %v259 = vld [vmem:[#allocation6 + $0x558] sm:$0xff]
    %v260 = vld [vmem:[#allocation6 + $0x560] sm:$0xff]
    %v261 = vld [vmem:[#allocation6 + $0x568] sm:$0xff]
    %v262 = vld [vmem:[#allocation6 + $0x570] sm:$0xff]
    %v263 = vld [vmem:[#allocation6 + $0x578] sm:$0xf]
    %v264 = vld [vmem:[#allocation6 + $0x57c] sm:$0xff]
    %v265 = vld [vmem:[#allocation6 + $0x584] sm:$0xff]
    %v266 = vld [vmem:[#allocation6 + $0x58c] sm:$0xff]
    %v267 = vld [vmem:[#allocation6 + $0x594] sm:$0xff]
    %v268 = vld [vmem:[#allocation6 + $0x59c] sm:$0xf]
    %v269 = vld [vmem:[#allocation6 + $0x5a0] sm:$0xff]
    %v270 = vld [vmem:[#allocation6 + $0x5a8] sm:$0xff]
    %v271 = vld [vmem:[#allocation6 + $0x5b0] sm:$0xff]
    %v272 = vld [vmem:[#allocation6 + $0x5b8] sm:$0xff]
    %v273 = vld [vmem:[#allocation6 + $0x5c0] sm:$0xf]
    %v274 = vld [vmem:[#allocation6 + $0x5c4] sm:$0xff]
    %v275 = vld [vmem:[#allocation6 + $0x5cc] sm:$0xff]
    %v276 = vld [vmem:[#allocation6 + $0x5d4] sm:$0xff]
    %v277 = vld [vmem:[#allocation6 + $0x5dc] sm:$0xff]
    %v278 = vld [vmem:[#allocation6 + $0x5e4] sm:$0xf]
    %v279 = vld [vmem:[#allocation6 + $0x5e8] sm:$0xff]
    %v280 = vld [vmem:[#allocation6 + $0x5f0] sm:$0xff]
    %v281 = vld [vmem:[#allocation6 + $0x5f8] sm:$0xff]
    %v282 = vld [vmem:[#allocation6 + $0x600] sm:$0xff]
    %v283 = vld [vmem:[#allocation6 + $0x608] sm:$0xf]
    %v284 = vld [vmem:[#allocation6 + $0x60c] sm:$0xff]
    %v285 = vld [vmem:[#allocation6 + $0x614] sm:$0xff]
    %v286 = vld [vmem:[#allocation6 + $0x61c] sm:$0xff]
    %v287 = vld [vmem:[#allocation6 + $0x624] sm:$0xff]
    %v288 = vld [vmem:[#allocation6 + $0x62c] sm:$0xf]
    %v289 = vld [vmem:[#allocation6 + $0x630] sm:$0xff]
    %v290 = vld [vmem:[#allocation6 + $0x638] sm:$0xff]
    %v291 = vld [vmem:[#allocation6 + $0x640] sm:$0xff]
    %v292 = vld [vmem:[#allocation6 + $0x648] sm:$0xff]
    %v293 = vld [vmem:[#allocation6 + $0x650] sm:$0xf]
    %v294 = vld [vmem:[#allocation6 + $0x654] sm:$0xff]
    %v295 = vld [vmem:[#allocation6 + $0x65c] sm:$0xff]
    %v296 = vld [vmem:[#allocation6 + $0x664] sm:$0xff]
    %v297 = vld [vmem:[#allocation6 + $0x66c] sm:$0xff]
    %v298 = vld [vmem:[#allocation6 + $0x674] sm:$0xf]
    %v299 = vld [vmem:[#allocation6 + $0x678] sm:$0xff]
    %v300 = vld [vmem:[#allocation6 + $0x680] sm:$0xff]
    %v301 = vld [vmem:[#allocation6 + $0x688] sm:$0xff]
    %v302 = vld [vmem:[#allocation6 + $0x690] sm:$0xff]
    %v303 = vld [vmem:[#allocation6 + $0x698] sm:$0xf]
    %v304 = vld [vmem:[#allocation6 + $0x69c] sm:$0xff]
    %v305 = vld [vmem:[#allocation6 + $0x6a4] sm:$0xff]
    %v306 = vld [vmem:[#allocation6 + $0x6ac] sm:$0xff]
    %v307 = vld [vmem:[#allocation6 + $0x6b4] sm:$0xff]
    %v308 = vld [vmem:[#allocation6 + $0x6bc] sm:$0xf]
    %v549 = vunpack.c.l.b16 %v69
    %v550 = vunpack.c.h.b16 %v69
    %v551 = vunpack.c.l.b16 %v70
    %v552 = vunpack.c.h.b16 %v70
    %v553 = vunpack.c.l.b16 %v71
    %v554 = vunpack.c.h.b16 %v71
    %v555 = vunpack.c.l.b16 %v72
    %v556 = vunpack.c.h.b16 %v72
    %v557 = vunpack.c.l.b16 %v73
    %v558 = vunpack.c.l.b16 %v74
    %v559 = vunpack.c.h.b16 %v74
    %v560 = vunpack.c.l.b16 %v75
    %v561 = vunpack.c.h.b16 %v75
    %v562 = vunpack.c.l.b16 %v76
    %v563 = vunpack.c.h.b16 %v76
    %v564 = vunpack.c.l.b16 %v77
    %v565 = vunpack.c.h.b16 %v77
    %v566 = vunpack.c.l.b16 %v78
    %v567 = vunpack.c.l.b16 %v79
    %v568 = vunpack.c.h.b16 %v79
    %v569 = vunpack.c.l.b16 %v80
    %v570 = vunpack.c.h.b16 %v80
    %v571 = vunpack.c.l.b16 %v81
    %v572 = vunpack.c.h.b16 %v81
    %v573 = vunpack.c.l.b16 %v82
    %v574 = vunpack.c.h.b16 %v82
    %v575 = vunpack.c.l.b16 %v83
    %v576 = vunpack.c.l.b16 %v84
    %v577 = vunpack.c.h.b16 %v84
    %v578 = vunpack.c.l.b16 %v85
    %v579 = vunpack.c.h.b16 %v85
    %v580 = vunpack.c.l.b16 %v86
    %v581 = vunpack.c.h.b16 %v86
    %v582 = vunpack.c.l.b16 %v87
    %v583 = vunpack.c.h.b16 %v87
    %v584 = vunpack.c.l.b16 %v88
    %v585 = vunpack.c.l.b16 %v89
    %v586 = vunpack.c.h.b16 %v89
    %v587 = vunpack.c.l.b16 %v90
    %v588 = vunpack.c.h.b16 %v90
    %v589 = vunpack.c.l.b16 %v91
    %v590 = vunpack.c.h.b16 %v91
    %v591 = vunpack.c.l.b16 %v92
    %v592 = vunpack.c.h.b16 %v92
    %v593 = vunpack.c.l.b16 %v93
    %v594 = vunpack.c.l.b16 %v94
    %v595 = vunpack.c.h.b16 %v94
    %v596 = vunpack.c.l.b16 %v95
    %v597 = vunpack.c.h.b16 %v95
    %v598 = vunpack.c.l.b16 %v96
    %v599 = vunpack.c.h.b16 %v96
    %v600 = vunpack.c.l.b16 %v97
    %v601 = vunpack.c.h.b16 %v97
    %v602 = vunpack.c.l.b16 %v98
    %v603 = vunpack.c.l.b16 %v99
    %v604 = vunpack.c.h.b16 %v99
    %v605 = vunpack.c.l.b16 %v100
    %v606 = vunpack.c.h.b16 %v100
    %v607 = vunpack.c.l.b16 %v101
    %v608 = vunpack.c.h.b16 %v101
    %v609 = vunpack.c.l.b16 %v102
    %v610 = vunpack.c.h.b16 %v102
    %v611 = vunpack.c.l.b16 %v103
    %v612 = vunpack.c.l.b16 %v104
    %v613 = vunpack.c.h.b16 %v104
    %v614 = vunpack.c.l.b16 %v105
    %v615 = vunpack.c.h.b16 %v105
    %v616 = vunpack.c.l.b16 %v106
    %v617 = vunpack.c.h.b16 %v106
    %v618 = vunpack.c.l.b16 %v107
    %v619 = vunpack.c.h.b16 %v107
    %v620 = vunpack.c.l.b16 %v108
    %v621 = vunpack.c.l.b16 %v109
    %v622 = vunpack.c.h.b16 %v109
    %v623 = vunpack.c.l.b16 %v110
    %v624 = vunpack.c.h.b16 %v110
    %v625 = vunpack.c.l.b16 %v111
    %v626 = vunpack.c.h.b16 %v111
    %v627 = vunpack.c.l.b16 %v112
    %v628 = vunpack.c.h.b16 %v112
    %v629 = vunpack.c.l.b16 %v113
    %v630 = vunpack.c.l.b16 %v114
    %v631 = vunpack.c.h.b16 %v114
    %v632 = vunpack.c.l.b16 %v115
    %v633 = vunpack.c.h.b16 %v115
    %v634 = vunpack.c.l.b16 %v116
    %v635 = vunpack.c.h.b16 %v116
    %v636 = vunpack.c.l.b16 %v117
    %v637 = vunpack.c.h.b16 %v117
    %v638 = vunpack.c.l.b16 %v118
    %v639 = vunpack.c.l.b16 %v119
    %v640 = vunpack.c.h.b16 %v119
    %v641 = vunpack.c.l.b16 %v120
    %v642 = vunpack.c.h.b16 %v120
    %v643 = vunpack.c.l.b16 %v121
    %v644 = vunpack.c.h.b16 %v121
    %v645 = vunpack.c.l.b16 %v122
    %v646 = vunpack.c.h.b16 %v122
    %v647 = vunpack.c.l.b16 %v123
    %v648 = vunpack.c.l.b16 %v124
    %v649 = vunpack.c.h.b16 %v124
    %v650 = vunpack.c.l.b16 %v125
    %v651 = vunpack.c.h.b16 %v125
    %v652 = vunpack.c.l.b16 %v126
    %v653 = vunpack.c.h.b16 %v126
    %v654 = vunpack.c.l.b16 %v127
    %v655 = vunpack.c.h.b16 %v127
    %v656 = vunpack.c.l.b16 %v128
    %v657 = vunpack.c.l.b16 %v129
    %v658 = vunpack.c.h.b16 %v129
    %v659 = vunpack.c.l.b16 %v130
    %v660 = vunpack.c.h.b16 %v130
    %v661 = vunpack.c.l.b16 %v131
    %v662 = vunpack.c.h.b16 %v131
    %v663 = vunpack.c.l.b16 %v132
    %v664 = vunpack.c.h.b16 %v132
    %v665 = vunpack.c.l.b16 %v133
    %v666 = vunpack.c.l.b16 %v134
    %v667 = vunpack.c.h.b16 %v134
    %v668 = vunpack.c.l.b16 %v135
    %v669 = vunpack.c.h.b16 %v135
    %v670 = vunpack.c.l.b16 %v136
    %v671 = vunpack.c.h.b16 %v136
    %v672 = vunpack.c.l.b16 %v137
    %v673 = vunpack.c.h.b16 %v137
    %v674 = vunpack.c.l.b16 %v138
    %v675 = vunpack.c.l.b16 %v139
    %v676 = vunpack.c.h.b16 %v139
    %v677 = vunpack.c.l.b16 %v140
    %v678 = vunpack.c.h.b16 %v140
    %v679 = vunpack.c.l.b16 %v141
    %v680 = vunpack.c.h.b16 %v141
    %v681 = vunpack.c.l.b16 %v142
    %v682 = vunpack.c.h.b16 %v142
    %v683 = vunpack.c.l.b16 %v143
    %v684 = vunpack.c.l.b16 %v144
    %v685 = vunpack.c.h.b16 %v144
    %v686 = vunpack.c.l.b16 %v145
    %v687 = vunpack.c.h.b16 %v145
    %v688 = vunpack.c.l.b16 %v146
    %v689 = vunpack.c.h.b16 %v146
    %v690 = vunpack.c.l.b16 %v147
    %v691 = vunpack.c.h.b16 %v147
    %v692 = vunpack.c.l.b16 %v148
    %v693 = vunpack.c.l.b16 %v149
    %v694 = vunpack.c.h.b16 %v149
    %v695 = vunpack.c.l.b16 %v150
    %v696 = vunpack.c.h.b16 %v150
    %v697 = vunpack.c.l.b16 %v151
    %v698 = vunpack.c.h.b16 %v151
    %v699 = vunpack.c.l.b16 %v152
    %v700 = vunpack.c.h.b16 %v152
    %v701 = vunpack.c.l.b16 %v153
    %v702 = vunpack.c.l.b16 %v154
    %v703 = vunpack.c.h.b16 %v154
    %v704 = vunpack.c.l.b16 %v155
    %v705 = vunpack.c.h.b16 %v155
    %v706 = vunpack.c.l.b16 %v156
    %v707 = vunpack.c.h.b16 %v156
    %v708 = vunpack.c.l.b16 %v157
    %v709 = vunpack.c.h.b16 %v157
    %v710 = vunpack.c.l.b16 %v158
    %v711 = vunpack.c.l.b16 %v159
    %v712 = vunpack.c.h.b16 %v159
    %v713 = vunpack.c.l.b16 %v160
    %v714 = vunpack.c.h.b16 %v160
    %v715 = vunpack.c.l.b16 %v161
    %v716 = vunpack.c.h.b16 %v161
    %v717 = vunpack.c.l.b16 %v162
    %v718 = vunpack.c.h.b16 %v162
    %v719 = vunpack.c.l.b16 %v163
    %v720 = vunpack.c.l.b16 %v164
    %v721 = vunpack.c.h.b16 %v164
    %v722 = vunpack.c.l.b16 %v165
    %v723 = vunpack.c.h.b16 %v165
    %v724 = vunpack.c.l.b16 %v166
    %v725 = vunpack.c.h.b16 %v166
    %v726 = vunpack.c.l.b16 %v167
    %v727 = vunpack.c.h.b16 %v167
    %v728 = vunpack.c.l.b16 %v168
    %v729 = vunpack.c.l.b16 %v169
    %v730 = vunpack.c.h.b16 %v169
    %v731 = vunpack.c.l.b16 %v170
    %v732 = vunpack.c.h.b16 %v170
    %v733 = vunpack.c.l.b16 %v171
    %v734 = vunpack.c.h.b16 %v171
    %v735 = vunpack.c.l.b16 %v172
    %v736 = vunpack.c.h.b16 %v172
    %v737 = vunpack.c.l.b16 %v173
    %v738 = vunpack.c.l.b16 %v174
    %v739 = vunpack.c.h.b16 %v174
    %v740 = vunpack.c.l.b16 %v175
    %v741 = vunpack.c.h.b16 %v175
    %v742 = vunpack.c.l.b16 %v176
    %v743 = vunpack.c.h.b16 %v176
    %v744 = vunpack.c.l.b16 %v177
    %v745 = vunpack.c.h.b16 %v177
    %v746 = vunpack.c.l.b16 %v178
    %v747 = vunpack.c.l.b16 %v179
    %v748 = vunpack.c.h.b16 %v179
    %v749 = vunpack.c.l.b16 %v180
    %v750 = vunpack.c.h.b16 %v180
    %v751 = vunpack.c.l.b16 %v181
    %v752 = vunpack.c.h.b16 %v181
    %v753 = vunpack.c.l.b16 %v182
    %v754 = vunpack.c.h.b16 %v182
    %v755 = vunpack.c.l.b16 %v183
    %v756 = vunpack.c.l.b16 %v184
    %v757 = vunpack.c.h.b16 %v184
    %v758 = vunpack.c.l.b16 %v185
    %v759 = vunpack.c.h.b16 %v185
    %v760 = vunpack.c.l.b16 %v186
    %v761 = vunpack.c.h.b16 %v186
    %v762 = vunpack.c.l.b16 %v187
    %v763 = vunpack.c.h.b16 %v187
    %v764 = vunpack.c.l.b16 %v188
    %v765 = vunpack.c.l.b16 %v189
    %v766 = vunpack.c.h.b16 %v189
    %v767 = vunpack.c.l.b16 %v190
    %v768 = vunpack.c.h.b16 %v190
    %v769 = vunpack.c.l.b16 %v191
    %v770 = vunpack.c.h.b16 %v191
    %v771 = vunpack.c.l.b16 %v192
    %v772 = vunpack.c.h.b16 %v192
    %v773 = vunpack.c.l.b16 %v193
    %v774 = vunpack.c.l.b16 %v194
    %v775 = vunpack.c.h.b16 %v194
    %v776 = vunpack.c.l.b16 %v195
    %v777 = vunpack.c.h.b16 %v195
    %v778 = vunpack.c.l.b16 %v196
    %v779 = vunpack.c.h.b16 %v196
    %v780 = vunpack.c.l.b16 %v197
    %v781 = vunpack.c.h.b16 %v197
    %v782 = vunpack.c.l.b16 %v198
    %v783 = vunpack.c.l.b16 %v199
    %v784 = vunpack.c.h.b16 %v199
    %v785 = vunpack.c.l.b16 %v200
    %v786 = vunpack.c.h.b16 %v200
    %v787 = vunpack.c.l.b16 %v201
    %v788 = vunpack.c.h.b16 %v201
    %v789 = vunpack.c.l.b16 %v202
    %v790 = vunpack.c.h.b16 %v202
    %v791 = vunpack.c.l.b16 %v203
    %v792 = vunpack.c.l.b16 %v204
    %v793 = vunpack.c.h.b16 %v204
    %v794 = vunpack.c.l.b16 %v205
    %v795 = vunpack.c.h.b16 %v205
    %v796 = vunpack.c.l.b16 %v206
    %v797 = vunpack.c.h.b16 %v206
    %v798 = vunpack.c.l.b16 %v207
    %v799 = vunpack.c.h.b16 %v207
    %v800 = vunpack.c.l.b16 %v208
    %v801 = vunpack.c.l.b16 %v209
    %v802 = vunpack.c.h.b16 %v209
    %v803 = vunpack.c.l.b16 %v210
    %v804 = vunpack.c.h.b16 %v210
    %v805 = vunpack.c.l.b16 %v211
    %v806 = vunpack.c.h.b16 %v211
    %v807 = vunpack.c.l.b16 %v212
    %v808 = vunpack.c.h.b16 %v212
    %v809 = vunpack.c.l.b16 %v213
    %v810 = vunpack.c.l.b16 %v214
    %v811 = vunpack.c.h.b16 %v214
    %v812 = vunpack.c.l.b16 %v215
    %v813 = vunpack.c.h.b16 %v215
    %v814 = vunpack.c.l.b16 %v216
    %v815 = vunpack.c.h.b16 %v216
    %v816 = vunpack.c.l.b16 %v217
    %v817 = vunpack.c.h.b16 %v217
    %v818 = vunpack.c.l.b16 %v218
    %v819 = vunpack.c.l.b16 %v219
    %v820 = vunpack.c.h.b16 %v219
    %v821 = vunpack.c.l.b16 %v220
    %v822 = vunpack.c.h.b16 %v220
    %v823 = vunpack.c.l.b16 %v221
    %v824 = vunpack.c.h.b16 %v221
    %v825 = vunpack.c.l.b16 %v222
    %v826 = vunpack.c.h.b16 %v222
    %v827 = vunpack.c.l.b16 %v223
    %v828 = vunpack.c.l.b16 %v224
    %v829 = vunpack.c.h.b16 %v224
    %v830 = vunpack.c.l.b16 %v225
    %v831 = vunpack.c.h.b16 %v225
    %v832 = vunpack.c.l.b16 %v226
    %v833 = vunpack.c.h.b16 %v226
    %v834 = vunpack.c.l.b16 %v227
    %v835 = vunpack.c.h.b16 %v227
    %v836 = vunpack.c.l.b16 %v228
    %v837 = vunpack.c.l.b16 %v229
    %v838 = vunpack.c.h.b16 %v229
    %v839 = vunpack.c.l.b16 %v230
    %v840 = vunpack.c.h.b16 %v230
    %v841 = vunpack.c.l.b16 %v231
    %v842 = vunpack.c.h.b16 %v231
    %v843 = vunpack.c.l.b16 %v232
    %v844 = vunpack.c.h.b16 %v232
    %v845 = vunpack.c.l.b16 %v233
    %v846 = vunpack.c.l.b16 %v234
    %v847 = vunpack.c.h.b16 %v234
    %v848 = vunpack.c.l.b16 %v235
    %v849 = vunpack.c.h.b16 %v235
    %v850 = vunpack.c.l.b16 %v236
    %v851 = vunpack.c.h.b16 %v236
    %v852 = vunpack.c.l.b16 %v237
    %v853 = vunpack.c.h.b16 %v237
    %v854 = vunpack.c.l.b16 %v238
    %v855 = vunpack.c.l.b16 %v239
    %v856 = vunpack.c.h.b16 %v239
    %v857 = vunpack.c.l.b16 %v240
    %v858 = vunpack.c.h.b16 %v240
    %v859 = vunpack.c.l.b16 %v241
    %v860 = vunpack.c.h.b16 %v241
    %v861 = vunpack.c.l.b16 %v242
    %v862 = vunpack.c.h.b16 %v242
    %v863 = vunpack.c.l.b16 %v243
    %v864 = vunpack.c.l.b16 %v244
    %v865 = vunpack.c.h.b16 %v244
    %v866 = vunpack.c.l.b16 %v245
    %v867 = vunpack.c.h.b16 %v245
    %v868 = vunpack.c.l.b16 %v246
    %v869 = vunpack.c.h.b16 %v246
    %v870 = vunpack.c.l.b16 %v247
    %v871 = vunpack.c.h.b16 %v247
    %v872 = vunpack.c.l.b16 %v248
    %v873 = vunpack.c.l.b16 %v249
    %v874 = vunpack.c.h.b16 %v249
    %v875 = vunpack.c.l.b16 %v250
    %v876 = vunpack.c.h.b16 %v250
    %v877 = vunpack.c.l.b16 %v251
    %v878 = vunpack.c.h.b16 %v251
    %v879 = vunpack.c.l.b16 %v252
    %v880 = vunpack.c.h.b16 %v252
    %v881 = vunpack.c.l.b16 %v253
    %v882 = vunpack.c.l.b16 %v254
    %v883 = vunpack.c.h.b16 %v254
    %v884 = vunpack.c.l.b16 %v255
    %v885 = vunpack.c.h.b16 %v255
    %v886 = vunpack.c.l.b16 %v256
    %v887 = vunpack.c.h.b16 %v256
    %v888 = vunpack.c.l.b16 %v257
    %v889 = vunpack.c.h.b16 %v257
    %v890 = vunpack.c.l.b16 %v258
    %v891 = vunpack.c.l.b16 %v259
    %v892 = vunpack.c.h.b16 %v259
    %v893 = vunpack.c.l.b16 %v260
    %v894 = vunpack.c.h.b16 %v260
    %v895 = vunpack.c.l.b16 %v261
    %v896 = vunpack.c.h.b16 %v261
    %v897 = vunpack.c.l.b16 %v262
    %v898 = vunpack.c.h.b16 %v262
    %v899 = vunpack.c.l.b16 %v263
    %v900 = vunpack.c.l.b16 %v264
    %v901 = vunpack.c.h.b16 %v264
    %v902 = vunpack.c.l.b16 %v265
    %v903 = vunpack.c.h.b16 %v265
    %v904 = vunpack.c.l.b16 %v266
    %v905 = vunpack.c.h.b16 %v266
    %v906 = vunpack.c.l.b16 %v267
    %v907 = vunpack.c.h.b16 %v267
    %v908 = vunpack.c.l.b16 %v268
    %v909 = vunpack.c.l.b16 %v269
    %v910 = vunpack.c.h.b16 %v269
    %v911 = vunpack.c.l.b16 %v270
    %v912 = vunpack.c.h.b16 %v270
    %v913 = vunpack.c.l.b16 %v271
    %v914 = vunpack.c.h.b16 %v271
    %v915 = vunpack.c.l.b16 %v272
    %v916 = vunpack.c.h.b16 %v272
    %v917 = vunpack.c.l.b16 %v273
    %v918 = vunpack.c.l.b16 %v274
    %v919 = vunpack.c.h.b16 %v274
    %v920 = vunpack.c.l.b16 %v275
    %v921 = vunpack.c.h.b16 %v275
    %v922 = vunpack.c.l.b16 %v276
    %v923 = vunpack.c.h.b16 %v276
    %v924 = vunpack.c.l.b16 %v277
    %v925 = vunpack.c.h.b16 %v277
    %v926 = vunpack.c.l.b16 %v278
    %v927 = vunpack.c.l.b16 %v279
    %v928 = vunpack.c.h.b16 %v279
    %v929 = vunpack.c.l.b16 %v280
    %v930 = vunpack.c.h.b16 %v280
    %v931 = vunpack.c.l.b16 %v281
    %v932 = vunpack.c.h.b16 %v281
    %v933 = vunpack.c.l.b16 %v282
    %v934 = vunpack.c.h.b16 %v282
    %v935 = vunpack.c.l.b16 %v283
    %v936 = vunpack.c.l.b16 %v284
    %v937 = vunpack.c.h.b16 %v284
    %v938 = vunpack.c.l.b16 %v285
    %v939 = vunpack.c.h.b16 %v285
    %v940 = vunpack.c.l.b16 %v286
    %v941 = vunpack.c.h.b16 %v286
    %v942 = vunpack.c.l.b16 %v287
    %v943 = vunpack.c.h.b16 %v287
    %v944 = vunpack.c.l.b16 %v288
    %v945 = vunpack.c.l.b16 %v289
    %v946 = vunpack.c.h.b16 %v289
    %v947 = vunpack.c.l.b16 %v290
    %v948 = vunpack.c.h.b16 %v290
    %v949 = vunpack.c.l.b16 %v291
    %v950 = vunpack.c.h.b16 %v291
    %v951 = vunpack.c.l.b16 %v292
    %v952 = vunpack.c.h.b16 %v292
    %v953 = vunpack.c.l.b16 %v293
    %v954 = vunpack.c.l.b16 %v294
    %v955 = vunpack.c.h.b16 %v294
    %v956 = vunpack.c.l.b16 %v295
    %v957 = vunpack.c.h.b16 %v295
    %v958 = vunpack.c.l.b16 %v296
    %v959 = vunpack.c.h.b16 %v296
    %v960 = vunpack.c.l.b16 %v297
    %v961 = vunpack.c.h.b16 %v297
    %v962 = vunpack.c.l.b16 %v298
    %v963 = vunpack.c.l.b16 %v299
    %v964 = vunpack.c.h.b16 %v299
    %v965 = vunpack.c.l.b16 %v300
    %v966 = vunpack.c.h.b16 %v300
    %v967 = vunpack.c.l.b16 %v301
    %v968 = vunpack.c.h.b16 %v301
    %v969 = vunpack.c.l.b16 %v302
    %v970 = vunpack.c.h.b16 %v302
    %v971 = vunpack.c.l.b16 %v303
    %v972 = vunpack.c.l.b16 %v304
    %v973 = vunpack.c.h.b16 %v304
    %v974 = vunpack.c.l.b16 %v305
    %v975 = vunpack.c.h.b16 %v305
    %v976 = vunpack.c.l.b16 %v306
    %v977 = vunpack.c.h.b16 %v306
    %v978 = vunpack.c.l.b16 %v307
    %v979 = vunpack.c.h.b16 %v307
    %v980 = vunpack.c.l.b16 %v308
    %v981 = vpack.c.b16 %v558, %v549
    %v982 = vpack.c.b16 %v559, %v550
    %v983 = vpack.c.b16 %v560, %v551
    %v984 = vpack.c.b16 %v561, %v552
    %v985 = vpack.c.b16 %v562, %v553
    %v986 = vpack.c.b16 %v563, %v554
    %v987 = vpack.c.b16 %v564, %v555
    %v988 = vpack.c.b16 %v565, %v556
    %v989 = vpack.c.b16 %v566, %v557
    %v990 = vpack.c.b16 %v576, %v567
    %v991 = vpack.c.b16 %v577, %v568
    %v992 = vpack.c.b16 %v578, %v569
    %v993 = vpack.c.b16 %v579, %v570
    %v994 = vpack.c.b16 %v580, %v571
    %v995 = vpack.c.b16 %v581, %v572
    %v996 = vpack.c.b16 %v582, %v573
    %v997 = vpack.c.b16 %v583, %v574
    %v998 = vpack.c.b16 %v584, %v575
    %v999 = vpack.c.b16 %v594, %v585
    %v1000 = vpack.c.b16 %v595, %v586
    %v1001 = vpack.c.b16 %v596, %v587
    %v1002 = vpack.c.b16 %v597, %v588
    %v1003 = vpack.c.b16 %v598, %v589
    %v1004 = vpack.c.b16 %v599, %v590
    %v1005 = vpack.c.b16 %v600, %v591
    %v1006 = vpack.c.b16 %v601, %v592
    %v1007 = vpack.c.b16 %v602, %v593
    %v1008 = vpack.c.b16 %v612, %v603
    %v1009 = vpack.c.b16 %v613, %v604
    %v1010 = vpack.c.b16 %v614, %v605
    %v1011 = vpack.c.b16 %v615, %v606
    %v1012 = vpack.c.b16 %v616, %v607
    %v1013 = vpack.c.b16 %v617, %v608
    %v1014 = vpack.c.b16 %v618, %v609
    %v1015 = vpack.c.b16 %v619, %v610
    %v1016 = vpack.c.b16 %v620, %v611
    %v1017 = vpack.c.b16 %v630, %v621
    %v1018 = vpack.c.b16 %v631, %v622
    %v1019 = vpack.c.b16 %v632, %v623
    %v1020 = vpack.c.b16 %v633, %v624
    %v1021 = vpack.c.b16 %v634, %v625
    %v1022 = vpack.c.b16 %v635, %v626
    %v1023 = vpack.c.b16 %v636, %v627
    %v1024 = vpack.c.b16 %v637, %v628
    %v1025 = vpack.c.b16 %v638, %v629
    %v1026 = vpack.c.b16 %v648, %v639
    %v1027 = vpack.c.b16 %v649, %v640
    %v1028 = vpack.c.b16 %v650, %v641
    %v1029 = vpack.c.b16 %v651, %v642
    %v1030 = vpack.c.b16 %v652, %v643
    %v1031 = vpack.c.b16 %v653, %v644
    %v1032 = vpack.c.b16 %v654, %v645
    %v1033 = vpack.c.b16 %v655, %v646
    %v1034 = vpack.c.b16 %v656, %v647
    %v1035 = vpack.c.b16 %v666, %v657
    %v1036 = vpack.c.b16 %v667, %v658
    %v1037 = vpack.c.b16 %v668, %v659
    %v1038 = vpack.c.b16 %v669, %v660
    %v1039 = vpack.c.b16 %v670, %v661
    %v1040 = vpack.c.b16 %v671, %v662
    %v1041 = vpack.c.b16 %v672, %v663
    %v1042 = vpack.c.b16 %v673, %v664
    %v1043 = vpack.c.b16 %v674, %v665
    %v1044 = vpack.c.b16 %v684, %v675
    %v1045 = vpack.c.b16 %v685, %v676
    %v1046 = vpack.c.b16 %v686, %v677
    %v1047 = vpack.c.b16 %v687, %v678
    %v1048 = vpack.c.b16 %v688, %v679
    %v1049 = vpack.c.b16 %v689, %v680
    %v1050 = vpack.c.b16 %v690, %v681
    %v1051 = vpack.c.b16 %v691, %v682
    %v1052 = vpack.c.b16 %v692, %v683
    %v1053 = vpack.c.b16 %v702, %v693
    %v1054 = vpack.c.b16 %v703, %v694
    %v1055 = vpack.c.b16 %v704, %v695
    %v1056 = vpack.c.b16 %v705, %v696
    %v1057 = vpack.c.b16 %v706, %v697
    %v1058 = vpack.c.b16 %v707, %v698
    %v1059 = vpack.c.b16 %v708, %v699
    %v1060 = vpack.c.b16 %v709, %v700
    %v1061 = vpack.c.b16 %v710, %v701
    %v1062 = vpack.c.b16 %v720, %v711
    %v1063 = vpack.c.b16 %v721, %v712
    %v1064 = vpack.c.b16 %v722, %v713
    %v1065 = vpack.c.b16 %v723, %v714
    %v1066 = vpack.c.b16 %v724, %v715
    %v1067 = vpack.c.b16 %v725, %v716
    %v1068 = vpack.c.b16 %v726, %v717
    %v1069 = vpack.c.b16 %v727, %v718
    %v1070 = vpack.c.b16 %v728, %v719
    %v1071 = vpack.c.b16 %v738, %v729
    %v1072 = vpack.c.b16 %v739, %v730
    %v1073 = vpack.c.b16 %v740, %v731
    %v1074 = vpack.c.b16 %v741, %v732
    %v1075 = vpack.c.b16 %v742, %v733
    %v1076 = vpack.c.b16 %v743, %v734
    %v1077 = vpack.c.b16 %v744, %v735
    %v1078 = vpack.c.b16 %v745, %v736
    %v1079 = vpack.c.b16 %v746, %v737
    %v1080 = vpack.c.b16 %v756, %v747
    %v1081 = vpack.c.b16 %v757, %v748
    %v1082 = vpack.c.b16 %v758, %v749
    %v1083 = vpack.c.b16 %v759, %v750
    %v1084 = vpack.c.b16 %v760, %v751
    %v1085 = vpack.c.b16 %v761, %v752
    %v1086 = vpack.c.b16 %v762, %v753
    %v1087 = vpack.c.b16 %v763, %v754
    %v1088 = vpack.c.b16 %v764, %v755
    %v1089 = vpack.c.b16 %v774, %v765
    %v1090 = vpack.c.b16 %v775, %v766
    %v1091 = vpack.c.b16 %v776, %v767
    %v1092 = vpack.c.b16 %v777, %v768
    %v1093 = vpack.c.b16 %v778, %v769
    %v1094 = vpack.c.b16 %v779, %v770
    %v1095 = vpack.c.b16 %v780, %v771
    %v1096 = vpack.c.b16 %v781, %v772
    %v1097 = vpack.c.b16 %v782, %v773
    %v1098 = vpack.c.b16 %v792, %v783
    %v1099 = vpack.c.b16 %v793, %v784
    %v1100 = vpack.c.b16 %v794, %v785
    %v1101 = vpack.c.b16 %v795, %v786
    %v1102 = vpack.c.b16 %v796, %v787
    %v1103 = vpack.c.b16 %v797, %v788
    %v1104 = vpack.c.b16 %v798, %v789
    %v1105 = vpack.c.b16 %v799, %v790
    %v1106 = vpack.c.b16 %v800, %v791
    %v1107 = vpack.c.b16 %v810, %v801
    %v1108 = vpack.c.b16 %v811, %v802
    %v1109 = vpack.c.b16 %v812, %v803
    %v1110 = vpack.c.b16 %v813, %v804
    %v1111 = vpack.c.b16 %v814, %v805
    %v1112 = vpack.c.b16 %v815, %v806
    %v1113 = vpack.c.b16 %v816, %v807
    %v1114 = vpack.c.b16 %v817, %v808
    %v1115 = vpack.c.b16 %v818, %v809
    %v1116 = vpack.c.b16 %v828, %v819
    %v1117 = vpack.c.b16 %v829, %v820
    %v1118 = vpack.c.b16 %v830, %v821
    %v1119 = vpack.c.b16 %v831, %v822
    %v1120 = vpack.c.b16 %v832, %v823
    %v1121 = vpack.c.b16 %v833, %v824
    %v1122 = vpack.c.b16 %v834, %v825
    %v1123 = vpack.c.b16 %v835, %v826
    %v1124 = vpack.c.b16 %v836, %v827
    %v1125 = vpack.c.b16 %v846, %v837
    %v1126 = vpack.c.b16 %v847, %v838
    %v1127 = vpack.c.b16 %v848, %v839
    %v1128 = vpack.c.b16 %v849, %v840
    %v1129 = vpack.c.b16 %v850, %v841
    %v1130 = vpack.c.b16 %v851, %v842
    %v1131 = vpack.c.b16 %v852, %v843
    %v1132 = vpack.c.b16 %v853, %v844
    %v1133 = vpack.c.b16 %v854, %v845
    %v1134 = vpack.c.b16 %v864, %v855
    %v1135 = vpack.c.b16 %v865, %v856
    %v1136 = vpack.c.b16 %v866, %v857
    %v1137 = vpack.c.b16 %v867, %v858
    %v1138 = vpack.c.b16 %v868, %v859
    %v1139 = vpack.c.b16 %v869, %v860
    %v1140 = vpack.c.b16 %v870, %v861
    %v1141 = vpack.c.b16 %v871, %v862
    %v1142 = vpack.c.b16 %v872, %v863
    %v1143 = vpack.c.b16 %v882, %v873
    %v1144 = vpack.c.b16 %v883, %v874
    %v1145 = vpack.c.b16 %v884, %v875
    %v1146 = vpack.c.b16 %v885, %v876
    %v1147 = vpack.c.b16 %v886, %v877
    %v1148 = vpack.c.b16 %v887, %v878
    %v1149 = vpack.c.b16 %v888, %v879
    %v1150 = vpack.c.b16 %v889, %v880
    %v1151 = vpack.c.b16 %v890, %v881
    %v1152 = vpack.c.b16 %v900, %v891
    %v1153 = vpack.c.b16 %v901, %v892
    %v1154 = vpack.c.b16 %v902, %v893
    %v1155 = vpack.c.b16 %v903, %v894
    %v1156 = vpack.c.b16 %v904, %v895
    %v1157 = vpack.c.b16 %v905, %v896
    %v1158 = vpack.c.b16 %v906, %v897
    %v1159 = vpack.c.b16 %v907, %v898
    %v1160 = vpack.c.b16 %v908, %v899
    %v1161 = vpack.c.b16 %v918, %v909
    %v1162 = vpack.c.b16 %v919, %v910
    %v1163 = vpack.c.b16 %v920, %v911
    %v1164 = vpack.c.b16 %v921, %v912
    %v1165 = vpack.c.b16 %v922, %v913
    %v1166 = vpack.c.b16 %v923, %v914
    %v1167 = vpack.c.b16 %v924, %v915
    %v1168 = vpack.c.b16 %v925, %v916
    %v1169 = vpack.c.b16 %v926, %v917
    %v1170 = vpack.c.b16 %v936, %v927
    %v1171 = vpack.c.b16 %v937, %v928
    %v1172 = vpack.c.b16 %v938, %v929
    %v1173 = vpack.c.b16 %v939, %v930
    %v1174 = vpack.c.b16 %v940, %v931
    %v1175 = vpack.c.b16 %v941, %v932
    %v1176 = vpack.c.b16 %v942, %v933
    %v1177 = vpack.c.b16 %v943, %v934
    %v1178 = vpack.c.b16 %v944, %v935
    %v1179 = vpack.c.b16 %v954, %v945
    %v1180 = vpack.c.b16 %v955, %v946
    %v1181 = vpack.c.b16 %v956, %v947
    %v1182 = vpack.c.b16 %v957, %v948
    %v1183 = vpack.c.b16 %v958, %v949
    %v1184 = vpack.c.b16 %v959, %v950
    %v1185 = vpack.c.b16 %v960, %v951
    %v1186 = vpack.c.b16 %v961, %v952
    %v1187 = vpack.c.b16 %v962, %v953
    %v1188 = vpack.c.b16 %v972, %v963
    %v1189 = vpack.c.b16 %v973, %v964
    %v1190 = vpack.c.b16 %v974, %v965
    %v1191 = vpack.c.b16 %v975, %v966
    %v1192 = vpack.c.b16 %v976, %v967
    %v1193 = vpack.c.b16 %v977, %v968
    %v1194 = vpack.c.b16 %v978, %v969
    %v1195 = vpack.c.b16 %v979, %v970
    %v1196 = vpack.c.b16 %v980, %v971
    %1413 = vmatprep.subr.bf16.mxu0 %v982
    %1414 = vmatpush1.bf16.msra.mxu0 %v981
    %1415 = vmatprep.subr.bf16.mxu0 %v991
    %1416 = vmatpush1.bf16.msra.mxu0 %v990
    %1417 = vmatprep.subr.bf16.mxu0 %v1000
    %1418 = vmatpush1.bf16.msra.mxu0 %v999
    %1419 = vmatprep.subr.bf16.mxu0 %v1009
    %1420 = vmatpush1.bf16.msra.mxu0 %v1008
    %1421 = vmatprep.subr.bf16.mxu0 %v1018
    %1422 = vmatpush1.bf16.msra.mxu0 %v1017
    %1423 = vmatprep.subr.bf16.mxu0 %v1027
    %1424 = vmatpush1.bf16.msra.mxu0 %v1026
    %1425 = vmatprep.subr.bf16.mxu0 %v1036
    %1426 = vmatpush1.bf16.msra.mxu0 %v1035
    %1427 = vmatprep.subr.bf16.mxu0 %v1045
    %1428 = vmatpush1.bf16.msra.mxu0 %v1044
    %1429 = vmatprep.subr.bf16.mxu0 %v1054
    %1430 = vmatpush1.bf16.msra.mxu0 %v1053
    %1431 = vmatprep.subr.bf16.mxu0 %v1063
    %1432 = vmatpush1.bf16.msra.mxu0 %v1062
    %1433 = vmatprep.subr.bf16.mxu0 %v1072
    %1434 = vmatpush1.bf16.msra.mxu0 %v1071
    %1435 = vmatprep.subr.bf16.mxu0 %v1081
    %1436 = vmatpush1.bf16.msra.mxu0 %v1080
    %1437 = vmatprep.subr.bf16.mxu0 %v1090
    %1438 = vmatpush1.bf16.msra.mxu0 %v1089
    %1439 = vmatprep.subr.bf16.mxu0 %v1099
    %1440 = vmatpush1.bf16.msra.mxu0 %v1098
    %1441 = vmatprep.subr.bf16.mxu0 %v1108
    %1442 = vmatpush1.bf16.msra.mxu0 %v1107
    %1443 = vmatprep.subr.bf16.mxu0 %v1117
    %1444 = vmatpush1.bf16.msra.mxu0 %v1116
    %1445 = vmatprep.mubr.bf16.mxu0 %v67
    %1446 = vmatmul.mubr.bf16.gmra.mrb[0].mxu0 %v66
    %v1447 = vpop.f32.mrb[0].mxu0
    %v1448 = vadd.f32 0.0, %v1447
    %v1449 = vpop.f32.mrb[0].mxu0
    %v1450 = vadd.f32 0.0, %v1449
    %v1451 = vpop.f32.mrb[0].mxu0
    %v1452 = vadd.f32 0.0, %v1451
    %v1453 = vpop.f32.mrb[0].mxu0
    %v1454 = vadd.f32 0.0, %v1453
    %1455 = vdwg.mxu0
    %1456 = vmatprep.subr.bf16.mxu0 %v1126
    %1457 = vmatpush1.bf16.msra.mxu0 %v1125
    %1458 = vmatprep.subr.bf16.mxu0 %v1135
    %1459 = vmatpush1.bf16.msra.mxu0 %v1134
    %1460 = vmatprep.subr.bf16.mxu0 %v1144
    %1461 = vmatpush1.bf16.msra.mxu0 %v1143
    %1462 = vmatprep.subr.bf16.mxu0 %v1153
    %1463 = vmatpush1.bf16.msra.mxu0 %v1152
    %1464 = vmatprep.subr.bf16.mxu0 %v1162
    %1465 = vmatpush1.bf16.msra.mxu0 %v1161
    %1466 = vmatprep.subr.bf16.mxu0 %v1171
    %1467 = vmatpush1.bf16.msra.mxu0 %v1170
    %1468 = vmatprep.subr.bf16.mxu0 %v1180
    %1469 = vmatpush1.bf16.msra.mxu0 %v1179
    %1470 = vmatprep.subr.bf16.mxu0 %v1189
    %1471 = vmatpush1.bf16.msra.mxu0 %v1188
    %1472 = vmatprep.subr.bf16.mxu0 0
    %1473 = vmatpush1.bf16.msra.mxu0 0
    %1474 = vmatprep.subr.bf16.mxu0 0
    %1475 = vmatpush1.bf16.msra.mxu0 0
    %1476 = vmatprep.subr.bf16.mxu0 0
    %1477 = vmatpush1.bf16.msra.mxu0 0
    %1478 = vmatprep.subr.bf16.mxu0 0
    %1479 = vmatpush1.bf16.msra.mxu0 0
    %1480 = vmatprep.subr.bf16.mxu0 0
    %1481 = vmatpush1.bf16.msra.mxu0 0
    %1482 = vmatprep.subr.bf16.mxu0 0
    %1483 = vmatpush1.bf16.msra.mxu0 0
    %1484 = vmatprep.subr.bf16.mxu0 0
    %1485 = vmatpush1.bf16.msra.mxu0 0
    %1486 = vmatprep.subr.bf16.mxu0 0
    %1487 = vmatpush1.bf16.msra.mxu0 0
    %1488 = vmatprep.mubr.bf16.mxu0 0
    %1489 = vmatmul.mubr.bf16.gmra.mrb[0].mxu0 %v68
    %v1490 = vpop.f32.mrb[0].mxu0
    %v1491 = vadd.f32 %v1448, %v1490
    %v1492 = vpop.f32.mrb[0].mxu0
    %v1493 = vadd.f32 %v1450, %v1492
    %v1494 = vpop.f32.mrb[0].mxu0
    %v1495 = vadd.f32 %v1452, %v1494
    %v1496 = vpop.f32.mrb[0].mxu0
    %v1497 = vadd.f32 %v1454, %v1496
    %1498 = vdwg.mxu0
    %1499 = vmatprep.subr.bf16.mxu0 %v984
    %1500 = vmatpush1.bf16.msra.mxu0 %v983
    %1501 = vmatprep.subr.bf16.mxu0 %v993
    %1502 = vmatpush1.bf16.msra.mxu0 %v992
    %1503 = vmatprep.subr.bf16.mxu0 %v1002
    %1504 = vmatpush1.bf16.msra.mxu0 %v1001
    %1505 = vmatprep.subr.bf16.mxu0 %v1011
    %1506 = vmatpush1.bf16.msra.mxu0 %v1010
    %1507 = vmatprep.subr.bf16.mxu0 %v1020
    %1508 = vmatpush1.bf16.msra.mxu0 %v1019
    %1509 = vmatprep.subr.bf16.mxu0 %v1029
    %1510 = vmatpush1.bf16.msra.mxu0 %v1028
    %1511 = vmatprep.subr.bf16.mxu0 %v1038
    %1512 = vmatpush1.bf16.msra.mxu0 %v1037
    %1513 = vmatprep.subr.bf16.mxu0 %v1047
    %1514 = vmatpush1.bf16.msra.mxu0 %v1046
    %1515 = vmatprep.subr.bf16.mxu0 %v1056
    %1516 = vmatpush1.bf16.msra.mxu0 %v1055
    %1517 = vmatprep.subr.bf16.mxu0 %v1065
    %1518 = vmatpush1.bf16.msra.mxu0 %v1064
    %1519 = vmatprep.subr.bf16.mxu0 %v1074
    %1520 = vmatpush1.bf16.msra.mxu0 %v1073
    %1521 = vmatprep.subr.bf16.mxu0 %v1083
    %1522 = vmatpush1.bf16.msra.mxu0 %v1082
    %1523 = vmatprep.subr.bf16.mxu0 %v1092
    %1524 = vmatpush1.bf16.msra.mxu0 %v1091
    %1525 = vmatprep.subr.bf16.mxu0 %v1101
    %1526 = vmatpush1.bf16.msra.mxu0 %v1100
    %1527 = vmatprep.subr.bf16.mxu0 %v1110
    %1528 = vmatpush1.bf16.msra.mxu0 %v1109
    %1529 = vmatprep.subr.bf16.mxu0 %v1119
    %1530 = vmatpush1.bf16.msra.mxu0 %v1118
    %1531 = vmatprep.mubr.bf16.mxu0 %v67
    %1532 = vmatmul.mubr.bf16.gmra.mrb[0].mxu0 %v66
    %v1533 = vpop.f32.mrb[0].mxu0
    %v1534 = vadd.f32 0.0, %v1533
    %v1535 = vpop.f32.mrb[0].mxu0
    %v1536 = vadd.f32 0.0, %v1535
    %v1537 = vpop.f32.mrb[0].mxu0
    %v1538 = vadd.f32 0.0, %v1537
    %v1539 = vpop.f32.mrb[0].mxu0
    %v1540 = vadd.f32 0.0, %v1539
    %1541 = vdwg.mxu0
    %1542 = vmatprep.subr.bf16.mxu0 %v1128
    %1543 = vmatpush1.bf16.msra.mxu0 %v1127
    %1544 = vmatprep.subr.bf16.mxu0 %v1137
    %1545 = vmatpush1.bf16.msra.mxu0 %v1136
    %1546 = vmatprep.subr.bf16.mxu0 %v1146
    %1547 = vmatpush1.bf16.msra.mxu0 %v1145
    %1548 = vmatprep.subr.bf16.mxu0 %v1155
    %1549 = vmatpush1.bf16.msra.mxu0 %v1154
    %1550 = vmatprep.subr.bf16.mxu0 %v1164
    %1551 = vmatpush1.bf16.msra.mxu0 %v1163
    %1552 = vmatprep.subr.bf16.mxu0 %v1173
    %1553 = vmatpush1.bf16.msra.mxu0 %v1172
    %1554 = vmatprep.subr.bf16.mxu0 %v1182
    %1555 = vmatpush1.bf16.msra.mxu0 %v1181
    %1556 = vmatprep.subr.bf16.mxu0 %v1191
    %1557 = vmatpush1.bf16.msra.mxu0 %v1190
    %1558 = vmatprep.subr.bf16.mxu0 0
    %1559 = vmatpush1.bf16.msra.mxu0 0
    %1560 = vmatprep.subr.bf16.mxu0 0
    %1561 = vmatpush1.bf16.msra.mxu0 0
    %1562 = vmatprep.subr.bf16.mxu0 0
    %1563 = vmatpush1.bf16.msra.mxu0 0
    %1564 = vmatprep.subr.bf16.mxu0 0
    %1565 = vmatpush1.bf16.msra.mxu0 0
    %1566 = vmatprep.subr.bf16.mxu0 0
    %1567 = vmatpush1.bf16.msra.mxu0 0
    %1568 = vmatprep.subr.bf16.mxu0 0
    %1569 = vmatpush1.bf16.msra.mxu0 0
    %1570 = vmatprep.subr.bf16.mxu0 0
    %1571 = vmatpush1.bf16.msra.mxu0 0
    %1572 = vmatprep.subr.bf16.mxu0 0
    %1573 = vmatpush1.bf16.msra.mxu0 0
    %1574 = vmatprep.mubr.bf16.mxu0 0
    %1575 = vmatmul.mubr.bf16.gmra.mrb[0].mxu0 %v68
    %v1576 = vpop.f32.mrb[0].mxu0
    %v1577 = vadd.f32 %v1534, %v1576
    %v1578 = vpop.f32.mrb[0].mxu0
    %v1579 = vadd.f32 %v1536, %v1578
    %v1580 = vpop.f32.mrb[0].mxu0
    %v1581 = vadd.f32 %v1538, %v1580
    %v1582 = vpop.f32.mrb[0].mxu0
    %v1583 = vadd.f32 %v1540, %v1582
    %1584 = vdwg.mxu0
    %1585 = vmatprep.subr.bf16.mxu0 %v986
    %1586 = vmatpush1.bf16.msra.mxu0 %v985
    %1587 = vmatprep.subr.bf16.mxu0 %v995
    %1588 = vmatpush1.bf16.msra.mxu0 %v994
    %1589 = vmatprep.subr.bf16.mxu0 %v1004
    %1590 = vmatpush1.bf16.msra.mxu0 %v1003
    %1591 = vmatprep.subr.bf16.mxu0 %v1013
    %1592 = vmatpush1.bf16.msra.mxu0 %v1012
    %1593 = vmatprep.subr.bf16.mxu0 %v1022
    %1594 = vmatpush1.bf16.msra.mxu0 %v1021
    %1595 = vmatprep.subr.bf16.mxu0 %v1031
    %1596 = vmatpush1.bf16.msra.mxu0 %v1030
    %1597 = vmatprep.subr.bf16.mxu0 %v1040
    %1598 = vmatpush1.bf16.msra.mxu0 %v1039
    %1599 = vmatprep.subr.bf16.mxu0 %v1049
    %1600 = vmatpush1.bf16.msra.mxu0 %v1048
    %1601 = vmatprep.subr.bf16.mxu0 %v1058
    %1602 = vmatpush1.bf16.msra.mxu0 %v1057
    %1603 = vmatprep.subr.bf16.mxu0 %v1067
    %1604 = vmatpush1.bf16.msra.mxu0 %v1066
    %1605 = vmatprep.subr.bf16.mxu0 %v1076
    %1606 = vmatpush1.bf16.msra.mxu0 %v1075
    %1607 = vmatprep.subr.bf16.mxu0 %v1085
    %1608 = vmatpush1.bf16.msra.mxu0 %v1084
    %1609 = vmatprep.subr.bf16.mxu0 %v1094
    %1610 = vmatpush1.bf16.msra.mxu0 %v1093
    %1611 = vmatprep.subr.bf16.mxu0 %v1103
    %1612 = vmatpush1.bf16.msra.mxu0 %v1102
    %1613 = vmatprep.subr.bf16.mxu0 %v1112
    %1614 = vmatpush1.bf16.msra.mxu0 %v1111
    %1615 = vmatprep.subr.bf16.mxu0 %v1121
    %1616 = vmatpush1.bf16.msra.mxu0 %v1120
    %1617 = vmatprep.mubr.bf16.mxu0 %v67
    %1618 = vmatmul.mubr.bf16.gmra.mrb[0].mxu0 %v66
    %v1619 = vpop.f32.mrb[0].mxu0
    %v1620 = vadd.f32 0.0, %v1619
    %v1621 = vpop.f32.mrb[0].mxu0
    %v1622 = vadd.f32 0.0, %v1621
    %v1623 = vpop.f32.mrb[0].mxu0
    %v1624 = vadd.f32 0.0, %v1623
    %v1625 = vpop.f32.mrb[0].mxu0
    %v1626 = vadd.f32 0.0, %v1625
    %1627 = vdwg.mxu0
    %1628 = vmatprep.subr.bf16.mxu0 %v1130
    %1629 = vmatpush1.bf16.msra.mxu0 %v1129
    %1630 = vmatprep.subr.bf16.mxu0 %v1139
    %1631 = vmatpush1.bf16.msra.mxu0 %v1138
    %1632 = vmatprep.subr.bf16.mxu0 %v1148
    %1633 = vmatpush1.bf16.msra.mxu0 %v1147
    %1634 = vmatprep.subr.bf16.mxu0 %v1157
    %1635 = vmatpush1.bf16.msra.mxu0 %v1156
    %1636 = vmatprep.subr.bf16.mxu0 %v1166
    %1637 = vmatpush1.bf16.msra.mxu0 %v1165
    %1638 = vmatprep.subr.bf16.mxu0 %v1175
    %1639 = vmatpush1.bf16.msra.mxu0 %v1174
    %1640 = vmatprep.subr.bf16.mxu0 %v1184
    %1641 = vmatpush1.bf16.msra.mxu0 %v1183
    %1642 = vmatprep.subr.bf16.mxu0 %v1193
    %1643 = vmatpush1.bf16.msra.mxu0 %v1192
    %1644 = vmatprep.subr.bf16.mxu0 0
    %1645 = vmatpush1.bf16.msra.mxu0 0
    %1646 = vmatprep.subr.bf16.mxu0 0
    %1647 = vmatpush1.bf16.msra.mxu0 0
    %1648 = vmatprep.subr.bf16.mxu0 0
    %1649 = vmatpush1.bf16.msra.mxu0 0
    %1650 = vmatprep.subr.bf16.mxu0 0
    %1651 = vmatpush1.bf16.msra.mxu0 0
    %1652 = vmatprep.subr.bf16.mxu0 0
    %1653 = vmatpush1.bf16.msra.mxu0 0
    %1654 = vmatprep.subr.bf16.mxu0 0
    %1655 = vmatpush1.bf16.msra.mxu0 0
    %1656 = vmatprep.subr.bf16.mxu0 0
    %1657 = vmatpush1.bf16.msra.mxu0 0
    %1658 = vmatprep.subr.bf16.mxu0 0
    %1659 = vmatpush1.bf16.msra.mxu0 0
    %1660 = vmatprep.mubr.bf16.mxu0 0
    %1661 = vmatmul.mubr.bf16.gmra.mrb[0].mxu0 %v68
    %v1662 = vpop.f32.mrb[0].mxu0
    %v1663 = vadd.f32 %v1620, %v1662
    %v1664 = vpop.f32.mrb[0].mxu0
    %v1665 = vadd.f32 %v1622, %v1664
    %v1666 = vpop.f32.mrb[0].mxu0
    %v1667 = vadd.f32 %v1624, %v1666
    %v1668 = vpop.f32.mrb[0].mxu0
    %v1669 = vadd.f32 %v1626, %v1668
    %1670 = vdwg.mxu0
    %1671 = vmatprep.subr.bf16.mxu0 %v988
    %1672 = vmatpush1.bf16.msra.mxu0 %v987
    %1673 = vmatprep.subr.bf16.mxu0 %v997
    %1674 = vmatpush1.bf16.msra.mxu0 %v996
    %1675 = vmatprep.subr.bf16.mxu0 %v1006
    %1676 = vmatpush1.bf16.msra.mxu0 %v1005
    %1677 = vmatprep.subr.bf16.mxu0 %v1015
    %1678 = vmatpush1.bf16.msra.mxu0 %v1014
    %1679 = vmatprep.subr.bf16.mxu0 %v1024
    %1680 = vmatpush1.bf16.msra.mxu0 %v1023
    %1681 = vmatprep.subr.bf16.mxu0 %v1033
    %1682 = vmatpush1.bf16.msra.mxu0 %v1032
    %1683 = vmatprep.subr.bf16.mxu0 %v1042
    %1684 = vmatpush1.bf16.msra.mxu0 %v1041
    %1685 = vmatprep.subr.bf16.mxu0 %v1051
    %1686 = vmatpush1.bf16.msra.mxu0 %v1050
    %1687 = vmatprep.subr.bf16.mxu0 %v1060
    %1688 = vmatpush1.bf16.msra.mxu0 %v1059
    %1689 = vmatprep.subr.bf16.mxu0 %v1069
    %1690 = vmatpush1.bf16.msra.mxu0 %v1068
    %1691 = vmatprep.subr.bf16.mxu0 %v1078
    %1692 = vmatpush1.bf16.msra.mxu0 %v1077
    %1693 = vmatprep.subr.bf16.mxu0 %v1087
    %1694 = vmatpush1.bf16.msra.mxu0 %v1086
    %1695 = vmatprep.subr.bf16.mxu0 %v1096
    %1696 = vmatpush1.bf16.msra.mxu0 %v1095
    %1697 = vmatprep.subr.bf16.mxu0 %v1105
    %1698 = vmatpush1.bf16.msra.mxu0 %v1104
    %1699 = vmatprep.subr.bf16.mxu0 %v1114
    %1700 = vmatpush1.bf16.msra.mxu0 %v1113
    %1701 = vmatprep.subr.bf16.mxu0 %v1123
    %1702 = vmatpush1.bf16.msra.mxu0 %v1122
    %1703 = vmatprep.mubr.bf16.mxu0 %v67
    %1704 = vmatmul.mubr.bf16.gmra.mrb[0].mxu0 %v66
    %v1705 = vpop.f32.mrb[0].mxu0
    %v1706 = vadd.f32 0.0, %v1705
    %v1707 = vpop.f32.mrb[0].mxu0
    %v1708 = vadd.f32 0.0, %v1707
    %v1709 = vpop.f32.mrb[0].mxu0
    %v1710 = vadd.f32 0.0, %v1709
    %v1711 = vpop.f32.mrb[0].mxu0
    %v1712 = vadd.f32 0.0, %v1711
    %1713 = vdwg.mxu0
    %1714 = vmatprep.subr.bf16.mxu0 %v1132
    %1715 = vmatpush1.bf16.msra.mxu0 %v1131
    %1716 = vmatprep.subr.bf16.mxu0 %v1141
    %1717 = vmatpush1.bf16.msra.mxu0 %v1140
    %1718 = vmatprep.subr.bf16.mxu0 %v1150
    %1719 = vmatpush1.bf16.msra.mxu0 %v1149
    %1720 = vmatprep.subr.bf16.mxu0 %v1159
    %1721 = vmatpush1.bf16.msra.mxu0 %v1158
    %1722 = vmatprep.subr.bf16.mxu0 %v1168
    %1723 = vmatpush1.bf16.msra.mxu0 %v1167
    %1724 = vmatprep.subr.bf16.mxu0 %v1177
    %1725 = vmatpush1.bf16.msra.mxu0 %v1176
    %1726 = vmatprep.subr.bf16.mxu0 %v1186
    %1727 = vmatpush1.bf16.msra.mxu0 %v1185
    %1728 = vmatprep.subr.bf16.mxu0 %v1195
    %1729 = vmatpush1.bf16.msra.mxu0 %v1194
    %1730 = vmatprep.subr.bf16.mxu0 0
    %1731 = vmatpush1.bf16.msra.mxu0 0
    %1732 = vmatprep.subr.bf16.mxu0 0
    %1733 = vmatpush1.bf16.msra.mxu0 0
    %1734 = vmatprep.subr.bf16.mxu0 0
    %1735 = vmatpush1.bf16.msra.mxu0 0
    %1736 = vmatprep.subr.bf16.mxu0 0
    %1737 = vmatpush1.bf16.msra.mxu0 0
    %1738 = vmatprep.subr.bf16.mxu0 0
    %1739 = vmatpush1.bf16.msra.mxu0 0
    %1740 = vmatprep.subr.bf16.mxu0 0
    %1741 = vmatpush1.bf16.msra.mxu0 0
    %1742 = vmatprep.subr.bf16.mxu0 0
    %1743 = vmatpush1.bf16.msra.mxu0 0
    %1744 = vmatprep.subr.bf16.mxu0 0
    %1745 = vmatpush1.bf16.msra.mxu0 0
    %1746 = vmatprep.mubr.bf16.mxu0 0
    %1747 = vmatmul.mubr.bf16.gmra.mrb[0].mxu0 %v68
    %v1748 = vpop.f32.mrb[0].mxu0
    %v1749 = vadd.f32 %v1706, %v1748
    %v1750 = vpop.f32.mrb[0].mxu0
    %v1751 = vadd.f32 %v1708, %v1750
    %v1752 = vpop.f32.mrb[0].mxu0
    %v1753 = vadd.f32 %v1710, %v1752
    %v1754 = vpop.f32.mrb[0].mxu0
    %v1755 = vadd.f32 %v1712, %v1754
    %1756 = vdwg.mxu0
    %1757 = vmatprep.subr.bf16.mxu0 0
    %1758 = vmatpush1.bf16.msra.mxu0 %v989
    %1759 = vmatprep.subr.bf16.mxu0 0
    %1760 = vmatpush1.bf16.msra.mxu0 %v998
    %1761 = vmatprep.subr.bf16.mxu0 0
    %1762 = vmatpush1.bf16.msra.mxu0 %v1007
    %1763 = vmatprep.subr.bf16.mxu0 0
    %1764 = vmatpush1.bf16.msra.mxu0 %v1016
    %1765 = vmatprep.subr.bf16.mxu0 0
    %1766 = vmatpush1.bf16.msra.mxu0 %v1025
    %1767 = vmatprep.subr.bf16.mxu0 0
    %1768 = vmatpush1.bf16.msra.mxu0 %v1034
    %1769 = vmatprep.subr.bf16.mxu0 0
    %1770 = vmatpush1.bf16.msra.mxu0 %v1043
    %1771 = vmatprep.subr.bf16.mxu0 0
    %1772 = vmatpush1.bf16.msra.mxu0 %v1052
    %1773 = vmatprep.subr.bf16.mxu0 0
    %1774 = vmatpush1.bf16.msra.mxu0 %v1061
    %1775 = vmatprep.subr.bf16.mxu0 0
    %1776 = vmatpush1.bf16.msra.mxu0 %v1070
    %1777 = vmatprep.subr.bf16.mxu0 0
    %1778 = vmatpush1.bf16.msra.mxu0 %v1079
    %1779 = vmatprep.subr.bf16.mxu0 0
    %1780 = vmatpush1.bf16.msra.mxu0 %v1088
    %1781 = vmatprep.subr.bf16.mxu0 0
    %1782 = vmatpush1.bf16.msra.mxu0 %v1097
    %1783 = vmatprep.subr.bf16.mxu0 0
    %1784 = vmatpush1.bf16.msra.mxu0 %v1106
    %1785 = vmatprep.subr.bf16.mxu0 0
    %1786 = vmatpush1.bf16.msra.mxu0 %v1115
    %1787 = vmatprep.subr.bf16.mxu0 0
    %1788 = vmatpush1.bf16.msra.mxu0 %v1124
    %1789 = vmatprep.mubr.bf16.mxu0 %v67
    %1790 = vmatmul.mubr.bf16.gmra.mrb[0].mxu0 %v66
    %v1791 = vpop.f32.mrb[0].mxu0
    %v1792 = vadd.f32 0.0, %v1791
    %v1793 = vpop.f32.mrb[0].mxu0
    %v1794 = vpop.f32.mrb[0].mxu0
    %v1795 = vadd.f32 0.0, %v1794
    %v1796 = vpop.f32.mrb[0].mxu0
    %1797 = vdwg.mxu0
    %1798 = vmatprep.subr.bf16.mxu0 0
    %1799 = vmatpush1.bf16.msra.mxu0 %v1133
    %1800 = vmatprep.subr.bf16.mxu0 0
    %1801 = vmatpush1.bf16.msra.mxu0 %v1142
    %1802 = vmatprep.subr.bf16.mxu0 0
    %1803 = vmatpush1.bf16.msra.mxu0 %v1151
    %1804 = vmatprep.subr.bf16.mxu0 0
    %1805 = vmatpush1.bf16.msra.mxu0 %v1160
    %1806 = vmatprep.subr.bf16.mxu0 0
    %1807 = vmatpush1.bf16.msra.mxu0 %v1169
    %1808 = vmatprep.subr.bf16.mxu0 0
    %1809 = vmatpush1.bf16.msra.mxu0 %v1178
    %1810 = vmatprep.subr.bf16.mxu0 0
    %1811 = vmatpush1.bf16.msra.mxu0 %v1187
    %1812 = vmatprep.subr.bf16.mxu0 0
    %1813 = vmatpush1.bf16.msra.mxu0 %v1196
    %1814 = vmatprep.subr.bf16.mxu0 0
    %1815 = vmatpush1.bf16.msra.mxu0 0
    %1816 = vmatprep.subr.bf16.mxu0 0
    %1817 = vmatpush1.bf16.msra.mxu0 0
    %1818 = vmatprep.subr.bf16.mxu0 0
    %1819 = vmatpush1.bf16.msra.mxu0 0
    %1820 = vmatprep.subr.bf16.mxu0 0
    %1821 = vmatpush1.bf16.msra.mxu0 0
    %1822 = vmatprep.subr.bf16.mxu0 0
    %1823 = vmatpush1.bf16.msra.mxu0 0
    %1824 = vmatprep.subr.bf16.mxu0 0
    %1825 = vmatpush1.bf16.msra.mxu0 0
    %1826 = vmatprep.subr.bf16.mxu0 0
    %1827 = vmatpush1.bf16.msra.mxu0 0
    %1828 = vmatprep.subr.bf16.mxu0 0
    %1829 = vmatpush1.bf16.msra.mxu0 0
    %1830 = vmatprep.mubr.bf16.mxu0 0
    %1831 = vmatmul.mubr.bf16.gmra.mrb[0].mxu0 %v68
    %v1832 = vpop.f32.mrb[0].mxu0
    %v1833 = vadd.f32 %v1792, %v1832
    %v1834 = vpop.f32.mrb[0].mxu0
    %v1835 = vpop.f32.mrb[0].mxu0
    %v1836 = vadd.f32 %v1795, %v1835
    %v1837 = vpop.f32.mrb[0].mxu0
    %1838 = vdwg.mxu0
    %v1839 = vlaneseq
    %v1840 = vshrl.u32 %v1839, 7
    %v1841 = vlaneseq
    %v1842 = vand.u32 %v1841, 127
    %vm1843 = vcmp.le.s32.totalorder %v1842, %v1840
    %v1844 = vpack.c.bf16 %v1491, %v1491
    %v1845 = vpack.c.bf16 %v1579, %v1579
    %v1846 = vpack.c.bf16 %v1749, %v1749
    %vm1847 = vcmask 523264
    %v1849 = vsel %vm1847, %v1844, 0
    %v1852 = vsel %vm1847, %v1845, 0
    %1854 = vmatprep.subr.bf16.mxu0 0
    %1855 = vmatpush1.bf16.xpose.msra.mxu0 %v1852
    %1856 = vmatprep.subr.bf16.mxu0 0
    %1857 = vmatpush1.bf16.xpose.msra.mxu0 0
    %1858 = vmatprep.subr.bf16.mxu0 0
    %1859 = vmatpush1.bf16.xpose.msra.mxu0 0
    %1860 = vmatprep.subr.bf16.mxu0 0
    %1861 = vmatpush1.bf16.xpose.msra.mxu0 0
    %1862 = vmatprep.subr.bf16.mxu0 0
    %1863 = vmatpush1.bf16.xpose.msra.mxu0 0
    %1864 = vmatprep.subr.bf16.mxu0 0
    %1865 = vmatpush1.bf16.xpose.msra.mxu0 0
    %1866 = vmatprep.subr.bf16.mxu0 0
    %1867 = vmatpush1.bf16.xpose.msra.mxu0 0
    %1868 = vmatprep.subr.bf16.mxu0 0
    %1869 = vmatpush1.bf16.xpose.msra.mxu0 0
    %1870 = vmatprep.subr.bf16.mxu0 0
    %1871 = vmatpush1.bf16.xpose.msra.mxu0 0
    %1872 = vmatprep.subr.bf16.mxu0 0
    %1873 = vmatpush1.bf16.xpose.msra.mxu0 0
    %1874 = vmatprep.subr.bf16.mxu0 0
    %1875 = vmatpush1.bf16.xpose.msra.mxu0 0
    %1876 = vmatprep.subr.bf16.mxu0 0
    %1877 = vmatpush1.bf16.xpose.msra.mxu0 0
    %1878 = vmatprep.subr.bf16.mxu0 0
    %1879 = vmatpush1.bf16.xpose.msra.mxu0 0
    %1880 = vmatprep.subr.bf16.mxu0 0
    %1881 = vmatpush1.bf16.xpose.msra.mxu0 0
    %1882 = vmatprep.subr.bf16.mxu0 0
    %1883 = vmatpush1.bf16.xpose.msra.mxu0 0
    %1884 = vmatprep.subr.bf16.mxu0 0
    %1885 = vmatpush1.bf16.xpose.msra.mxu0 0
    %1886 = vmatprep.mubr.bf16.mxu0 0
    %1887 = vmatmul.mubr.bf16.gmra.mrb[0].mxu0 %v1849
    %v1888 = vpop.f32.mrb[0].mxu0
    %v1889 = vadd.f32 0.0, %v1888
    %v1890 = vpop.f32.mrb[0].mxu0
    %v1891 = vpop.f32.mrb[0].mxu0
    %v1892 = vpop.f32.mrb[0].mxu0
    %1893 = vdwg.mxu0
    %v1894 = vsel %vm1843, %v1889, -1e+30
    %vm1895 = vcmask 64512
    %v1896 = vsel %vm1895, %v1894, -inf
    %1897 = vmax.xlane.f32.xlu0 %v1896
    %v1898 = vpop.xlane.xlu0 %1897
    %v1899 = vsub.f32 %v1894, %v1898
    %v1900 = vmul.f32 %v1899, 1.442695
    %v1901 = vpow.pop %v1900
    %v1902 = vsel %vm1895, %v1901, 0.0
    %1903 = vadd.xlane.f32.xlu0 %v1902
    %v1904 = vpop.xlane.xlu0 %1903
    %v1905 = vrcp.pop %v1904
    %v1906 = vmul.f32 %v1901, %v1905
    %v1907 = vpack.c.bf16 %v1906, %v1906
    %v1909 = vsel %vm1895, %v1907, 0
    %vm1911 = vcmask 1043456
    %v1913 = vsel %vm1911, %v1846, 0
    %1915 = vmatprep.subr.bf16.mxu0 0
    %1916 = vmatpush1.bf16.msra.mxu0 %v1913
    %1917 = vmatprep.subr.bf16.mxu0 0
    %1918 = vmatpush1.bf16.msra.mxu0 0
    %1919 = vmatprep.subr.bf16.mxu0 0
    %1920 = vmatpush1.bf16.msra.mxu0 0
    %1921 = vmatprep.subr.bf16.mxu0 0
    %1922 = vmatpush1.bf16.msra.mxu0 0
    %1923 = vmatprep.subr.bf16.mxu0 0
    %1924 = vmatpush1.bf16.msra.mxu0 0
    %1925 = vmatprep.subr.bf16.mxu0 0
    %1926 = vmatpush1.bf16.msra.mxu0 0
    %1927 = vmatprep.subr.bf16.mxu0 0
    %1928 = vmatpush1.bf16.msra.mxu0 0
    %1929 = vmatprep.subr.bf16.mxu0 0
    %1930 = vmatpush1.bf16.msra.mxu0 0
    %1931 = vmatprep.subr.bf16.mxu0 0
    %1932 = vmatpush1.bf16.msra.mxu0 0
    %1933 = vmatprep.subr.bf16.mxu0 0
    %1934 = vmatpush1.bf16.msra.mxu0 0
    %1935 = vmatprep.subr.bf16.mxu0 0
    %1936 = vmatpush1.bf16.msra.mxu0 0
    %1937 = vmatprep.subr.bf16.mxu0 0
    %1938 = vmatpush1.bf16.msra.mxu0 0
    %1939 = vmatprep.subr.bf16.mxu0 0
    %1940 = vmatpush1.bf16.msra.mxu0 0
    %1941 = vmatprep.subr.bf16.mxu0 0
    %1942 = vmatpush1.bf16.msra.mxu0 0
    %1943 = vmatprep.subr.bf16.mxu0 0
    %1944 = vmatpush1.bf16.msra.mxu0 0
    %1945 = vmatprep.subr.bf16.mxu0 0
    %1946 = vmatpush1.bf16.msra.mxu0 0
    %1947 = vmatprep.mubr.bf16.mxu0 0
    %1948 = vmatmul.mubr.bf16.gmra.mrb[0].mxu0 %v1909
    %v1949 = vpop.f32.mrb[0].mxu0
    %v1950 = vadd.f32 0.0, %v1949
    %v1951 = vpop.f32.mrb[0].mxu0
    %v1952 = vpop.f32.mrb[0].mxu0
    %v1953 = vpop.f32.mrb[0].mxu0
    %1954 = vdwg.mxu0
    %1955 = vst.msk [vmem:[#allocation2] sm:$0xff] %vm1847, %v1950
    %1957 = vrot.lane.b32.xlu0 %v1844, 64
    %v1958 = vpop.permute.xlu0 %1957
    %1960 = vrot.lane.b32.xlu0 %v1845, 64
    %v1961 = vpop.permute.xlu0 %1960
    %v1963 = vsel %vm1847, %v1958, 0
    %v1966 = vsel %vm1847, %v1961, 0
    %1968 = vmatprep.subr.bf16.mxu0 0
    %1969 = vmatpush1.bf16.xpose.msra.mxu0 %v1966
    %1970 = vmatprep.subr.bf16.mxu0 0
    %1971 = vmatpush1.bf16.xpose.msra.mxu0 0
    %1972 = vmatprep.subr.bf16.mxu0 0
    %1973 = vmatpush1.bf16.xpose.msra.mxu0 0
    %1974 = vmatprep.subr.bf16.mxu0 0
    %1975 = vmatpush1.bf16.xpose.msra.mxu0 0
    %1976 = vmatprep.subr.bf16.mxu0 0
    %1977 = vmatpush1.bf16.xpose.msra.mxu0 0
    %1978 = vmatprep.subr.bf16.mxu0 0
    %1979 = vmatpush1.bf16.xpose.msra.mxu0 0
    %1980 = vmatprep.subr.bf16.mxu0 0
    %1981 = vmatpush1.bf16.xpose.msra.mxu0 0
    %1982 = vmatprep.subr.bf16.mxu0 0
    %1983 = vmatpush1.bf16.xpose.msra.mxu0 0
    %1984 = vmatprep.subr.bf16.mxu0 0
    %1985 = vmatpush1.bf16.xpose.msra.mxu0 0
    %1986 = vmatprep.subr.bf16.mxu0 0
    %1987 = vmatpush1.bf16.xpose.msra.mxu0 0
    %1988 = vmatprep.subr.bf16.mxu0 0
    %1989 = vmatpush1.bf16.xpose.msra.mxu0 0
    %1990 = vmatprep.subr.bf16.mxu0 0
    %1991 = vmatpush1.bf16.xpose.msra.mxu0 0
    %1992 = vmatprep.subr.bf16.mxu0 0
    %1993 = vmatpush1.bf16.xpose.msra.mxu0 0
    %1994 = vmatprep.subr.bf16.mxu0 0
    %1995 = vmatpush1.bf16.xpose.msra.mxu0 0
    %1996 = vmatprep.subr.bf16.mxu0 0
    %1997 = vmatpush1.bf16.xpose.msra.mxu0 0
    %1998 = vmatprep.subr.bf16.mxu0 0
    %1999 = vmatpush1.bf16.xpose.msra.mxu0 0
    %2000 = vmatprep.mubr.bf16.mxu0 0
    %2001 = vmatmul.mubr.bf16.gmra.mrb[0].mxu0 %v1963
    %v2002 = vpop.f32.mrb[0].mxu0
    %v2003 = vadd.f32 0.0, %v2002
    %v2004 = vpop.f32.mrb[0].mxu0
    %v2005 = vpop.f32.mrb[0].mxu0
    %v2006 = vpop.f32.mrb[0].mxu0
    %2007 = vdwg.mxu0
    %v2008 = vsel %vm1843, %v2003, -1e+30
    %v2009 = vsel %vm1895, %v2008, -inf
    %2010 = vmax.xlane.f32.xlu0 %v2009
    %v2011 = vpop.xlane.xlu0 %2010
    %v2012 = vsub.f32 %v2008, %v2011
    %v2013 = vmul.f32 %v2012, 1.442695
    %v2014 = vpow.pop %v2013
    %v2015 = vsel %vm1895, %v2014, 0.0
    %2016 = vadd.xlane.f32.xlu0 %v2015
    %v2017 = vpop.xlane.xlu0 %2016
    %v2018 = vrcp.pop %v2017
    %v2019 = vmul.f32 %v2014, %v2018
    %v2020 = vpack.c.bf16 %v2019, %v2019
    %2022 = vrot.lane.b32.xlu0 %v1846, 64
    %v2023 = vpop.permute.xlu0 %2022
    %v2025 = vsel %vm1895, %v2020, 0
    %v2028 = vsel %vm1911, %v2023, 0
    %2030 = vmatprep.subr.bf16.mxu0 0
    %2031 = vmatpush1.bf16.msra.mxu0 %v2028
    %2032 = vmatprep.subr.bf16.mxu0 0
    %2033 = vmatpush1.bf16.msra.mxu0 0
    %2034 = vmatprep.subr.bf16.mxu0 0
    %2035 = vmatpush1.bf16.msra.mxu0 0
    %2036 = vmatprep.subr.bf16.mxu0 0
    %2037 = vmatpush1.bf16.msra.mxu0 0
    %2038 = vmatprep.subr.bf16.mxu0 0
    %2039 = vmatpush1.bf16.msra.mxu0 0
    %2040 = vmatprep.subr.bf16.mxu0 0
    %2041 = vmatpush1.bf16.msra.mxu0 0
    %2042 = vmatprep.subr.bf16.mxu0 0
    %2043 = vmatpush1.bf16.msra.mxu0 0
    %2044 = vmatprep.subr.bf16.mxu0 0
    %2045 = vmatpush1.bf16.msra.mxu0 0
    %2046 = vmatprep.subr.bf16.mxu0 0
    %2047 = vmatpush1.bf16.msra.mxu0 0
    %2048 = vmatprep.subr.bf16.mxu0 0
    %2049 = vmatpush1.bf16.msra.mxu0 0
    %2050 = vmatprep.subr.bf16.mxu0 0
    %2051 = vmatpush1.bf16.msra.mxu0 0
    %2052 = vmatprep.subr.bf16.mxu0 0
    %2053 = vmatpush1.bf16.msra.mxu0 0
    %2054 = vmatprep.subr.bf16.mxu0 0
    %2055 = vmatpush1.bf16.msra.mxu0 0
    %2056 = vmatprep.subr.bf16.mxu0 0
    %2057 = vmatpush1.bf16.msra.mxu0 0
    %2058 = vmatprep.subr.bf16.mxu0 0
    %2059 = vmatpush1.bf16.msra.mxu0 0
    %2060 = vmatprep.subr.bf16.mxu0 0
    %2061 = vmatpush1.bf16.msra.mxu0 0
    %2062 = vmatprep.mubr.bf16.mxu0 0
    %2063 = vmatmul.mubr.bf16.gmra.mrb[0].mxu0 %v2025
    %v2064 = vpop.f32.mrb[0].mxu0
    %v2065 = vadd.f32 0.0, %v2064
    %v2066 = vpop.f32.mrb[0].mxu0
    %v2067 = vpop.f32.mrb[0].mxu0
    %v2068 = vpop.f32.mrb[0].mxu0
    %2069 = vdwg.mxu0
    %2071 = vrot.lane.b32.xlu0 %v2065, 64
    %v2072 = vpop.permute.xlu0 %2071
    %vm2074 = vcmask 1048064
    %2075 = vst.msk [vmem:[#allocation2] sm:$0xff] %vm2074, %v2072
    %v2076 = vpack.c.bf16 %v1493, %v1493
    %v2077 = vpack.c.bf16 %v1663, %v1663
    %v2078 = vpack.c.bf16 %v1751, %v1751
    %v2080 = vsel %vm1847, %v2076, 0
    %v2083 = vsel %vm1847, %v2077, 0
    %2085 = vmatprep.subr.bf16.mxu0 0
    %2086 = vmatpush1.bf16.xpose.msra.mxu0 %v2083
    %2087 = vmatprep.subr.bf16.mxu0 0
    %2088 = vmatpush1.bf16.xpose.msra.mxu0 0
    %2089 = vmatprep.subr.bf16.mxu0 0
    %2090 = vmatpush1.bf16.xpose.msra.mxu0 0
    %2091 = vmatprep.subr.bf16.mxu0 0
    %2092 = vmatpush1.bf16.xpose.msra.mxu0 0
    %2093 = vmatprep.subr.bf16.mxu0 0
    %2094 = vmatpush1.bf16.xpose.msra.mxu0 0
    %2095 = vmatprep.subr.bf16.mxu0 0
    %2096 = vmatpush1.bf16.xpose.msra.mxu0 0
    %2097 = vmatprep.subr.bf16.mxu0 0
    %2098 = vmatpush1.bf16.xpose.msra.mxu0 0
    %2099 = vmatprep.subr.bf16.mxu0 0
    %2100 = vmatpush1.bf16.xpose.msra.mxu0 0
    %2101 = vmatprep.subr.bf16.mxu0 0
    %2102 = vmatpush1.bf16.xpose.msra.mxu0 0
    %2103 = vmatprep.subr.bf16.mxu0 0
    %2104 = vmatpush1.bf16.xpose.msra.mxu0 0
    %2105 = vmatprep.subr.bf16.mxu0 0
    %2106 = vmatpush1.bf16.xpose.msra.mxu0 0
    %2107 = vmatprep.subr.bf16.mxu0 0
    %2108 = vmatpush1.bf16.xpose.msra.mxu0 0
    %2109 = vmatprep.subr.bf16.mxu0 0
    %2110 = vmatpush1.bf16.xpose.msra.mxu0 0
    %2111 = vmatprep.subr.bf16.mxu0 0
    %2112 = vmatpush1.bf16.xpose.msra.mxu0 0
    %2113 = vmatprep.subr.bf16.mxu0 0
    %2114 = vmatpush1.bf16.xpose.msra.mxu0 0
    %2115 = vmatprep.subr.bf16.mxu0 0
    %2116 = vmatpush1.bf16.xpose.msra.mxu0 0
    %2117 = vmatprep.mubr.bf16.mxu0 0
    %2118 = vmatmul.mubr.bf16.gmra.mrb[0].mxu0 %v2080
    %v2119 = vpop.f32.mrb[0].mxu0
    %v2120 = vadd.f32 0.0, %v2119
    %v2121 = vpop.f32.mrb[0].mxu0
    %v2122 = vpop.f32.mrb[0].mxu0
    %v2123 = vpop.f32.mrb[0].mxu0
    %2124 = vdwg.mxu0
    %v2125 = vsel %vm1843, %v2120, -1e+30
    %v2126 = vsel %vm1895, %v2125, -inf
    %2127 = vmax.xlane.f32.xlu0 %v2126
    %v2128 = vpop.xlane.xlu0 %2127
    %v2129 = vsub.f32 %v2125, %v2128
    %v2130 = vmul.f32 %v2129, 1.442695
    %v2131 = vpow.pop %v2130
    %v2132 = vsel %vm1895, %v2131, 0.0
    %2133 = vadd.xlane.f32.xlu0 %v2132
    %v2134 = vpop.xlane.xlu0 %2133
    %v2135 = vrcp.pop %v2134
    %v2136 = vmul.f32 %v2131, %v2135
    %v2137 = vpack.c.bf16 %v2136, %v2136
    %v2139 = vsel %vm1895, %v2137, 0
    %v2142 = vsel %vm1911, %v2078, 0
    %2144 = vmatprep.subr.bf16.mxu0 0
    %2145 = vmatpush1.bf16.msra.mxu0 %v2142
    %2146 = vmatprep.subr.bf16.mxu0 0
    %2147 = vmatpush1.bf16.msra.mxu0 0
    %2148 = vmatprep.subr.bf16.mxu0 0
    %2149 = vmatpush1.bf16.msra.mxu0 0
    %2150 = vmatprep.subr.bf16.mxu0 0
    %2151 = vmatpush1.bf16.msra.mxu0 0
    %2152 = vmatprep.subr.bf16.mxu0 0
    %2153 = vmatpush1.bf16.msra.mxu0 0
    %2154 = vmatprep.subr.bf16.mxu0 0
    %2155 = vmatpush1.bf16.msra.mxu0 0
    %2156 = vmatprep.subr.bf16.mxu0 0
    %2157 = vmatpush1.bf16.msra.mxu0 0
    %2158 = vmatprep.subr.bf16.mxu0 0
    %2159 = vmatpush1.bf16.msra.mxu0 0
    %2160 = vmatprep.subr.bf16.mxu0 0
    %2161 = vmatpush1.bf16.msra.mxu0 0
    %2162 = vmatprep.subr.bf16.mxu0 0
    %2163 = vmatpush1.bf16.msra.mxu0 0
    %2164 = vmatprep.subr.bf16.mxu0 0
    %2165 = vmatpush1.bf16.msra.mxu0 0
    %2166 = vmatprep.subr.bf16.mxu0 0
    %2167 = vmatpush1.bf16.msra.mxu0 0
    %2168 = vmatprep.subr.bf16.mxu0 0
    %2169 = vmatpush1.bf16.msra.mxu0 0
    %2170 = vmatprep.subr.bf16.mxu0 0
    %2171 = vmatpush1.bf16.msra.mxu0 0
    %2172 = vmatprep.subr.bf16.mxu0 0
    %2173 = vmatpush1.bf16.msra.mxu0 0
    %2174 = vmatprep.subr.bf16.mxu0 0
    %2175 = vmatpush1.bf16.msra.mxu0 0
    %2176 = vmatprep.mubr.bf16.mxu0 0
    %2177 = vmatmul.mubr.bf16.gmra.mrb[0].mxu0 %v2139
    %v2178 = vpop.f32.mrb[0].mxu0
    %v2179 = vadd.f32 0.0, %v2178
    %v2180 = vpop.f32.mrb[0].mxu0
    %v2181 = vpop.f32.mrb[0].mxu0
    %v2182 = vpop.f32.mrb[0].mxu0
    %2183 = vdwg.mxu0
    %2184 = vst.msk [vmem:[#allocation2 + $0x8] sm:$0xff] %vm1847, %v2179
    %2186 = vrot.lane.b32.xlu0 %v2076, 64
    %v2187 = vpop.permute.xlu0 %2186
    %2189 = vrot.lane.b32.xlu0 %v2077, 64
    %v2190 = vpop.permute.xlu0 %2189
    %v2192 = vsel %vm1847, %v2187, 0
    %v2195 = vsel %vm1847, %v2190, 0
    %2197 = vmatprep.subr.bf16.mxu0 0
    %2198 = vmatpush1.bf16.xpose.msra.mxu0 %v2195
    %2199 = vmatprep.subr.bf16.mxu0 0
    %2200 = vmatpush1.bf16.xpose.msra.mxu0 0
    %2201 = vmatprep.subr.bf16.mxu0 0
    %2202 = vmatpush1.bf16.xpose.msra.mxu0 0
    %2203 = vmatprep.subr.bf16.mxu0 0
    %2204 = vmatpush1.bf16.xpose.msra.mxu0 0
    %2205 = vmatprep.subr.bf16.mxu0 0
    %2206 = vmatpush1.bf16.xpose.msra.mxu0 0
    %2207 = vmatprep.subr.bf16.mxu0 0
    %2208 = vmatpush1.bf16.xpose.msra.mxu0 0
    %2209 = vmatprep.subr.bf16.mxu0 0
    %2210 = vmatpush1.bf16.xpose.msra.mxu0 0
    %2211 = vmatprep.subr.bf16.mxu0 0
    %2212 = vmatpush1.bf16.xpose.msra.mxu0 0
    %2213 = vmatprep.subr.bf16.mxu0 0
    %2214 = vmatpush1.bf16.xpose.msra.mxu0 0
    %2215 = vmatprep.subr.bf16.mxu0 0
    %2216 = vmatpush1.bf16.xpose.msra.mxu0 0
    %2217 = vmatprep.subr.bf16.mxu0 0
    %2218 = vmatpush1.bf16.xpose.msra.mxu0 0
    %2219 = vmatprep.subr.bf16.mxu0 0
    %2220 = vmatpush1.bf16.xpose.msra.mxu0 0
    %2221 = vmatprep.subr.bf16.mxu0 0
    %2222 = vmatpush1.bf16.xpose.msra.mxu0 0
    %2223 = vmatprep.subr.bf16.mxu0 0
    %2224 = vmatpush1.bf16.xpose.msra.mxu0 0
    %2225 = vmatprep.subr.bf16.mxu0 0
    %2226 = vmatpush1.bf16.xpose.msra.mxu0 0
    %2227 = vmatprep.subr.bf16.mxu0 0
    %2228 = vmatpush1.bf16.xpose.msra.mxu0 0
    %2229 = vmatprep.mubr.bf16.mxu0 0
    %2230 = vmatmul.mubr.bf16.gmra.mrb[0].mxu0 %v2192
    %v2231 = vpop.f32.mrb[0].mxu0
    %v2232 = vadd.f32 0.0, %v2231
    %v2233 = vpop.f32.mrb[0].mxu0
    %v2234 = vpop.f32.mrb[0].mxu0
    %v2235 = vpop.f32.mrb[0].mxu0
    %2236 = vdwg.mxu0
    %v2237 = vsel %vm1843, %v2232, -1e+30
    %v2238 = vsel %vm1895, %v2237, -inf
    %2239 = vmax.xlane.f32.xlu0 %v2238
    %v2240 = vpop.xlane.xlu0 %2239
    %v2241 = vsub.f32 %v2237, %v2240
    %v2242 = vmul.f32 %v2241, 1.442695
    %v2243 = vpow.pop %v2242
    %v2244 = vsel %vm1895, %v2243, 0.0
    %2245 = vadd.xlane.f32.xlu0 %v2244
    %v2246 = vpop.xlane.xlu0 %2245
    %v2247 = vrcp.pop %v2246
    %v2248 = vmul.f32 %v2243, %v2247
    %v2249 = vpack.c.bf16 %v2248, %v2248
    %2251 = vrot.lane.b32.xlu0 %v2078, 64
    %v2252 = vpop.permute.xlu0 %2251
    %v2254 = vsel %vm1895, %v2249, 0
    %v2257 = vsel %vm1911, %v2252, 0
    %2259 = vmatprep.subr.bf16.mxu0 0
    %2260 = vmatpush1.bf16.msra.mxu0 %v2257
    %2261 = vmatprep.subr.bf16.mxu0 0
    %2262 = vmatpush1.bf16.msra.mxu0 0
    %2263 = vmatprep.subr.bf16.mxu0 0
    %2264 = vmatpush1.bf16.msra.mxu0 0
    %2265 = vmatprep.subr.bf16.mxu0 0
    %2266 = vmatpush1.bf16.msra.mxu0 0
    %2267 = vmatprep.subr.bf16.mxu0 0
    %2268 = vmatpush1.bf16.msra.mxu0 0
    %2269 = vmatprep.subr.bf16.mxu0 0
    %2270 = vmatpush1.bf16.msra.mxu0 0
    %2271 = vmatprep.subr.bf16.mxu0 0
    %2272 = vmatpush1.bf16.msra.mxu0 0
    %2273 = vmatprep.subr.bf16.mxu0 0
    %2274 = vmatpush1.bf16.msra.mxu0 0
    %2275 = vmatprep.subr.bf16.mxu0 0
    %2276 = vmatpush1.bf16.msra.mxu0 0
    %2277 = vmatprep.subr.bf16.mxu0 0
    %2278 = vmatpush1.bf16.msra.mxu0 0
    %2279 = vmatprep.subr.bf16.mxu0 0
    %2280 = vmatpush1.bf16.msra.mxu0 0
    %2281 = vmatprep.subr.bf16.mxu0 0
    %2282 = vmatpush1.bf16.msra.mxu0 0
    %2283 = vmatprep.subr.bf16.mxu0 0
    %2284 = vmatpush1.bf16.msra.mxu0 0
    %2285 = vmatprep.subr.bf16.mxu0 0
    %2286 = vmatpush1.bf16.msra.mxu0 0
    %2287 = vmatprep.subr.bf16.mxu0 0
    %2288 = vmatpush1.bf16.msra.mxu0 0
    %2289 = vmatprep.subr.bf16.mxu0 0
    %2290 = vmatpush1.bf16.msra.mxu0 0
    %2291 = vmatprep.mubr.bf16.mxu0 0
    %2292 = vmatmul.mubr.bf16.gmra.mrb[0].mxu0 %v2254
    %v2293 = vpop.f32.mrb[0].mxu0
    %v2294 = vadd.f32 0.0, %v2293
    %v2295 = vpop.f32.mrb[0].mxu0
    %v2296 = vpop.f32.mrb[0].mxu0
    %v2297 = vpop.f32.mrb[0].mxu0
    %2298 = vdwg.mxu0
    %2300 = vrot.lane.b32.xlu0 %v2294, 64
    %v2301 = vpop.permute.xlu0 %2300
    %2303 = vst.msk [vmem:[#allocation2 + $0x8] sm:$0xff] %vm2074, %v2301
    %v2304 = vpack.c.bf16 %v1577, %v1577
    %v2305 = vpack.c.bf16 %v1665, %v1665
    %v2306 = vpack.c.bf16 %v1833, %v1833
    %v2308 = vsel %vm1847, %v2304, 0
    %v2311 = vsel %vm1847, %v2305, 0
    %2313 = vmatprep.subr.bf16.mxu0 0
    %2314 = vmatpush1.bf16.xpose.msra.mxu0 %v2311
    %2315 = vmatprep.subr.bf16.mxu0 0
    %2316 = vmatpush1.bf16.xpose.msra.mxu0 0
    %2317 = vmatprep.subr.bf16.mxu0 0
    %2318 = vmatpush1.bf16.xpose.msra.mxu0 0
    %2319 = vmatprep.subr.bf16.mxu0 0
    %2320 = vmatpush1.bf16.xpose.msra.mxu0 0
    %2321 = vmatprep.subr.bf16.mxu0 0
    %2322 = vmatpush1.bf16.xpose.msra.mxu0 0
    %2323 = vmatprep.subr.bf16.mxu0 0
    %2324 = vmatpush1.bf16.xpose.msra.mxu0 0
    %2325 = vmatprep.subr.bf16.mxu0 0
    %2326 = vmatpush1.bf16.xpose.msra.mxu0 0
    %2327 = vmatprep.subr.bf16.mxu0 0
    %2328 = vmatpush1.bf16.xpose.msra.mxu0 0
    %2329 = vmatprep.subr.bf16.mxu0 0
    %2330 = vmatpush1.bf16.xpose.msra.mxu0 0
    %2331 = vmatprep.subr.bf16.mxu0 0
    %2332 = vmatpush1.bf16.xpose.msra.mxu0 0
    %2333 = vmatprep.subr.bf16.mxu0 0
    %2334 = vmatpush1.bf16.xpose.msra.mxu0 0
    %2335 = vmatprep.subr.bf16.mxu0 0
    %2336 = vmatpush1.bf16.xpose.msra.mxu0 0
    %2337 = vmatprep.subr.bf16.mxu0 0
    %2338 = vmatpush1.bf16.xpose.msra.mxu0 0
    %2339 = vmatprep.subr.bf16.mxu0 0
    %2340 = vmatpush1.bf16.xpose.msra.mxu0 0
    %2341 = vmatprep.subr.bf16.mxu0 0
    %2342 = vmatpush1.bf16.xpose.msra.mxu0 0
    %2343 = vmatprep.subr.bf16.mxu0 0
    %2344 = vmatpush1.bf16.xpose.msra.mxu0 0
    %2345 = vmatprep.mubr.bf16.mxu0 0
    %2346 = vmatmul.mubr.bf16.gmra.mrb[0].mxu0 %v2308
    %v2347 = vpop.f32.mrb[0].mxu0
    %v2348 = vadd.f32 0.0, %v2347
    %v2349 = vpop.f32.mrb[0].mxu0
    %v2350 = vpop.f32.mrb[0].mxu0
    %v2351 = vpop.f32.mrb[0].mxu0
    %2352 = vdwg.mxu0
    %v2353 = vsel %vm1843, %v2348, -1e+30
    %v2354 = vsel %vm1895, %v2353, -inf
    %2355 = vmax.xlane.f32.xlu0 %v2354
    %v2356 = vpop.xlane.xlu0 %2355
    %v2357 = vsub.f32 %v2353, %v2356
    %v2358 = vmul.f32 %v2357, 1.442695
    %v2359 = vpow.pop %v2358
    %v2360 = vsel %vm1895, %v2359, 0.0
    %2361 = vadd.xlane.f32.xlu0 %v2360
    %v2362 = vpop.xlane.xlu0 %2361
    %v2363 = vrcp.pop %v2362
    %v2364 = vmul.f32 %v2359, %v2363
    %v2365 = vpack.c.bf16 %v2364, %v2364
    %v2367 = vsel %vm1895, %v2365, 0
    %v2370 = vsel %vm1911, %v2306, 0
    %2372 = vmatprep.subr.bf16.mxu0 0
    %2373 = vmatpush1.bf16.msra.mxu0 %v2370
    %2374 = vmatprep.subr.bf16.mxu0 0
    %2375 = vmatpush1.bf16.msra.mxu0 0
    %2376 = vmatprep.subr.bf16.mxu0 0
    %2377 = vmatpush1.bf16.msra.mxu0 0
    %2378 = vmatprep.subr.bf16.mxu0 0
    %2379 = vmatpush1.bf16.msra.mxu0 0
    %2380 = vmatprep.subr.bf16.mxu0 0
    %2381 = vmatpush1.bf16.msra.mxu0 0
    %2382 = vmatprep.subr.bf16.mxu0 0
    %2383 = vmatpush1.bf16.msra.mxu0 0
    %2384 = vmatprep.subr.bf16.mxu0 0
    %2385 = vmatpush1.bf16.msra.mxu0 0
    %2386 = vmatprep.subr.bf16.mxu0 0
    %2387 = vmatpush1.bf16.msra.mxu0 0
    %2388 = vmatprep.subr.bf16.mxu0 0
    %2389 = vmatpush1.bf16.msra.mxu0 0
    %2390 = vmatprep.subr.bf16.mxu0 0
    %2391 = vmatpush1.bf16.msra.mxu0 0
    %2392 = vmatprep.subr.bf16.mxu0 0
    %2393 = vmatpush1.bf16.msra.mxu0 0
    %2394 = vmatprep.subr.bf16.mxu0 0
    %2395 = vmatpush1.bf16.msra.mxu0 0
    %2396 = vmatprep.subr.bf16.mxu0 0
    %2397 = vmatpush1.bf16.msra.mxu0 0
    %2398 = vmatprep.subr.bf16.mxu0 0
    %2399 = vmatpush1.bf16.msra.mxu0 0
    %2400 = vmatprep.subr.bf16.mxu0 0
    %2401 = vmatpush1.bf16.msra.mxu0 0
    %2402 = vmatprep.subr.bf16.mxu0 0
    %2403 = vmatpush1.bf16.msra.mxu0 0
    %2404 = vmatprep.mubr.bf16.mxu0 0
    %2405 = vmatmul.mubr.bf16.gmra.mrb[0].mxu0 %v2367
    %v2406 = vpop.f32.mrb[0].mxu0
    %v2407 = vadd.f32 0.0, %v2406
    %v2408 = vpop.f32.mrb[0].mxu0
    %v2409 = vpop.f32.mrb[0].mxu0
    %v2410 = vpop.f32.mrb[0].mxu0
    %2411 = vdwg.mxu0
    %2412 = vst.msk [vmem:[#allocation2 + $0x10] sm:$0xff] %vm1847, %v2407
    %2414 = vrot.lane.b32.xlu0 %v2304, 64
    %v2415 = vpop.permute.xlu0 %2414
    %2417 = vrot.lane.b32.xlu0 %v2305, 64
    %v2418 = vpop.permute.xlu0 %2417
    %v2420 = vsel %vm1847, %v2415, 0
    %v2423 = vsel %vm1847, %v2418, 0
    %2425 = vmatprep.subr.bf16.mxu0 0
    %2426 = vmatpush1.bf16.xpose.msra.mxu0 %v2423
    %2427 = vmatprep.subr.bf16.mxu0 0
    %2428 = vmatpush1.bf16.xpose.msra.mxu0 0
    %2429 = vmatprep.subr.bf16.mxu0 0
    %2430 = vmatpush1.bf16.xpose.msra.mxu0 0
    %2431 = vmatprep.subr.bf16.mxu0 0
    %2432 = vmatpush1.bf16.xpose.msra.mxu0 0
    %2433 = vmatprep.subr.bf16.mxu0 0
    %2434 = vmatpush1.bf16.xpose.msra.mxu0 0
    %2435 = vmatprep.subr.bf16.mxu0 0
    %2436 = vmatpush1.bf16.xpose.msra.mxu0 0
    %2437 = vmatprep.subr.bf16.mxu0 0
    %2438 = vmatpush1.bf16.xpose.msra.mxu0 0
    %2439 = vmatprep.subr.bf16.mxu0 0
    %2440 = vmatpush1.bf16.xpose.msra.mxu0 0
    %2441 = vmatprep.subr.bf16.mxu0 0
    %2442 = vmatpush1.bf16.xpose.msra.mxu0 0
    %2443 = vmatprep.subr.bf16.mxu0 0
    %2444 = vmatpush1.bf16.xpose.msra.mxu0 0
    %2445 = vmatprep.subr.bf16.mxu0 0
    %2446 = vmatpush1.bf16.xpose.msra.mxu0 0
    %2447 = vmatprep.subr.bf16.mxu0 0
    %2448 = vmatpush1.bf16.xpose.msra.mxu0 0
    %2449 = vmatprep.subr.bf16.mxu0 0
    %2450 = vmatpush1.bf16.xpose.msra.mxu0 0
    %2451 = vmatprep.subr.bf16.mxu0 0
    %2452 = vmatpush1.bf16.xpose.msra.mxu0 0
    %2453 = vmatprep.subr.bf16.mxu0 0
    %2454 = vmatpush1.bf16.xpose.msra.mxu0 0
    %2455 = vmatprep.subr.bf16.mxu0 0
    %2456 = vmatpush1.bf16.xpose.msra.mxu0 0
    %2457 = vmatprep.mubr.bf16.mxu0 0
    %2458 = vmatmul.mubr.bf16.gmra.mrb[0].mxu0 %v2420
    %v2459 = vpop.f32.mrb[0].mxu0
    %v2460 = vadd.f32 0.0, %v2459
    %v2461 = vpop.f32.mrb[0].mxu0
    %v2462 = vpop.f32.mrb[0].mxu0
    %v2463 = vpop.f32.mrb[0].mxu0
    %2464 = vdwg.mxu0
    %v2465 = vsel %vm1843, %v2460, -1e+30
    %v2466 = vsel %vm1895, %v2465, -inf
    %2467 = vmax.xlane.f32.xlu0 %v2466
    %v2468 = vpop.xlane.xlu0 %2467
    %v2469 = vsub.f32 %v2465, %v2468
    %v2470 = vmul.f32 %v2469, 1.442695
    %v2471 = vpow.pop %v2470
    %v2472 = vsel %vm1895, %v2471, 0.0
    %2473 = vadd.xlane.f32.xlu0 %v2472
    %v2474 = vpop.xlane.xlu0 %2473
    %v2475 = vrcp.pop %v2474
    %v2476 = vmul.f32 %v2471, %v2475
    %v2477 = vpack.c.bf16 %v2476, %v2476
    %2479 = vrot.lane.b32.xlu0 %v2306, 64
    %v2480 = vpop.permute.xlu0 %2479
    %v2482 = vsel %vm1895, %v2477, 0
    %v2485 = vsel %vm1911, %v2480, 0
    %2487 = vmatprep.subr.bf16.mxu0 0
    %2488 = vmatpush1.bf16.msra.mxu0 %v2485
    %2489 = vmatprep.subr.bf16.mxu0 0
    %2490 = vmatpush1.bf16.msra.mxu0 0
    %2491 = vmatprep.subr.bf16.mxu0 0
    %2492 = vmatpush1.bf16.msra.mxu0 0
    %2493 = vmatprep.subr.bf16.mxu0 0
    %2494 = vmatpush1.bf16.msra.mxu0 0
    %2495 = vmatprep.subr.bf16.mxu0 0
    %2496 = vmatpush1.bf16.msra.mxu0 0
    %2497 = vmatprep.subr.bf16.mxu0 0
    %2498 = vmatpush1.bf16.msra.mxu0 0
    %2499 = vmatprep.subr.bf16.mxu0 0
    %2500 = vmatpush1.bf16.msra.mxu0 0
    %2501 = vmatprep.subr.bf16.mxu0 0
    %2502 = vmatpush1.bf16.msra.mxu0 0
    %2503 = vmatprep.subr.bf16.mxu0 0
    %2504 = vmatpush1.bf16.msra.mxu0 0
    %2505 = vmatprep.subr.bf16.mxu0 0
    %2506 = vmatpush1.bf16.msra.mxu0 0
    %2507 = vmatprep.subr.bf16.mxu0 0
    %2508 = vmatpush1.bf16.msra.mxu0 0
    %2509 = vmatprep.subr.bf16.mxu0 0
    %2510 = vmatpush1.bf16.msra.mxu0 0
    %2511 = vmatprep.subr.bf16.mxu0 0
    %2512 = vmatpush1.bf16.msra.mxu0 0
    %2513 = vmatprep.subr.bf16.mxu0 0
    %2514 = vmatpush1.bf16.msra.mxu0 0
    %2515 = vmatprep.subr.bf16.mxu0 0
    %2516 = vmatpush1.bf16.msra.mxu0 0
    %2517 = vmatprep.subr.bf16.mxu0 0
    %2518 = vmatpush1.bf16.msra.mxu0 0
    %2519 = vmatprep.mubr.bf16.mxu0 0
    %2520 = vmatmul.mubr.bf16.gmra.mrb[0].mxu0 %v2482
    %v2521 = vpop.f32.mrb[0].mxu0
    %v2522 = vadd.f32 0.0, %v2521
    %v2523 = vpop.f32.mrb[0].mxu0
    %v2524 = vpop.f32.mrb[0].mxu0
    %v2525 = vpop.f32.mrb[0].mxu0
    %2526 = vdwg.mxu0
    %2528 = vrot.lane.b32.xlu0 %v2522, 64
    %v2529 = vpop.permute.xlu0 %2528
    %2531 = vst.msk [vmem:[#allocation2 + $0x10] sm:$0xff] %vm2074, %v2529
    %v2532 = vpack.c.bf16 %v1495, %v1495
    %v2533 = vpack.c.bf16 %v1583, %v1583
    %v2534 = vpack.c.bf16 %v1753, %v1753
    %v2536 = vsel %vm1847, %v2532, 0
    %v2539 = vsel %vm1847, %v2533, 0
    %2541 = vmatprep.subr.bf16.mxu0 0
    %2542 = vmatpush1.bf16.xpose.msra.mxu0 %v2539
    %2543 = vmatprep.subr.bf16.mxu0 0
    %2544 = vmatpush1.bf16.xpose.msra.mxu0 0
    %2545 = vmatprep.subr.bf16.mxu0 0
    %2546 = vmatpush1.bf16.xpose.msra.mxu0 0
    %2547 = vmatprep.subr.bf16.mxu0 0
    %2548 = vmatpush1.bf16.xpose.msra.mxu0 0
    %2549 = vmatprep.subr.bf16.mxu0 0
    %2550 = vmatpush1.bf16.xpose.msra.mxu0 0
    %2551 = vmatprep.subr.bf16.mxu0 0
    %2552 = vmatpush1.bf16.xpose.msra.mxu0 0
    %2553 = vmatprep.subr.bf16.mxu0 0
    %2554 = vmatpush1.bf16.xpose.msra.mxu0 0
    %2555 = vmatprep.subr.bf16.mxu0 0
    %2556 = vmatpush1.bf16.xpose.msra.mxu0 0
    %2557 = vmatprep.subr.bf16.mxu0 0
    %2558 = vmatpush1.bf16.xpose.msra.mxu0 0
    %2559 = vmatprep.subr.bf16.mxu0 0
    %2560 = vmatpush1.bf16.xpose.msra.mxu0 0
    %2561 = vmatprep.subr.bf16.mxu0 0
    %2562 = vmatpush1.bf16.xpose.msra.mxu0 0
    %2563 = vmatprep.subr.bf16.mxu0 0
    %2564 = vmatpush1.bf16.xpose.msra.mxu0 0
    %2565 = vmatprep.subr.bf16.mxu0 0
    %2566 = vmatpush1.bf16.xpose.msra.mxu0 0
    %2567 = vmatprep.subr.bf16.mxu0 0
    %2568 = vmatpush1.bf16.xpose.msra.mxu0 0
    %2569 = vmatprep.subr.bf16.mxu0 0
    %2570 = vmatpush1.bf16.xpose.msra.mxu0 0
    %2571 = vmatprep.subr.bf16.mxu0 0
    %2572 = vmatpush1.bf16.xpose.msra.mxu0 0
    %2573 = vmatprep.mubr.bf16.mxu0 0
    %2574 = vmatmul.mubr.bf16.gmra.mrb[0].mxu0 %v2536
    %v2575 = vpop.f32.mrb[0].mxu0
    %v2576 = vadd.f32 0.0, %v2575
    %v2577 = vpop.f32.mrb[0].mxu0
    %v2578 = vpop.f32.mrb[0].mxu0
    %v2579 = vpop.f32.mrb[0].mxu0
    %2580 = vdwg.mxu0
    %v2581 = vsel %vm1843, %v2576, -1e+30
    %v2582 = vsel %vm1895, %v2581, -inf
    %2583 = vmax.xlane.f32.xlu0 %v2582
    %v2584 = vpop.xlane.xlu0 %2583
    %v2585 = vsub.f32 %v2581, %v2584
    %v2586 = vmul.f32 %v2585, 1.442695
    %v2587 = vpow.pop %v2586
    %v2588 = vsel %vm1895, %v2587, 0.0
    %2589 = vadd.xlane.f32.xlu0 %v2588
    %v2590 = vpop.xlane.xlu0 %2589
    %v2591 = vrcp.pop %v2590
    %v2592 = vmul.f32 %v2587, %v2591
    %v2593 = vpack.c.bf16 %v2592, %v2592
    %v2595 = vsel %vm1895, %v2593, 0
    %v2598 = vsel %vm1911, %v2534, 0
    %2600 = vmatprep.subr.bf16.mxu0 0
    %2601 = vmatpush1.bf16.msra.mxu0 %v2598
    %2602 = vmatprep.subr.bf16.mxu0 0
    %2603 = vmatpush1.bf16.msra.mxu0 0
    %2604 = vmatprep.subr.bf16.mxu0 0
    %2605 = vmatpush1.bf16.msra.mxu0 0
    %2606 = vmatprep.subr.bf16.mxu0 0
    %2607 = vmatpush1.bf16.msra.mxu0 0
    %2608 = vmatprep.subr.bf16.mxu0 0
    %2609 = vmatpush1.bf16.msra.mxu0 0
    %2610 = vmatprep.subr.bf16.mxu0 0
    %2611 = vmatpush1.bf16.msra.mxu0 0
    %2612 = vmatprep.subr.bf16.mxu0 0
    %2613 = vmatpush1.bf16.msra.mxu0 0
    %2614 = vmatprep.subr.bf16.mxu0 0
    %2615 = vmatpush1.bf16.msra.mxu0 0
    %2616 = vmatprep.subr.bf16.mxu0 0
    %2617 = vmatpush1.bf16.msra.mxu0 0
    %2618 = vmatprep.subr.bf16.mxu0 0
    %2619 = vmatpush1.bf16.msra.mxu0 0
    %2620 = vmatprep.subr.bf16.mxu0 0
    %2621 = vmatpush1.bf16.msra.mxu0 0
    %2622 = vmatprep.subr.bf16.mxu0 0
    %2623 = vmatpush1.bf16.msra.mxu0 0
    %2624 = vmatprep.subr.bf16.mxu0 0
    %2625 = vmatpush1.bf16.msra.mxu0 0
    %2626 = vmatprep.subr.bf16.mxu0 0
    %2627 = vmatpush1.bf16.msra.mxu0 0
    %2628 = vmatprep.subr.bf16.mxu0 0
    %2629 = vmatpush1.bf16.msra.mxu0 0
    %2630 = vmatprep.subr.bf16.mxu0 0
    %2631 = vmatpush1.bf16.msra.mxu0 0
    %2632 = vmatprep.mubr.bf16.mxu0 0
    %2633 = vmatmul.mubr.bf16.gmra.mrb[0].mxu0 %v2595
    %v2634 = vpop.f32.mrb[0].mxu0
    %v2635 = vadd.f32 0.0, %v2634
    %v2636 = vpop.f32.mrb[0].mxu0
    %v2637 = vpop.f32.mrb[0].mxu0
    %v2638 = vpop.f32.mrb[0].mxu0
    %2639 = vdwg.mxu0
    %2640 = vst.msk [vmem:[#allocation2 + $0x18] sm:$0xff] %vm1847, %v2635
    %2642 = vrot.lane.b32.xlu0 %v2532, 64
    %v2643 = vpop.permute.xlu0 %2642
    %2645 = vrot.lane.b32.xlu0 %v2533, 64
    %v2646 = vpop.permute.xlu0 %2645
    %v2648 = vsel %vm1847, %v2643, 0
    %v2651 = vsel %vm1847, %v2646, 0
    %2653 = vmatprep.subr.bf16.mxu0 0
    %2654 = vmatpush1.bf16.xpose.msra.mxu0 %v2651
    %2655 = vmatprep.subr.bf16.mxu0 0
    %2656 = vmatpush1.bf16.xpose.msra.mxu0 0
    %2657 = vmatprep.subr.bf16.mxu0 0
    %2658 = vmatpush1.bf16.xpose.msra.mxu0 0
    %2659 = vmatprep.subr.bf16.mxu0 0
    %2660 = vmatpush1.bf16.xpose.msra.mxu0 0
    %2661 = vmatprep.subr.bf16.mxu0 0
    %2662 = vmatpush1.bf16.xpose.msra.mxu0 0
    %2663 = vmatprep.subr.bf16.mxu0 0
    %2664 = vmatpush1.bf16.xpose.msra.mxu0 0
    %2665 = vmatprep.subr.bf16.mxu0 0
    %2666 = vmatpush1.bf16.xpose.msra.mxu0 0
    %2667 = vmatprep.subr.bf16.mxu0 0
    %2668 = vmatpush1.bf16.xpose.msra.mxu0 0
    %2669 = vmatprep.subr.bf16.mxu0 0
    %2670 = vmatpush1.bf16.xpose.msra.mxu0 0
    %2671 = vmatprep.subr.bf16.mxu0 0
    %2672 = vmatpush1.bf16.xpose.msra.mxu0 0
    %2673 = vmatprep.subr.bf16.mxu0 0
    %2674 = vmatpush1.bf16.xpose.msra.mxu0 0
    %2675 = vmatprep.subr.bf16.mxu0 0
    %2676 = vmatpush1.bf16.xpose.msra.mxu0 0
    %2677 = vmatprep.subr.bf16.mxu0 0
    %2678 = vmatpush1.bf16.xpose.msra.mxu0 0
    %2679 = vmatprep.subr.bf16.mxu0 0
    %2680 = vmatpush1.bf16.xpose.msra.mxu0 0
    %2681 = vmatprep.subr.bf16.mxu0 0
    %2682 = vmatpush1.bf16.xpose.msra.mxu0 0
    %2683 = vmatprep.subr.bf16.mxu0 0
    %2684 = vmatpush1.bf16.xpose.msra.mxu0 0
    %2685 = vmatprep.mubr.bf16.mxu0 0
    %2686 = vmatmul.mubr.bf16.gmra.mrb[0].mxu0 %v2648
    %v2687 = vpop.f32.mrb[0].mxu0
    %v2688 = vadd.f32 0.0, %v2687
    %v2689 = vpop.f32.mrb[0].mxu0
    %v2690 = vpop.f32.mrb[0].mxu0
    %v2691 = vpop.f32.mrb[0].mxu0
    %2692 = vdwg.mxu0
    %v2693 = vsel %vm1843, %v2688, -1e+30
    %v2694 = vsel %vm1895, %v2693, -inf
    %2695 = vmax.xlane.f32.xlu0 %v2694
    %v2696 = vpop.xlane.xlu0 %2695
    %v2697 = vsub.f32 %v2693, %v2696
    %v2698 = vmul.f32 %v2697, 1.442695
    %v2699 = vpow.pop %v2698
    %v2700 = vsel %vm1895, %v2699, 0.0
    %2701 = vadd.xlane.f32.xlu0 %v2700
    %v2702 = vpop.xlane.xlu0 %2701
    %v2703 = vrcp.pop %v2702
    %v2704 = vmul.f32 %v2699, %v2703
    %v2705 = vpack.c.bf16 %v2704, %v2704
    %2707 = vrot.lane.b32.xlu0 %v2534, 64
    %v2708 = vpop.permute.xlu0 %2707
    %v2710 = vsel %vm1895, %v2705, 0
    %v2713 = vsel %vm1911, %v2708, 0
    %2715 = vmatprep.subr.bf16.mxu0 0
    %2716 = vmatpush1.bf16.msra.mxu0 %v2713
    %2717 = vmatprep.subr.bf16.mxu0 0
    %2718 = vmatpush1.bf16.msra.mxu0 0
    %2719 = vmatprep.subr.bf16.mxu0 0
    %2720 = vmatpush1.bf16.msra.mxu0 0
    %2721 = vmatprep.subr.bf16.mxu0 0
    %2722 = vmatpush1.bf16.msra.mxu0 0
    %2723 = vmatprep.subr.bf16.mxu0 0
    %2724 = vmatpush1.bf16.msra.mxu0 0
    %2725 = vmatprep.subr.bf16.mxu0 0
    %2726 = vmatpush1.bf16.msra.mxu0 0
    %2727 = vmatprep.subr.bf16.mxu0 0
    %2728 = vmatpush1.bf16.msra.mxu0 0
    %2729 = vmatprep.subr.bf16.mxu0 0
    %2730 = vmatpush1.bf16.msra.mxu0 0
    %2731 = vmatprep.subr.bf16.mxu0 0
    %2732 = vmatpush1.bf16.msra.mxu0 0
    %2733 = vmatprep.subr.bf16.mxu0 0
    %2734 = vmatpush1.bf16.msra.mxu0 0
    %2735 = vmatprep.subr.bf16.mxu0 0
    %2736 = vmatpush1.bf16.msra.mxu0 0
    %2737 = vmatprep.subr.bf16.mxu0 0
    %2738 = vmatpush1.bf16.msra.mxu0 0
    %2739 = vmatprep.subr.bf16.mxu0 0
    %2740 = vmatpush1.bf16.msra.mxu0 0
    %2741 = vmatprep.subr.bf16.mxu0 0
    %2742 = vmatpush1.bf16.msra.mxu0 0
    %2743 = vmatprep.subr.bf16.mxu0 0
    %2744 = vmatpush1.bf16.msra.mxu0 0
    %2745 = vmatprep.subr.bf16.mxu0 0
    %2746 = vmatpush1.bf16.msra.mxu0 0
    %2747 = vmatprep.mubr.bf16.mxu0 0
    %2748 = vmatmul.mubr.bf16.gmra.mrb[0].mxu0 %v2710
    %v2749 = vpop.f32.mrb[0].mxu0
    %v2750 = vadd.f32 0.0, %v2749
    %v2751 = vpop.f32.mrb[0].mxu0
    %v2752 = vpop.f32.mrb[0].mxu0
    %v2753 = vpop.f32.mrb[0].mxu0
    %2754 = vdwg.mxu0
    %2756 = vrot.lane.b32.xlu0 %v2750, 64
    %v2757 = vpop.permute.xlu0 %2756
    %2759 = vst.msk [vmem:[#allocation2 + $0x18] sm:$0xff] %vm2074, %v2757
    %v2760 = vpack.c.bf16 %v1497, %v1497
    %v2761 = vpack.c.bf16 %v1667, %v1667
    %v2762 = vpack.c.bf16 %v1755, %v1755
    %v2764 = vsel %vm1847, %v2760, 0
    %v2767 = vsel %vm1847, %v2761, 0
    %2769 = vmatprep.subr.bf16.mxu0 0
    %2770 = vmatpush1.bf16.xpose.msra.mxu0 %v2767
    %2771 = vmatprep.subr.bf16.mxu0 0
    %2772 = vmatpush1.bf16.xpose.msra.mxu0 0
    %2773 = vmatprep.subr.bf16.mxu0 0
    %2774 = vmatpush1.bf16.xpose.msra.mxu0 0
    %2775 = vmatprep.subr.bf16.mxu0 0
    %2776 = vmatpush1.bf16.xpose.msra.mxu0 0
    %2777 = vmatprep.subr.bf16.mxu0 0
    %2778 = vmatpush1.bf16.xpose.msra.mxu0 0
    %2779 = vmatprep.subr.bf16.mxu0 0
    %2780 = vmatpush1.bf16.xpose.msra.mxu0 0
    %2781 = vmatprep.subr.bf16.mxu0 0
    %2782 = vmatpush1.bf16.xpose.msra.mxu0 0
    %2783 = vmatprep.subr.bf16.mxu0 0
    %2784 = vmatpush1.bf16.xpose.msra.mxu0 0
    %2785 = vmatprep.subr.bf16.mxu0 0
    %2786 = vmatpush1.bf16.xpose.msra.mxu0 0
    %2787 = vmatprep.subr.bf16.mxu0 0
    %2788 = vmatpush1.bf16.xpose.msra.mxu0 0
    %2789 = vmatprep.subr.bf16.mxu0 0
    %2790 = vmatpush1.bf16.xpose.msra.mxu0 0
    %2791 = vmatprep.subr.bf16.mxu0 0
    %2792 = vmatpush1.bf16.xpose.msra.mxu0 0
    %2793 = vmatprep.subr.bf16.mxu0 0
    %2794 = vmatpush1.bf16.xpose.msra.mxu0 0
    %2795 = vmatprep.subr.bf16.mxu0 0
    %2796 = vmatpush1.bf16.xpose.msra.mxu0 0
    %2797 = vmatprep.subr.bf16.mxu0 0
    %2798 = vmatpush1.bf16.xpose.msra.mxu0 0
    %2799 = vmatprep.subr.bf16.mxu0 0
    %2800 = vmatpush1.bf16.xpose.msra.mxu0 0
    %2801 = vmatprep.mubr.bf16.mxu0 0
    %2802 = vmatmul.mubr.bf16.gmra.mrb[0].mxu0 %v2764
    %v2803 = vpop.f32.mrb[0].mxu0
    %v2804 = vadd.f32 0.0, %v2803
    %v2805 = vpop.f32.mrb[0].mxu0
    %v2806 = vpop.f32.mrb[0].mxu0
    %v2807 = vpop.f32.mrb[0].mxu0
    %2808 = vdwg.mxu0
    %v2809 = vsel %vm1843, %v2804, -1e+30
    %v2810 = vsel %vm1895, %v2809, -inf
    %2811 = vmax.xlane.f32.xlu0 %v2810
    %v2812 = vpop.xlane.xlu0 %2811
    %v2813 = vsub.f32 %v2809, %v2812
    %v2814 = vmul.f32 %v2813, 1.442695
    %v2815 = vpow.pop %v2814
    %v2816 = vsel %vm1895, %v2815, 0.0
    %2817 = vadd.xlane.f32.xlu0 %v2816
    %v2818 = vpop.xlane.xlu0 %2817
    %v2819 = vrcp.pop %v2818
    %v2820 = vmul.f32 %v2815, %v2819
    %v2821 = vpack.c.bf16 %v2820, %v2820
    %v2823 = vsel %vm1895, %v2821, 0
    %v2826 = vsel %vm1911, %v2762, 0
    %2828 = vmatprep.subr.bf16.mxu0 0
    %2829 = vmatpush1.bf16.msra.mxu0 %v2826
    %2830 = vmatprep.subr.bf16.mxu0 0
    %2831 = vmatpush1.bf16.msra.mxu0 0
    %2832 = vmatprep.subr.bf16.mxu0 0
    %2833 = vmatpush1.bf16.msra.mxu0 0
    %2834 = vmatprep.subr.bf16.mxu0 0
    %2835 = vmatpush1.bf16.msra.mxu0 0
    %2836 = vmatprep.subr.bf16.mxu0 0
    %2837 = vmatpush1.bf16.msra.mxu0 0
    %2838 = vmatprep.subr.bf16.mxu0 0
    %2839 = vmatpush1.bf16.msra.mxu0 0
    %2840 = vmatprep.subr.bf16.mxu0 0
    %2841 = vmatpush1.bf16.msra.mxu0 0
    %2842 = vmatprep.subr.bf16.mxu0 0
    %2843 = vmatpush1.bf16.msra.mxu0 0
    %2844 = vmatprep.subr.bf16.mxu0 0
    %2845 = vmatpush1.bf16.msra.mxu0 0
    %2846 = vmatprep.subr.bf16.mxu0 0
    %2847 = vmatpush1.bf16.msra.mxu0 0
    %2848 = vmatprep.subr.bf16.mxu0 0
    %2849 = vmatpush1.bf16.msra.mxu0 0
    %2850 = vmatprep.subr.bf16.mxu0 0
    %2851 = vmatpush1.bf16.msra.mxu0 0
    %2852 = vmatprep.subr.bf16.mxu0 0
    %2853 = vmatpush1.bf16.msra.mxu0 0
    %2854 = vmatprep.subr.bf16.mxu0 0
    %2855 = vmatpush1.bf16.msra.mxu0 0
    %2856 = vmatprep.subr.bf16.mxu0 0
    %2857 = vmatpush1.bf16.msra.mxu0 0
    %2858 = vmatprep.subr.bf16.mxu0 0
    %2859 = vmatpush1.bf16.msra.mxu0 0
    %2860 = vmatprep.mubr.bf16.mxu0 0
    %2861 = vmatmul.mubr.bf16.gmra.mrb[0].mxu0 %v2823
    %v2862 = vpop.f32.mrb[0].mxu0
    %v2863 = vadd.f32 0.0, %v2862
    %v2864 = vpop.f32.mrb[0].mxu0
    %v2865 = vpop.f32.mrb[0].mxu0
    %v2866 = vpop.f32.mrb[0].mxu0
    %2867 = vdwg.mxu0
    %2868 = vst.msk [vmem:[#allocation2 + $0x20] sm:$0xff] %vm1847, %v2863
    %2870 = vrot.lane.b32.xlu0 %v2760, 64
    %v2871 = vpop.permute.xlu0 %2870
    %2873 = vrot.lane.b32.xlu0 %v2761, 64
    %v2874 = vpop.permute.xlu0 %2873
    %v2876 = vsel %vm1847, %v2871, 0
    %v2879 = vsel %vm1847, %v2874, 0
    %2881 = vmatprep.subr.bf16.mxu0 0
    %2882 = vmatpush1.bf16.xpose.msra.mxu0 %v2879
    %2883 = vmatprep.subr.bf16.mxu0 0
    %2884 = vmatpush1.bf16.xpose.msra.mxu0 0
    %2885 = vmatprep.subr.bf16.mxu0 0
    %2886 = vmatpush1.bf16.xpose.msra.mxu0 0
    %2887 = vmatprep.subr.bf16.mxu0 0
    %2888 = vmatpush1.bf16.xpose.msra.mxu0 0
    %2889 = vmatprep.subr.bf16.mxu0 0
    %2890 = vmatpush1.bf16.xpose.msra.mxu0 0
    %2891 = vmatprep.subr.bf16.mxu0 0
    %2892 = vmatpush1.bf16.xpose.msra.mxu0 0
    %2893 = vmatprep.subr.bf16.mxu0 0
    %2894 = vmatpush1.bf16.xpose.msra.mxu0 0
    %2895 = vmatprep.subr.bf16.mxu0 0
    %2896 = vmatpush1.bf16.xpose.msra.mxu0 0
    %2897 = vmatprep.subr.bf16.mxu0 0
    %2898 = vmatpush1.bf16.xpose.msra.mxu0 0
    %2899 = vmatprep.subr.bf16.mxu0 0
    %2900 = vmatpush1.bf16.xpose.msra.mxu0 0
    %2901 = vmatprep.subr.bf16.mxu0 0
    %2902 = vmatpush1.bf16.xpose.msra.mxu0 0
    %2903 = vmatprep.subr.bf16.mxu0 0
    %2904 = vmatpush1.bf16.xpose.msra.mxu0 0
    %2905 = vmatprep.subr.bf16.mxu0 0
    %2906 = vmatpush1.bf16.xpose.msra.mxu0 0
    %2907 = vmatprep.subr.bf16.mxu0 0
    %2908 = vmatpush1.bf16.xpose.msra.mxu0 0
    %2909 = vmatprep.subr.bf16.mxu0 0
    %2910 = vmatpush1.bf16.xpose.msra.mxu0 0
    %2911 = vmatprep.subr.bf16.mxu0 0
    %2912 = vmatpush1.bf16.xpose.msra.mxu0 0
    %2913 = vmatprep.mubr.bf16.mxu0 0
    %2914 = vmatmul.mubr.bf16.gmra.mrb[0].mxu0 %v2876
    %v2915 = vpop.f32.mrb[0].mxu0
    %v2916 = vadd.f32 0.0, %v2915
    %v2917 = vpop.f32.mrb[0].mxu0
    %v2918 = vpop.f32.mrb[0].mxu0
    %v2919 = vpop.f32.mrb[0].mxu0
    %2920 = vdwg.mxu0
    %v2921 = vsel %vm1843, %v2916, -1e+30
    %v2922 = vsel %vm1895, %v2921, -inf
    %2923 = vmax.xlane.f32.xlu0 %v2922
    %v2924 = vpop.xlane.xlu0 %2923
    %v2925 = vsub.f32 %v2921, %v2924
    %v2926 = vmul.f32 %v2925, 1.442695
    %v2927 = vpow.pop %v2926
    %v2928 = vsel %vm1895, %v2927, 0.0
    %2929 = vadd.xlane.f32.xlu0 %v2928
    %v2930 = vpop.xlane.xlu0 %2929
    %v2931 = vrcp.pop %v2930
    %v2932 = vmul.f32 %v2927, %v2931
    %v2933 = vpack.c.bf16 %v2932, %v2932
    %2935 = vrot.lane.b32.xlu0 %v2762, 64
    %v2936 = vpop.permute.xlu0 %2935
    %v2938 = vsel %vm1895, %v2933, 0
    %v2941 = vsel %vm1911, %v2936, 0
    %2943 = vmatprep.subr.bf16.mxu0 0
    %2944 = vmatpush1.bf16.msra.mxu0 %v2941
    %2945 = vmatprep.subr.bf16.mxu0 0
    %2946 = vmatpush1.bf16.msra.mxu0 0
    %2947 = vmatprep.subr.bf16.mxu0 0
    %2948 = vmatpush1.bf16.msra.mxu0 0
    %2949 = vmatprep.subr.bf16.mxu0 0
    %2950 = vmatpush1.bf16.msra.mxu0 0
    %2951 = vmatprep.subr.bf16.mxu0 0
    %2952 = vmatpush1.bf16.msra.mxu0 0
    %2953 = vmatprep.subr.bf16.mxu0 0
    %2954 = vmatpush1.bf16.msra.mxu0 0
    %2955 = vmatprep.subr.bf16.mxu0 0
    %2956 = vmatpush1.bf16.msra.mxu0 0
    %2957 = vmatprep.subr.bf16.mxu0 0
    %2958 = vmatpush1.bf16.msra.mxu0 0
    %2959 = vmatprep.subr.bf16.mxu0 0
    %2960 = vmatpush1.bf16.msra.mxu0 0
    %2961 = vmatprep.subr.bf16.mxu0 0
    %2962 = vmatpush1.bf16.msra.mxu0 0
    %2963 = vmatprep.subr.bf16.mxu0 0
    %2964 = vmatpush1.bf16.msra.mxu0 0
    %2965 = vmatprep.subr.bf16.mxu0 0
    %2966 = vmatpush1.bf16.msra.mxu0 0
    %2967 = vmatprep.subr.bf16.mxu0 0
    %2968 = vmatpush1.bf16.msra.mxu0 0
    %2969 = vmatprep.subr.bf16.mxu0 0
    %2970 = vmatpush1.bf16.msra.mxu0 0
    %2971 = vmatprep.subr.bf16.mxu0 0
    %2972 = vmatpush1.bf16.msra.mxu0 0
    %2973 = vmatprep.subr.bf16.mxu0 0
    %2974 = vmatpush1.bf16.msra.mxu0 0
    %2975 = vmatprep.mubr.bf16.mxu0 0
    %2976 = vmatmul.mubr.bf16.gmra.mrb[0].mxu0 %v2938
    %v2977 = vpop.f32.mrb[0].mxu0
    %v2978 = vadd.f32 0.0, %v2977
    %v2979 = vpop.f32.mrb[0].mxu0
    %v2980 = vpop.f32.mrb[0].mxu0
    %v2981 = vpop.f32.mrb[0].mxu0
    %2982 = vdwg.mxu0
    %2984 = vrot.lane.b32.xlu0 %v2978, 64
    %v2985 = vpop.permute.xlu0 %2984
    %2987 = vst.msk [vmem:[#allocation2 + $0x20] sm:$0xff] %vm2074, %v2985
    %v2988 = vpack.c.bf16 %v1581, %v1581
    %v2989 = vpack.c.bf16 %v1669, %v1669
    %v2990 = vpack.c.bf16 %v1836, %v1836
    %v2992 = vsel %vm1847, %v2988, 0
    %v2995 = vsel %vm1847, %v2989, 0
    %2997 = vmatprep.subr.bf16.mxu0 0
    %2998 = vmatpush1.bf16.xpose.msra.mxu0 %v2995
    %2999 = vmatprep.subr.bf16.mxu0 0
    %3000 = vmatpush1.bf16.xpose.msra.mxu0 0
    %3001 = vmatprep.subr.bf16.mxu0 0
    %3002 = vmatpush1.bf16.xpose.msra.mxu0 0
    %3003 = vmatprep.subr.bf16.mxu0 0
    %3004 = vmatpush1.bf16.xpose.msra.mxu0 0
    %3005 = vmatprep.subr.bf16.mxu0 0
    %3006 = vmatpush1.bf16.xpose.msra.mxu0 0
    %3007 = vmatprep.subr.bf16.mxu0 0
    %3008 = vmatpush1.bf16.xpose.msra.mxu0 0
    %3009 = vmatprep.subr.bf16.mxu0 0
    %3010 = vmatpush1.bf16.xpose.msra.mxu0 0
    %3011 = vmatprep.subr.bf16.mxu0 0
    %3012 = vmatpush1.bf16.xpose.msra.mxu0 0
    %3013 = vmatprep.subr.bf16.mxu0 0
    %3014 = vmatpush1.bf16.xpose.msra.mxu0 0
    %3015 = vmatprep.subr.bf16.mxu0 0
    %3016 = vmatpush1.bf16.xpose.msra.mxu0 0
    %3017 = vmatprep.subr.bf16.mxu0 0
    %3018 = vmatpush1.bf16.xpose.msra.mxu0 0
    %3019 = vmatprep.subr.bf16.mxu0 0
    %3020 = vmatpush1.bf16.xpose.msra.mxu0 0
    %3021 = vmatprep.subr.bf16.mxu0 0
    %3022 = vmatpush1.bf16.xpose.msra.mxu0 0
    %3023 = vmatprep.subr.bf16.mxu0 0
    %3024 = vmatpush1.bf16.xpose.msra.mxu0 0
    %3025 = vmatprep.subr.bf16.mxu0 0
    %3026 = vmatpush1.bf16.xpose.msra.mxu0 0
    %3027 = vmatprep.subr.bf16.mxu0 0
    %3028 = vmatpush1.bf16.xpose.msra.mxu0 0
    %3029 = vmatprep.mubr.bf16.mxu0 0
    %3030 = vmatmul.mubr.bf16.gmra.mrb[0].mxu0 %v2992
    %v3031 = vpop.f32.mrb[0].mxu0
    %v3032 = vadd.f32 0.0, %v3031
    %v3033 = vpop.f32.mrb[0].mxu0
    %v3034 = vpop.f32.mrb[0].mxu0
    %v3035 = vpop.f32.mrb[0].mxu0
    %3036 = vdwg.mxu0
    %v3037 = vsel %vm1843, %v3032, -1e+30
    %v3038 = vsel %vm1895, %v3037, -inf
    %3039 = vmax.xlane.f32.xlu0 %v3038
    %v3040 = vpop.xlane.xlu0 %3039
    %v3041 = vsub.f32 %v3037, %v3040
    %v3042 = vmul.f32 %v3041, 1.442695
    %v3043 = vpow.pop %v3042
    %v3044 = vsel %vm1895, %v3043, 0.0
    %3045 = vadd.xlane.f32.xlu0 %v3044
    %v3046 = vpop.xlane.xlu0 %3045
    %v3047 = vrcp.pop %v3046
    %v3048 = vmul.f32 %v3043, %v3047
    %v3049 = vpack.c.bf16 %v3048, %v3048
    %v3051 = vsel %vm1895, %v3049, 0
    %v3054 = vsel %vm1911, %v2990, 0
    %3056 = vmatprep.subr.bf16.mxu0 0
    %3057 = vmatpush1.bf16.msra.mxu0 %v3054
    %3058 = vmatprep.subr.bf16.mxu0 0
    %3059 = vmatpush1.bf16.msra.mxu0 0
    %3060 = vmatprep.subr.bf16.mxu0 0
    %3061 = vmatpush1.bf16.msra.mxu0 0
    %3062 = vmatprep.subr.bf16.mxu0 0
    %3063 = vmatpush1.bf16.msra.mxu0 0
    %3064 = vmatprep.subr.bf16.mxu0 0
    %3065 = vmatpush1.bf16.msra.mxu0 0
    %3066 = vmatprep.subr.bf16.mxu0 0
    %3067 = vmatpush1.bf16.msra.mxu0 0
    %3068 = vmatprep.subr.bf16.mxu0 0
    %3069 = vmatpush1.bf16.msra.mxu0 0
    %3070 = vmatprep.subr.bf16.mxu0 0
    %3071 = vmatpush1.bf16.msra.mxu0 0
    %3072 = vmatprep.subr.bf16.mxu0 0
    %3073 = vmatpush1.bf16.msra.mxu0 0
    %3074 = vmatprep.subr.bf16.mxu0 0
    %3075 = vmatpush1.bf16.msra.mxu0 0
    %3076 = vmatprep.subr.bf16.mxu0 0
    %3077 = vmatpush1.bf16.msra.mxu0 0
    %3078 = vmatprep.subr.bf16.mxu0 0
    %3079 = vmatpush1.bf16.msra.mxu0 0
    %3080 = vmatprep.subr.bf16.mxu0 0
    %3081 = vmatpush1.bf16.msra.mxu0 0
    %3082 = vmatprep.subr.bf16.mxu0 0
    %3083 = vmatpush1.bf16.msra.mxu0 0
    %3084 = vmatprep.subr.bf16.mxu0 0
    %3085 = vmatpush1.bf16.msra.mxu0 0
    %3086 = vmatprep.subr.bf16.mxu0 0
    %3087 = vmatpush1.bf16.msra.mxu0 0
    %3088 = vmatprep.mubr.bf16.mxu0 0
    %3089 = vmatmul.mubr.bf16.gmra.mrb[0].mxu0 %v3051
    %v3090 = vpop.f32.mrb[0].mxu0
    %v3091 = vadd.f32 0.0, %v3090
    %v3092 = vpop.f32.mrb[0].mxu0
    %v3093 = vpop.f32.mrb[0].mxu0
    %v3094 = vpop.f32.mrb[0].mxu0
    %3095 = vdwg.mxu0
    %3096 = vst.msk [vmem:[#allocation2 + $0x28] sm:$0xff] %vm1847, %v3091
    %3098 = vrot.lane.b32.xlu0 %v2988, 64
    %v3099 = vpop.permute.xlu0 %3098
    %3101 = vrot.lane.b32.xlu0 %v2989, 64
    %v3102 = vpop.permute.xlu0 %3101
    %v3104 = vsel %vm1847, %v3099, 0
    %v3107 = vsel %vm1847, %v3102, 0
    %3109 = vmatprep.subr.bf16.mxu0 0
    %3110 = vmatpush1.bf16.xpose.msra.mxu0 %v3107
    %3111 = vmatprep.subr.bf16.mxu0 0
    %3112 = vmatpush1.bf16.xpose.msra.mxu0 0
    %3113 = vmatprep.subr.bf16.mxu0 0
    %3114 = vmatpush1.bf16.xpose.msra.mxu0 0
    %3115 = vmatprep.subr.bf16.mxu0 0
    %3116 = vmatpush1.bf16.xpose.msra.mxu0 0
    %3117 = vmatprep.subr.bf16.mxu0 0
    %3118 = vmatpush1.bf16.xpose.msra.mxu0 0
    %3119 = vmatprep.subr.bf16.mxu0 0
    %3120 = vmatpush1.bf16.xpose.msra.mxu0 0
    %3121 = vmatprep.subr.bf16.mxu0 0
    %3122 = vmatpush1.bf16.xpose.msra.mxu0 0
    %3123 = vmatprep.subr.bf16.mxu0 0
    %3124 = vmatpush1.bf16.xpose.msra.mxu0 0
    %3125 = vmatprep.subr.bf16.mxu0 0
    %3126 = vmatpush1.bf16.xpose.msra.mxu0 0
    %3127 = vmatprep.subr.bf16.mxu0 0
    %3128 = vmatpush1.bf16.xpose.msra.mxu0 0
    %3129 = vmatprep.subr.bf16.mxu0 0
    %3130 = vmatpush1.bf16.xpose.msra.mxu0 0
    %3131 = vmatprep.subr.bf16.mxu0 0
    %3132 = vmatpush1.bf16.xpose.msra.mxu0 0
    %3133 = vmatprep.subr.bf16.mxu0 0
    %3134 = vmatpush1.bf16.xpose.msra.mxu0 0
    %3135 = vmatprep.subr.bf16.mxu0 0
    %3136 = vmatpush1.bf16.xpose.msra.mxu0 0
    %3137 = vmatprep.subr.bf16.mxu0 0
    %3138 = vmatpush1.bf16.xpose.msra.mxu0 0
    %3139 = vmatprep.subr.bf16.mxu0 0
    %3140 = vmatpush1.bf16.xpose.msra.mxu0 0
    %3141 = vmatprep.mubr.bf16.mxu0 0
    %3142 = vmatmul.mubr.bf16.gmra.mrb[0].mxu0 %v3104
    %v3143 = vpop.f32.mrb[0].mxu0
    %v3144 = vadd.f32 0.0, %v3143
    %v3145 = vpop.f32.mrb[0].mxu0
    %v3146 = vpop.f32.mrb[0].mxu0
    %v3147 = vpop.f32.mrb[0].mxu0
    %3148 = vdwg.mxu0
    %v3149 = vsel %vm1843, %v3144, -1e+30
    %v3150 = vsel %vm1895, %v3149, -inf
    %3151 = vmax.xlane.f32.xlu0 %v3150
    %v3152 = vpop.xlane.xlu0 %3151
    %v3153 = vsub.f32 %v3149, %v3152
    %v3154 = vmul.f32 %v3153, 1.442695
    %v3155 = vpow.pop %v3154
    %v3156 = vsel %vm1895, %v3155, 0.0
    %3157 = vadd.xlane.f32.xlu0 %v3156
    %v3158 = vpop.xlane.xlu0 %3157
    %v3159 = vrcp.pop %v3158
    %v3160 = vmul.f32 %v3155, %v3159
    %v3161 = vpack.c.bf16 %v3160, %v3160
    %3163 = vrot.lane.b32.xlu0 %v2990, 64
    %v3164 = vpop.permute.xlu0 %3163
    %v3166 = vsel %vm1895, %v3161, 0
    %v3169 = vsel %vm1911, %v3164, 0
    %3171 = vmatprep.subr.bf16.mxu0 0
    %3172 = vmatpush1.bf16.msra.mxu0 %v3169
    %3173 = vmatprep.subr.bf16.mxu0 0
    %3174 = vmatpush1.bf16.msra.mxu0 0
    %3175 = vmatprep.subr.bf16.mxu0 0
    %3176 = vmatpush1.bf16.msra.mxu0 0
    %3177 = vmatprep.subr.bf16.mxu0 0
    %3178 = vmatpush1.bf16.msra.mxu0 0
    %3179 = vmatprep.subr.bf16.mxu0 0
    %3180 = vmatpush1.bf16.msra.mxu0 0
    %3181 = vmatprep.subr.bf16.mxu0 0
    %3182 = vmatpush1.bf16.msra.mxu0 0
    %3183 = vmatprep.subr.bf16.mxu0 0
    %3184 = vmatpush1.bf16.msra.mxu0 0
    %3185 = vmatprep.subr.bf16.mxu0 0
    %3186 = vmatpush1.bf16.msra.mxu0 0
    %3187 = vmatprep.subr.bf16.mxu0 0
    %3188 = vmatpush1.bf16.msra.mxu0 0
    %3189 = vmatprep.subr.bf16.mxu0 0
    %3190 = vmatpush1.bf16.msra.mxu0 0
    %3191 = vmatprep.subr.bf16.mxu0 0
    %3192 = vmatpush1.bf16.msra.mxu0 0
    %3193 = vmatprep.subr.bf16.mxu0 0
    %3194 = vmatpush1.bf16.msra.mxu0 0
    %3195 = vmatprep.subr.bf16.mxu0 0
    %3196 = vmatpush1.bf16.msra.mxu0 0
    %3197 = vmatprep.subr.bf16.mxu0 0
    %3198 = vmatpush1.bf16.msra.mxu0 0
    %3199 = vmatprep.subr.bf16.mxu0 0
    %3200 = vmatpush1.bf16.msra.mxu0 0
    %3201 = vmatprep.subr.bf16.mxu0 0
    %3202 = vmatpush1.bf16.msra.mxu0 0
    %3203 = vmatprep.mubr.bf16.mxu0 0
    %3204 = vmatmul.mubr.bf16.gmra.mrb[0].mxu0 %v3166
    %v3205 = vpop.f32.mrb[0].mxu0
    %v3206 = vadd.f32 0.0, %v3205
    %v3207 = vpop.f32.mrb[0].mxu0
    %v3208 = vpop.f32.mrb[0].mxu0
    %v3209 = vpop.f32.mrb[0].mxu0
    %3210 = vdwg.mxu0
    %3212 = vrot.lane.b32.xlu0 %v3206, 64
    %v3213 = vpop.permute.xlu0 %3212
    %3215 = vst.msk [vmem:[#allocation2 + $0x28] sm:$0xff] %vm2074, %v3213
    %v3216 = vld [vmem:[#allocation2] sm:$0xff]
    %v3217 = vld [vmem:[#allocation2 + $0x8] sm:$0xff]
    %v3218 = vld [vmem:[#allocation2 + $0x10] sm:$0xff]
    %v3219 = vld [vmem:[#allocation2 + $0x18] sm:$0xff]
    %v3220 = vld [vmem:[#allocation2 + $0x20] sm:$0xff]
    %v3221 = vld [vmem:[#allocation2 + $0x28] sm:$0xff]
    %v3222 = vpack.c.bf16 %v3219, %v3216
    %v3223 = vpack.c.bf16 %v3220, %v3217
    %v3224 = vpack.c.bf16 %v3221, %v3218
    %v3225 = vld [vmem:[#allocation8] sm:$0xff]
    %v3226 = vld [vmem:[#allocation8 + $0x8] sm:$0xf]
    %v3227 = vld [vmem:[#allocation8 + $0xc] sm:$0xff]
    %v3228 = vld [vmem:[#allocation8 + $0x14] sm:$0xf]
    %v3229 = vld [vmem:[#allocation8 + $0x18] sm:$0xff]
    %v3230 = vld [vmem:[#allocation8 + $0x20] sm:$0xf]
    %v3231 = vld [vmem:[#allocation8 + $0x24] sm:$0xff]
    %v3232 = vld [vmem:[#allocation8 + $0x2c] sm:$0xf]
    %v3233 = vld [vmem:[#allocation8 + $0x30] sm:$0xff]
    %v3234 = vld [vmem:[#allocation8 + $0x38] sm:$0xf]
    %v3235 = vld [vmem:[#allocation8 + $0x3c] sm:$0xff]
    %v3236 = vld [vmem:[#allocation8 + $0x44] sm:$0xf]
    %v3237 = vld [vmem:[#allocation8 + $0x48] sm:$0xff]
    %v3238 = vld [vmem:[#allocation8 + $0x50] sm:$0xf]
    %v3239 = vld [vmem:[#allocation8 + $0x54] sm:$0xff]
    %v3240 = vld [vmem:[#allocation8 + $0x5c] sm:$0xf]
    %v3241 = vld [vmem:[#allocation8 + $0x60] sm:$0xff]
    %v3242 = vld [vmem:[#allocation8 + $0x68] sm:$0xf]
    %v3243 = vld [vmem:[#allocation8 + $0x6c] sm:$0xff]
    %v3244 = vld [vmem:[#allocation8 + $0x74] sm:$0xf]
    %v3245 = vld [vmem:[#allocation8 + $0x78] sm:$0xff]
    %v3246 = vld [vmem:[#allocation8 + $0x80] sm:$0xf]
    %v3247 = vld [vmem:[#allocation8 + $0x84] sm:$0xff]
    %v3248 = vld [vmem:[#allocation8 + $0x8c] sm:$0xf]
    %v3249 = vld [vmem:[#allocation8 + $0x90] sm:$0xff]
    %v3250 = vld [vmem:[#allocation8 + $0x98] sm:$0xf]
    %v3251 = vld [vmem:[#allocation8 + $0x9c] sm:$0xff]
    %v3252 = vld [vmem:[#allocation8 + $0xa4] sm:$0xf]
    %v3253 = vld [vmem:[#allocation8 + $0xa8] sm:$0xff]
    %v3254 = vld [vmem:[#allocation8 + $0xb0] sm:$0xf]
    %v3255 = vld [vmem:[#allocation8 + $0xb4] sm:$0xff]
    %v3256 = vld [vmem:[#allocation8 + $0xbc] sm:$0xf]
    %v3257 = vld [vmem:[#allocation8 + $0xc0] sm:$0xff]
    %v3258 = vld [vmem:[#allocation8 + $0xc8] sm:$0xf]
    %v3259 = vld [vmem:[#allocation8 + $0xcc] sm:$0xff]
    %v3260 = vld [vmem:[#allocation8 + $0xd4] sm:$0xf]
    %v3261 = vld [vmem:[#allocation8 + $0xd8] sm:$0xff]
    %v3262 = vld [vmem:[#allocation8 + $0xe0] sm:$0xf]
    %v3263 = vld [vmem:[#allocation8 + $0xe4] sm:$0xff]
    %v3264 = vld [vmem:[#allocation8 + $0xec] sm:$0xf]
    %v3265 = vld [vmem:[#allocation8 + $0xf0] sm:$0xff]
    %v3266 = vld [vmem:[#allocation8 + $0xf8] sm:$0xf]
    %v3267 = vld [vmem:[#allocation8 + $0xfc] sm:$0xff]
    %v3268 = vld [vmem:[#allocation8 + $0x104] sm:$0xf]
    %v3269 = vld [vmem:[#allocation8 + $0x108] sm:$0xff]
    %v3270 = vld [vmem:[#allocation8 + $0x110] sm:$0xf]
    %v3271 = vld [vmem:[#allocation8 + $0x114] sm:$0xff]
    %v3272 = vld [vmem:[#allocation8 + $0x11c] sm:$0xf]
    %v3273 = vld [vmem:[#allocation8 + $0x120] sm:$0xff]
    %v3274 = vld [vmem:[#allocation8 + $0x128] sm:$0xf]
    %v3275 = vld [vmem:[#allocation8 + $0x12c] sm:$0xff]
    %v3276 = vld [vmem:[#allocation8 + $0x134] sm:$0xf]
    %v3277 = vld [vmem:[#allocation8 + $0x138] sm:$0xff]
    %v3278 = vld [vmem:[#allocation8 + $0x140] sm:$0xf]
    %v3279 = vld [vmem:[#allocation8 + $0x144] sm:$0xff]
    %v3280 = vld [vmem:[#allocation8 + $0x14c] sm:$0xf]
    %v3281 = vld [vmem:[#allocation8 + $0x150] sm:$0xff]
    %v3282 = vld [vmem:[#allocation8 + $0x158] sm:$0xf]
    %v3283 = vld [vmem:[#allocation8 + $0x15c] sm:$0xff]
    %v3284 = vld [vmem:[#allocation8 + $0x164] sm:$0xf]
    %v3285 = vld [vmem:[#allocation8 + $0x168] sm:$0xff]
    %v3286 = vld [vmem:[#allocation8 + $0x170] sm:$0xf]
    %v3287 = vld [vmem:[#allocation8 + $0x174] sm:$0xff]
    %v3288 = vld [vmem:[#allocation8 + $0x17c] sm:$0xf]
    %v3289 = vld [vmem:[#allocation8 + $0x180] sm:$0xff]
    %v3290 = vld [vmem:[#allocation8 + $0x188] sm:$0xf]
    %v3291 = vld [vmem:[#allocation8 + $0x18c] sm:$0xff]
    %v3292 = vld [vmem:[#allocation8 + $0x194] sm:$0xf]
    %v3293 = vld [vmem:[#allocation8 + $0x198] sm:$0xff]
    %v3294 = vld [vmem:[#allocation8 + $0x1a0] sm:$0xf]
    %v3295 = vld [vmem:[#allocation8 + $0x1a4] sm:$0xff]
    %v3296 = vld [vmem:[#allocation8 + $0x1ac] sm:$0xf]
    %v3297 = vld [vmem:[#allocation8 + $0x1b0] sm:$0xff]
    %v3298 = vld [vmem:[#allocation8 + $0x1b8] sm:$0xf]
    %v3299 = vld [vmem:[#allocation8 + $0x1bc] sm:$0xff]
    %v3300 = vld [vmem:[#allocation8 + $0x1c4] sm:$0xf]
    %v3301 = vld [vmem:[#allocation8 + $0x1c8] sm:$0xff]
    %v3302 = vld [vmem:[#allocation8 + $0x1d0] sm:$0xf]
    %v3303 = vld [vmem:[#allocation8 + $0x1d4] sm:$0xff]
    %v3304 = vld [vmem:[#allocation8 + $0x1dc] sm:$0xf]
    %v3305 = vld [vmem:[#allocation8 + $0x1e0] sm:$0xff]
    %v3306 = vld [vmem:[#allocation8 + $0x1e8] sm:$0xf]
    %v3307 = vld [vmem:[#allocation8 + $0x1ec] sm:$0xff]
    %v3308 = vld [vmem:[#allocation8 + $0x1f4] sm:$0xf]
    %v3309 = vld [vmem:[#allocation8 + $0x1f8] sm:$0xff]
    %v3310 = vld [vmem:[#allocation8 + $0x200] sm:$0xf]
    %v3311 = vld [vmem:[#allocation8 + $0x204] sm:$0xff]
    %v3312 = vld [vmem:[#allocation8 + $0x20c] sm:$0xf]
    %v3313 = vld [vmem:[#allocation8 + $0x210] sm:$0xff]
    %v3314 = vld [vmem:[#allocation8 + $0x218] sm:$0xf]
    %v3315 = vld [vmem:[#allocation8 + $0x21c] sm:$0xff]
    %v3316 = vld [vmem:[#allocation8 + $0x224] sm:$0xf]
    %v3317 = vld [vmem:[#allocation8 + $0x228] sm:$0xff]
    %v3318 = vld [vmem:[#allocation8 + $0x230] sm:$0xf]
    %v3319 = vld [vmem:[#allocation8 + $0x234] sm:$0xff]
    %v3320 = vld [vmem:[#allocation8 + $0x23c] sm:$0xf]
    %v3321 = vld [vmem:[%s3] sm:$0x7]
    %v3323 = vlaneseq
    %v3324 = vshrl.u32 %v3323, 7
    %v3325 = vsub.s32 0, %v3324
    %v3326 = vrot.slane %v3321, %v3325
    %v3327 = vlaneseq
    %v3328 = vshrl.u32 %v3327, 7
    %v3329 = vsub.s32 1, %v3328
    %v3330 = vrot.slane %v3321, %v3329
    %v3331 = vlaneseq
    %v3332 = vshrl.u32 %v3331, 7
    %v3333 = vsub.s32 2, %v3332
    %v3334 = vrot.slane %v3321, %v3333
    %v3434 = vunpack.c.l.b16 %v3225
    %v3435 = vunpack.c.h.b16 %v3225
    %v3436 = vunpack.c.l.b16 %v3226
    %v3437 = vunpack.c.l.b16 %v3227
    %v3438 = vunpack.c.h.b16 %v3227
    %v3439 = vunpack.c.l.b16 %v3228
    %v3440 = vunpack.c.l.b16 %v3229
    %v3441 = vunpack.c.h.b16 %v3229
    %v3442 = vunpack.c.l.b16 %v3230
    %v3443 = vunpack.c.l.b16 %v3231
    %v3444 = vunpack.c.h.b16 %v3231
    %v3445 = vunpack.c.l.b16 %v3232
    %v3446 = vunpack.c.l.b16 %v3233
    %v3447 = vunpack.c.h.b16 %v3233
    %v3448 = vunpack.c.l.b16 %v3234
    %v3449 = vunpack.c.l.b16 %v3235
    %v3450 = vunpack.c.h.b16 %v3235
    %v3451 = vunpack.c.l.b16 %v3236
    %v3452 = vunpack.c.l.b16 %v3237
    %v3453 = vunpack.c.h.b16 %v3237
    %v3454 = vunpack.c.l.b16 %v3238
    %v3455 = vunpack.c.l.b16 %v3239
    %v3456 = vunpack.c.h.b16 %v3239
    %v3457 = vunpack.c.l.b16 %v3240
    %v3458 = vunpack.c.l.b16 %v3241
    %v3459 = vunpack.c.h.b16 %v3241
    %v3460 = vunpack.c.l.b16 %v3242
    %v3461 = vunpack.c.l.b16 %v3243
    %v3462 = vunpack.c.h.b16 %v3243
    %v3463 = vunpack.c.l.b16 %v3244
    %v3464 = vunpack.c.l.b16 %v3245
    %v3465 = vunpack.c.h.b16 %v3245
    %v3466 = vunpack.c.l.b16 %v3246
    %v3467 = vunpack.c.l.b16 %v3247
    %v3468 = vunpack.c.h.b16 %v3247
    %v3469 = vunpack.c.l.b16 %v3248
    %v3470 = vunpack.c.l.b16 %v3249
    %v3471 = vunpack.c.h.b16 %v3249
    %v3472 = vunpack.c.l.b16 %v3250
    %v3473 = vunpack.c.l.b16 %v3251
    %v3474 = vunpack.c.h.b16 %v3251
    %v3475 = vunpack.c.l.b16 %v3252
    %v3476 = vunpack.c.l.b16 %v3253
    %v3477 = vunpack.c.h.b16 %v3253
    %v3478 = vunpack.c.l.b16 %v3254
    %v3479 = vunpack.c.l.b16 %v3255
    %v3480 = vunpack.c.h.b16 %v3255
    %v3481 = vunpack.c.l.b16 %v3256
    %v3482 = vunpack.c.l.b16 %v3257
    %v3483 = vunpack.c.h.b16 %v3257
    %v3484 = vunpack.c.l.b16 %v3258
    %v3485 = vunpack.c.l.b16 %v3259
    %v3486 = vunpack.c.h.b16 %v3259
    %v3487 = vunpack.c.l.b16 %v3260
    %v3488 = vunpack.c.l.b16 %v3261
    %v3489 = vunpack.c.h.b16 %v3261
    %v3490 = vunpack.c.l.b16 %v3262
    %v3491 = vunpack.c.l.b16 %v3263
    %v3492 = vunpack.c.h.b16 %v3263
    %v3493 = vunpack.c.l.b16 %v3264
    %v3494 = vunpack.c.l.b16 %v3265
    %v3495 = vunpack.c.h.b16 %v3265
    %v3496 = vunpack.c.l.b16 %v3266
    %v3497 = vunpack.c.l.b16 %v3267
    %v3498 = vunpack.c.h.b16 %v3267
    %v3499 = vunpack.c.l.b16 %v3268
    %v3500 = vunpack.c.l.b16 %v3269
    %v3501 = vunpack.c.h.b16 %v3269
    %v3502 = vunpack.c.l.b16 %v3270
    %v3503 = vunpack.c.l.b16 %v3271
    %v3504 = vunpack.c.h.b16 %v3271
    %v3505 = vunpack.c.l.b16 %v3272
    %v3506 = vunpack.c.l.b16 %v3273
    %v3507 = vunpack.c.h.b16 %v3273
    %v3508 = vunpack.c.l.b16 %v3274
    %v3509 = vunpack.c.l.b16 %v3275
    %v3510 = vunpack.c.h.b16 %v3275
    %v3511 = vunpack.c.l.b16 %v3276
    %v3512 = vunpack.c.l.b16 %v3277
    %v3513 = vunpack.c.h.b16 %v3277
    %v3514 = vunpack.c.l.b16 %v3278
    %v3515 = vunpack.c.l.b16 %v3279
    %v3516 = vunpack.c.h.b16 %v3279
    %v3517 = vunpack.c.l.b16 %v3280
    %v3518 = vunpack.c.l.b16 %v3281
    %v3519 = vunpack.c.h.b16 %v3281
    %v3520 = vunpack.c.l.b16 %v3282
    %v3521 = vunpack.c.l.b16 %v3283
    %v3522 = vunpack.c.h.b16 %v3283
    %v3523 = vunpack.c.l.b16 %v3284
    %v3524 = vunpack.c.l.b16 %v3285
    %v3525 = vunpack.c.h.b16 %v3285
    %v3526 = vunpack.c.l.b16 %v3286
    %v3527 = vunpack.c.l.b16 %v3287
    %v3528 = vunpack.c.h.b16 %v3287
    %v3529 = vunpack.c.l.b16 %v3288
    %v3530 = vunpack.c.l.b16 %v3289
    %v3531 = vunpack.c.h.b16 %v3289
    %v3532 = vunpack.c.l.b16 %v3290
    %v3533 = vunpack.c.l.b16 %v3291
    %v3534 = vunpack.c.h.b16 %v3291
    %v3535 = vunpack.c.l.b16 %v3292
    %v3536 = vunpack.c.l.b16 %v3293
    %v3537 = vunpack.c.h.b16 %v3293
    %v3538 = vunpack.c.l.b16 %v3294
    %v3539 = vunpack.c.l.b16 %v3295
    %v3540 = vunpack.c.h.b16 %v3295
    %v3541 = vunpack.c.l.b16 %v3296
    %v3542 = vunpack.c.l.b16 %v3297
    %v3543 = vunpack.c.h.b16 %v3297
    %v3544 = vunpack.c.l.b16 %v3298
    %v3545 = vunpack.c.l.b16 %v3299
    %v3546 = vunpack.c.h.b16 %v3299
    %v3547 = vunpack.c.l.b16 %v3300
    %v3548 = vunpack.c.l.b16 %v3301
    %v3549 = vunpack.c.h.b16 %v3301
    %v3550 = vunpack.c.l.b16 %v3302
    %v3551 = vunpack.c.l.b16 %v3303
    %v3552 = vunpack.c.h.b16 %v3303
    %v3553 = vunpack.c.l.b16 %v3304
    %v3554 = vunpack.c.l.b16 %v3305
    %v3555 = vunpack.c.h.b16 %v3305
    %v3556 = vunpack.c.l.b16 %v3306
    %v3557 = vunpack.c.l.b16 %v3307
    %v3558 = vunpack.c.h.b16 %v3307
    %v3559 = vunpack.c.l.b16 %v3308
    %v3560 = vunpack.c.l.b16 %v3309
    %v3561 = vunpack.c.h.b16 %v3309
    %v3562 = vunpack.c.l.b16 %v3310
    %v3563 = vunpack.c.l.b16 %v3311
    %v3564 = vunpack.c.h.b16 %v3311
    %v3565 = vunpack.c.l.b16 %v3312
    %v3566 = vunpack.c.l.b16 %v3313
    %v3567 = vunpack.c.h.b16 %v3313
    %v3568 = vunpack.c.l.b16 %v3314
    %v3569 = vunpack.c.l.b16 %v3315
    %v3570 = vunpack.c.h.b16 %v3315
    %v3571 = vunpack.c.l.b16 %v3316
    %v3572 = vunpack.c.l.b16 %v3317
    %v3573 = vunpack.c.h.b16 %v3317
    %v3574 = vunpack.c.l.b16 %v3318
    %v3575 = vunpack.c.l.b16 %v3319
    %v3576 = vunpack.c.h.b16 %v3319
    %v3577 = vunpack.c.l.b16 %v3320
    %v3578 = vpack.c.b16 %v3437, %v3434
    %v3579 = vpack.c.b16 %v3438, %v3435
    %v3580 = vpack.c.b16 %v3439, %v3436
    %v3581 = vpack.c.b16 %v3443, %v3440
    %v3582 = vpack.c.b16 %v3444, %v3441
    %v3583 = vpack.c.b16 %v3445, %v3442
    %v3584 = vpack.c.b16 %v3449, %v3446
    %v3585 = vpack.c.b16 %v3450, %v3447
    %v3586 = vpack.c.b16 %v3451, %v3448
    %v3587 = vpack.c.b16 %v3455, %v3452
    %v3588 = vpack.c.b16 %v3456, %v3453
    %v3589 = vpack.c.b16 %v3457, %v3454
    %v3590 = vpack.c.b16 %v3461, %v3458
    %v3591 = vpack.c.b16 %v3462, %v3459
    %v3592 = vpack.c.b16 %v3463, %v3460
    %v3593 = vpack.c.b16 %v3467, %v3464
    %v3594 = vpack.c.b16 %v3468, %v3465
    %v3595 = vpack.c.b16 %v3469, %v3466
    %v3596 = vpack.c.b16 %v3473, %v3470
    %v3597 = vpack.c.b16 %v3474, %v3471
    %v3598 = vpack.c.b16 %v3475, %v3472
    %v3599 = vpack.c.b16 %v3479, %v3476
    %v3600 = vpack.c.b16 %v3480, %v3477
    %v3601 = vpack.c.b16 %v3481, %v3478
    %v3602 = vpack.c.b16 %v3485, %v3482
    %v3603 = vpack.c.b16 %v3486, %v3483
    %v3604 = vpack.c.b16 %v3487, %v3484
    %v3605 = vpack.c.b16 %v3491, %v3488
    %v3606 = vpack.c.b16 %v3492, %v3489
    %v3607 = vpack.c.b16 %v3493, %v3490
    %v3608 = vpack.c.b16 %v3497, %v3494
    %v3609 = vpack.c.b16 %v3498, %v3495
    %v3610 = vpack.c.b16 %v3499, %v3496
    %v3611 = vpack.c.b16 %v3503, %v3500
    %v3612 = vpack.c.b16 %v3504, %v3501
    %v3613 = vpack.c.b16 %v3505, %v3502
    %v3614 = vpack.c.b16 %v3509, %v3506
    %v3615 = vpack.c.b16 %v3510, %v3507
    %v3616 = vpack.c.b16 %v3511, %v3508
    %v3617 = vpack.c.b16 %v3515, %v3512
    %v3618 = vpack.c.b16 %v3516, %v3513
    %v3619 = vpack.c.b16 %v3517, %v3514
    %v3620 = vpack.c.b16 %v3521, %v3518
    %v3621 = vpack.c.b16 %v3522, %v3519
    %v3622 = vpack.c.b16 %v3523, %v3520
    %v3623 = vpack.c.b16 %v3527, %v3524
    %v3624 = vpack.c.b16 %v3528, %v3525
    %v3625 = vpack.c.b16 %v3529, %v3526
    %v3626 = vpack.c.b16 %v3533, %v3530
    %v3627 = vpack.c.b16 %v3534, %v3531
    %v3628 = vpack.c.b16 %v3535, %v3532
    %v3629 = vpack.c.b16 %v3539, %v3536
    %v3630 = vpack.c.b16 %v3540, %v3537
    %v3631 = vpack.c.b16 %v3541, %v3538
    %v3632 = vpack.c.b16 %v3545, %v3542
    %v3633 = vpack.c.b16 %v3546, %v3543
    %v3634 = vpack.c.b16 %v3547, %v3544
    %v3635 = vpack.c.b16 %v3551, %v3548
    %v3636 = vpack.c.b16 %v3552, %v3549
    %v3637 = vpack.c.b16 %v3553, %v3550
    %v3638 = vpack.c.b16 %v3557, %v3554
    %v3639 = vpack.c.b16 %v3558, %v3555
    %v3640 = vpack.c.b16 %v3559, %v3556
    %v3641 = vpack.c.b16 %v3563, %v3560
    %v3642 = vpack.c.b16 %v3564, %v3561
    %v3643 = vpack.c.b16 %v3565, %v3562
    %v3644 = vpack.c.b16 %v3569, %v3566
    %v3645 = vpack.c.b16 %v3570, %v3567
    %v3646 = vpack.c.b16 %v3571, %v3568
    %v3647 = vpack.c.b16 %v3575, %v3572
    %v3648 = vpack.c.b16 %v3576, %v3573
    %v3649 = vpack.c.b16 %v3577, %v3574
    %3722 = vmatprep.subr.bf16.mxu0 %v3579
    %3723 = vmatpush1.bf16.msra.mxu0 %v3578
    %3724 = vmatprep.subr.bf16.mxu0 %v3582
    %3725 = vmatpush1.bf16.msra.mxu0 %v3581
    %3726 = vmatprep.subr.bf16.mxu0 %v3585
    %3727 = vmatpush1.bf16.msra.mxu0 %v3584
    %3728 = vmatprep.subr.bf16.mxu0 %v3588
    %3729 = vmatpush1.bf16.msra.mxu0 %v3587
    %3730 = vmatprep.subr.bf16.mxu0 %v3591
    %3731 = vmatpush1.bf16.msra.mxu0 %v3590
    %3732 = vmatprep.subr.bf16.mxu0 %v3594
    %3733 = vmatpush1.bf16.msra.mxu0 %v3593
    %3734 = vmatprep.subr.bf16.mxu0 %v3597
    %3735 = vmatpush1.bf16.msra.mxu0 %v3596
    %3736 = vmatprep.subr.bf16.mxu0 %v3600
    %3737 = vmatpush1.bf16.msra.mxu0 %v3599
    %3738 = vmatprep.subr.bf16.mxu0 %v3603
    %3739 = vmatpush1.bf16.msra.mxu0 %v3602
    %3740 = vmatprep.subr.bf16.mxu0 %v3606
    %3741 = vmatpush1.bf16.msra.mxu0 %v3605
    %3742 = vmatprep.subr.bf16.mxu0 %v3609
    %3743 = vmatpush1.bf16.msra.mxu0 %v3608
    %3744 = vmatprep.subr.bf16.mxu0 %v3612
    %3745 = vmatpush1.bf16.msra.mxu0 %v3611
    %3746 = vmatprep.subr.bf16.mxu0 %v3615
    %3747 = vmatpush1.bf16.msra.mxu0 %v3614
    %3748 = vmatprep.subr.bf16.mxu0 %v3618
    %3749 = vmatpush1.bf16.msra.mxu0 %v3617
    %3750 = vmatprep.subr.bf16.mxu0 %v3621
    %3751 = vmatpush1.bf16.msra.mxu0 %v3620
    %3752 = vmatprep.subr.bf16.mxu0 %v3624
    %3753 = vmatpush1.bf16.msra.mxu0 %v3623
    %3754 = vmatprep.mubr.bf16.mxu0 %v3223
    %3755 = vmatmul.mubr.bf16.gmra.mrb[0].mxu0 %v3222
    %v3756 = vpop.f32.mrb[0].mxu0
    %v3757 = vadd.f32 %v3326, %v3756
    %v3758 = vpop.f32.mrb[0].mxu0
    %v3759 = vadd.f32 %v3330, %v3758
    %v3760 = vpop.f32.mrb[0].mxu0
    %v3761 = vadd.f32 %v3326, %v3760
    %v3762 = vpop.f32.mrb[0].mxu0
    %v3763 = vadd.f32 %v3330, %v3762
    %3764 = vdwg.mxu0
    %3765 = vmatprep.subr.bf16.mxu0 %v3627
    %3766 = vmatpush1.bf16.msra.mxu0 %v3626
    %3767 = vmatprep.subr.bf16.mxu0 %v3630
    %3768 = vmatpush1.bf16.msra.mxu0 %v3629
    %3769 = vmatprep.subr.bf16.mxu0 %v3633
    %3770 = vmatpush1.bf16.msra.mxu0 %v3632
    %3771 = vmatprep.subr.bf16.mxu0 %v3636
    %3772 = vmatpush1.bf16.msra.mxu0 %v3635
    %3773 = vmatprep.subr.bf16.mxu0 %v3639
    %3774 = vmatpush1.bf16.msra.mxu0 %v3638
    %3775 = vmatprep.subr.bf16.mxu0 %v3642
    %3776 = vmatpush1.bf16.msra.mxu0 %v3641
    %3777 = vmatprep.subr.bf16.mxu0 %v3645
    %3778 = vmatpush1.bf16.msra.mxu0 %v3644
    %3779 = vmatprep.subr.bf16.mxu0 %v3648
    %3780 = vmatpush1.bf16.msra.mxu0 %v3647
    %3781 = vmatprep.subr.bf16.mxu0 0
    %3782 = vmatpush1.bf16.msra.mxu0 0
    %3783 = vmatprep.subr.bf16.mxu0 0
    %3784 = vmatpush1.bf16.msra.mxu0 0
    %3785 = vmatprep.subr.bf16.mxu0 0
    %3786 = vmatpush1.bf16.msra.mxu0 0
    %3787 = vmatprep.subr.bf16.mxu0 0
    %3788 = vmatpush1.bf16.msra.mxu0 0
    %3789 = vmatprep.subr.bf16.mxu0 0
    %3790 = vmatpush1.bf16.msra.mxu0 0
    %3791 = vmatprep.subr.bf16.mxu0 0
    %3792 = vmatpush1.bf16.msra.mxu0 0
    %3793 = vmatprep.subr.bf16.mxu0 0
    %3794 = vmatpush1.bf16.msra.mxu0 0
    %3795 = vmatprep.subr.bf16.mxu0 0
    %3796 = vmatpush1.bf16.msra.mxu0 0
    %3797 = vmatprep.mubr.bf16.mxu0 0
    %3798 = vmatmul.mubr.bf16.gmra.mrb[0].mxu0 %v3224
    %v3799 = vpop.f32.mrb[0].mxu0
    %v3800 = vadd.f32 %v3757, %v3799
    %v3801 = vpop.f32.mrb[0].mxu0
    %v3802 = vadd.f32 %v3759, %v3801
    %v3803 = vpop.f32.mrb[0].mxu0
    %v3804 = vadd.f32 %v3761, %v3803
    %v3805 = vpop.f32.mrb[0].mxu0
    %v3806 = vadd.f32 %v3763, %v3805
    %3807 = vdwg.mxu0
    %3808 = vmatprep.subr.bf16.mxu0 0
    %3809 = vmatpush1.bf16.msra.mxu0 %v3580
    %3810 = vmatprep.subr.bf16.mxu0 0
    %3811 = vmatpush1.bf16.msra.mxu0 %v3583
    %3812 = vmatprep.subr.bf16.mxu0 0
    %3813 = vmatpush1.bf16.msra.mxu0 %v3586
    %3814 = vmatprep.subr.bf16.mxu0 0
    %3815 = vmatpush1.bf16.msra.mxu0 %v3589
    %3816 = vmatprep.subr.bf16.mxu0 0
    %3817 = vmatpush1.bf16.msra.mxu0 %v3592
    %3818 = vmatprep.subr.bf16.mxu0 0
    %3819 = vmatpush1.bf16.msra.mxu0 %v3595
    %3820 = vmatprep.subr.bf16.mxu0 0
    %3821 = vmatpush1.bf16.msra.mxu0 %v3598
    %3822 = vmatprep.subr.bf16.mxu0 0
    %3823 = vmatpush1.bf16.msra.mxu0 %v3601
    %3824 = vmatprep.subr.bf16.mxu0 0
    %3825 = vmatpush1.bf16.msra.mxu0 %v3604
    %3826 = vmatprep.subr.bf16.mxu0 0
    %3827 = vmatpush1.bf16.msra.mxu0 %v3607
    %3828 = vmatprep.subr.bf16.mxu0 0
    %3829 = vmatpush1.bf16.msra.mxu0 %v3610
    %3830 = vmatprep.subr.bf16.mxu0 0
    %3831 = vmatpush1.bf16.msra.mxu0 %v3613
    %3832 = vmatprep.subr.bf16.mxu0 0
    %3833 = vmatpush1.bf16.msra.mxu0 %v3616
    %3834 = vmatprep.subr.bf16.mxu0 0
    %3835 = vmatpush1.bf16.msra.mxu0 %v3619
    %3836 = vmatprep.subr.bf16.mxu0 0
    %3837 = vmatpush1.bf16.msra.mxu0 %v3622
    %3838 = vmatprep.subr.bf16.mxu0 0
    %3839 = vmatpush1.bf16.msra.mxu0 %v3625
    %3840 = vmatprep.mubr.bf16.mxu0 %v3223
    %3841 = vmatmul.mubr.bf16.gmra.mrb[0].mxu0 %v3222
    %v3842 = vpop.f32.mrb[0].mxu0
    %v3843 = vadd.f32 %v3334, %v3842
    %v3844 = vpop.f32.mrb[0].mxu0
    %v3845 = vpop.f32.mrb[0].mxu0
    %v3846 = vadd.f32 %v3334, %v3845
    %v3847 = vpop.f32.mrb[0].mxu0
    %3848 = vdwg.mxu0
    %3849 = vmatprep.subr.bf16.mxu0 0
    %3850 = vmatpush1.bf16.msra.mxu0 %v3628
    %3851 = vmatprep.subr.bf16.mxu0 0
    %3852 = vmatpush1.bf16.msra.mxu0 %v3631
    %3853 = vmatprep.subr.bf16.mxu0 0
    %3854 = vmatpush1.bf16.msra.mxu0 %v3634
    %3855 = vmatprep.subr.bf16.mxu0 0
    %3856 = vmatpush1.bf16.msra.mxu0 %v3637
    %3857 = vmatprep.subr.bf16.mxu0 0
    %3858 = vmatpush1.bf16.msra.mxu0 %v3640
    %3859 = vmatprep.subr.bf16.mxu0 0
    %3860 = vmatpush1.bf16.msra.mxu0 %v3643
    %3861 = vmatprep.subr.bf16.mxu0 0
    %3862 = vmatpush1.bf16.msra.mxu0 %v3646
    %3863 = vmatprep.subr.bf16.mxu0 0
    %3864 = vmatpush1.bf16.msra.mxu0 %v3649
    %3865 = vmatprep.subr.bf16.mxu0 0
    %3866 = vmatpush1.bf16.msra.mxu0 0
    %3867 = vmatprep.subr.bf16.mxu0 0
    %3868 = vmatpush1.bf16.msra.mxu0 0
    %3869 = vmatprep.subr.bf16.mxu0 0
    %3870 = vmatpush1.bf16.msra.mxu0 0
    %3871 = vmatprep.subr.bf16.mxu0 0
    %3872 = vmatpush1.bf16.msra.mxu0 0
    %3873 = vmatprep.subr.bf16.mxu0 0
    %3874 = vmatpush1.bf16.msra.mxu0 0
    %3875 = vmatprep.subr.bf16.mxu0 0
    %3876 = vmatpush1.bf16.msra.mxu0 0
    %3877 = vmatprep.subr.bf16.mxu0 0
    %3878 = vmatpush1.bf16.msra.mxu0 0
    %3879 = vmatprep.subr.bf16.mxu0 0
    %3880 = vmatpush1.bf16.msra.mxu0 0
    %3881 = vmatprep.mubr.bf16.mxu0 0
    %3882 = vmatmul.mubr.bf16.gmra.mrb[0].mxu0 %v3224
    %v3883 = vpop.f32.mrb[0].mxu0
    %v3884 = vadd.f32 %v3843, %v3883
    %v3885 = vpop.f32.mrb[0].mxu0
    %v3886 = vpop.f32.mrb[0].mxu0
    %v3887 = vadd.f32 %v3846, %v3886
    %v3888 = vpop.f32.mrb[0].mxu0
    %3889 = vdwg.mxu0
    %3890 = vst [vmem:[#allocation9] sm:$0xff] %v3800
    %3891 = vst [vmem:[#allocation9 + $0x8] sm:$0xff] %v3802
    %3892 = vst [vmem:[#allocation9 + $0x10] sm:$0xff] %v3884
    %3893 = vst [vmem:[#allocation9 + $0x18] sm:$0xff] %v3804
    %3894 = vst [vmem:[#allocation9 + $0x20] sm:$0xff] %v3806
    %3895 = vst [vmem:[#allocation9 + $0x28] sm:$0xff] %v3887
    // Predicated region
    $region30: #{tpu_custom_call.1} parent=1 // pred_check
      _
    $region31: #{tpu_custom_call.1} parent=1 // pred_check_branch
      %3897 = sbr.rel (0) target = $region33
    $region32: #{tpu_custom_call.1} parent=1 // pred_region
      %s3899 = ssub.s32 768, 768
      %3900 = vsyncadd [#allocation5], %s3899
      %s3901 = sshll.u32 [#allocation9], 4
      %s3902 = int_to_ptr.vmem [resolvable:$true] %s3901
      %3907 = dma.vmem_to_hbm [thread:$0]  %s3902, 768, %s4, [#allocation5], 384, 384, 24
    $region33: #{tpu_custom_call.1} parent=1 // pred_fallthru
      _
    // Predicated region
    $region34: #{tpu_custom_call.1} parent=1 // pred_check
      _
    $region35: #{tpu_custom_call.1} parent=1 // pred_check_branch
      %3909 = sbr.rel (0) target = $region37
    $region36: #{tpu_custom_call.1} parent=1 // pred_region
      %3910 = dma.done [#allocation5], 768
    $region37: #{tpu_custom_call.1} parent=1 // pred_fallthru
      _
    %3911 = vsyncpa [#allocation4], 1
    %3912 = vsyncpa [#allocation7], 1
    %3913 = vsyncpa [#allocation5], 1

</llo_original>
